<compile_context>
chip_gen: v7x
topology: tpu7x:2x2x1
jax: 0.10.0
libtpu: 0.0.40
codegen_flags: <defaults>
</compile_context>

<pallas_src>
import functools

import jax
import jax.numpy as jnp
from jax import lax
from jax.experimental import pallas as pl
from jax.experimental.pallas import tpu as pltpu


def _round_up(n, m):
    return (n + m - 1) // m * m


def _gelu_exact(x):
    # PyTorch nn.GELU() default = exact erf-based GELU (computed in f32).
    return 0.5 * x * (1.0 + lax.erf(x * 0.7071067811865476))


def _mlp_kernel(x_ref, w1_ref, b1_ref, w2_ref, b2_ref, w3_ref, b3_ref,
                wh_ref, bh_ref, out_ref):
    # main: three Linear+GELU layers (bf16 matmuls, f32 accumulate).
    h = jnp.dot(x_ref[...], w1_ref[...],
                preferred_element_type=jnp.float32) + b1_ref[...]
    h = _gelu_exact(h)
    h = jnp.dot(h.astype(jnp.bfloat16), w2_ref[...],
                preferred_element_type=jnp.float32) + b2_ref[...]
    h = _gelu_exact(h)
    h = jnp.dot(h.astype(jnp.bfloat16), w3_ref[...],
                preferred_element_type=jnp.float32) + b3_ref[...]
    h = _gelu_exact(h)

    # fused heads: one (512, head_width) matmul, one lane-dense store.
    y = jnp.dot(h.astype(jnp.bfloat16), wh_ref[...],
                preferred_element_type=jnp.float32) + bh_ref[...]
    lane = lax.broadcasted_iota(jnp.int32, y.shape, 1)
    y = jnp.where(lane == 0, jax.nn.sigmoid(y), y)  # sigmoid on disc column 0
    out_ref[...] = y.astype(out_ref.dtype)


def pack_params(params):
    """Pack (in,out)-layout Linear params into kernel-ready arrays.

    The disc / traj heads are fused into one (512, head_width) weight and a
    (1, head_width) bias where head_width is a multiple of 128 (lane-dense
    output).  Matmul weights are cast to bf16; biases stay f32.
    """
    traj_dim = params["wt"].shape[1]
    head_width = max(128, _round_up(1 + traj_dim, 128))
    wh = jnp.zeros((512, head_width), jnp.float32)
    wh = wh.at[:, 0:1].set(params["wd"]).at[:, 1:1 + traj_dim].set(params["wt"])
    bh = jnp.zeros((1, head_width), jnp.float32)
    bh = bh.at[:, 0:1].set(params["bd"]).at[:, 1:1 + traj_dim].set(params["bt"])
    return dict(
        w1=params["w1"].astype(jnp.bfloat16), b1=params["b1"],
        w2=params["w2"].astype(jnp.bfloat16), b2=params["b2"],
        w3=params["w3"].astype(jnp.bfloat16), b3=params["b3"],
        wh=wh.astype(jnp.bfloat16), bh=bh,
        traj_dim=traj_dim, head_width=head_width,
    )


@functools.partial(jax.jit, static_argnames=("block_batch",))
def _run_kernel(x_pad, param_args, *, block_batch):
    b_pad, latent = x_pad.shape
    head_width = param_args[-1].shape[-1]
    tb = block_batch
    grid = (b_pad // tb,)

    def const_map(i):          # weights/biases: same block every step -> resident
        return (0, 0)

    param_bytes = sum(int(a.size) * a.dtype.itemsize for a in param_args)
    cost = pl.CostEstimate(
        flops=2 * b_pad * (latent * 1024 + 1024 * 1024 + 1024 * 512
                           + 512 * head_width),
        transcendentals=b_pad * (1024 + 1024 + 512 + head_width),
        bytes_accessed=(int(x_pad.size) * x_pad.dtype.itemsize + param_bytes
                        + b_pad * head_width * 4),
    )

    return pl.pallas_call(
        _mlp_kernel,
        out_shape=jax.ShapeDtypeStruct((b_pad, head_width), jnp.float32),
        grid_spec=pltpu.PrefetchScalarGridSpec(
            num_scalar_prefetch=0,
            grid=grid,
            in_specs=[pl.BlockSpec((tb, latent), lambda i: (i, 0))]
                     + [pl.BlockSpec(a.shape, const_map) for a in param_args],
            out_specs=pl.BlockSpec((tb, head_width), lambda i: (i, 0)),
        ),
        compiler_params=pltpu.CompilerParams(
            dimension_semantics=("parallel",),
            vmem_limit_bytes=64 * 1024 * 1024,
        ),
        cost_estimate=cost,
    )(x_pad, *param_args)


def policy_discriminator_cb(x, packed, *, block_batch=256):
    """Forward pass.  x: (B, latent_size) float32; packed: pack_params() output.

    Returns (discriminator_out (B,1), traj_out (B,traj_dim)) like the module.
    """
    B, _ = x.shape
    traj_dim = packed["traj_dim"]

    # Batch tiling: TB rows per grid step; pad B up to a multiple of TB.
    tb = _round_up(B, 8) if B <= block_batch else block_batch
    b_pad = _round_up(B, tb)
    x_pad = x if b_pad == B else jnp.pad(x, ((0, b_pad - B), (0, 0)))
    x_pad = x_pad.astype(jnp.bfloat16)

    param_order = ("w1", "b1", "w2", "b2", "w3", "b3", "wh", "bh")
    param_args = tuple(packed[k] for k in param_order)

    out = _run_kernel(x_pad, param_args, block_batch=tb)

    disc = out[:B, 0:1]
    traj = out[:B, 1:1 + traj_dim]
    return disc, traj


def init_params(key, latent_size, traj_dim):
    """Deterministic synthetic init (PyTorch-Linear-like uniform scaling)."""
    def linear(key, fan_in, fan_out):
        kw, kb = jax.random.split(key)
        bound = 1.0 / jnp.sqrt(fan_in)
        w = jax.random.uniform(kw, (fan_in, fan_out), jnp.float32, -bound, bound)
        b = jax.random.uniform(kb, (1, fan_out), jnp.float32, -bound, bound)
        return w, b

    keys = jax.random.split(key, 5)
    w1, b1 = linear(keys[0], latent_size, 1024)
    w2, b2 = linear(keys[1], 1024, 1024)
    w3, b3 = linear(keys[2], 1024, 512)
    wd, bd = linear(keys[3], 512, 1)
    wt, bt = linear(keys[4], 512, traj_dim)
    return dict(w1=w1, b1=b1, w2=w2, b2=b2, w3=w3, b3=b3,
                wd=wd, bd=bd, wt=wt, bt=bt)


def _reference_matched(x, p):
    """JAX reference mirroring the kernel's precision (bf16 mm, f32 accum)."""
    def mm(a, w):
        return jnp.dot(a.astype(jnp.bfloat16), w.astype(jnp.bfloat16),
                       preferred_element_type=jnp.float32)
    h = _gelu_exact(mm(x, p["w1"]) + p["b1"])
    h = _gelu_exact(mm(h, p["w2"]) + p["b2"])
    h = _gelu_exact(mm(h, p["w3"]) + p["b3"])
    disc = jax.nn.sigmoid(mm(h, p["wd"]) + p["bd"])
    traj = mm(h, p["wt"]) + p["bt"]
    return disc, traj


def _reference_f32(x, p):
    """Pure-f32 forward matching the PyTorch module semantics."""
    h = _gelu_exact(x @ p["w1"] + p["b1"])
    h = _gelu_exact(h @ p["w2"] + p["b2"])
    h = _gelu_exact(h @ p["w3"] + p["b3"])
    disc = jax.nn.sigmoid(h @ p["wd"] + p["bd"])
    traj = h @ p["wt"] + p["bt"]
    return disc, traj


if __name__ == "__main__":
    latent_size = 32
    traj_dim = 8
    batch = 8

    key = jax.random.PRNGKey(0)
    kx, kp = jax.random.split(key)
    x = jax.random.normal(kx, (batch, latent_size), jnp.float32)
    params = init_params(kp, latent_size, traj_dim)
    packed = pack_params(params)

    disc, traj = policy_discriminator_cb(x, packed)
    jax.block_until_ready((disc, traj))
    assert disc.shape == (batch, 1) and traj.shape == (batch, traj_dim)

    # Tight check against a JAX reference using identical precision choices.
    disc_m, traj_m = _reference_matched(x, params)
    assert jnp.allclose(disc, disc_m, atol=2e-3, rtol=2e-3)
    assert jnp.allclose(traj, traj_m, atol=2e-3, rtol=2e-3)

    # Loose sanity check against the pure-f32 PyTorch-equivalent forward
    # (bf16 matmul inputs trade a little parity for MXU/HBM efficiency).
    disc_f, traj_f = _reference_f32(x, params)
    assert jnp.allclose(disc, disc_f, atol=5e-2)
    assert jnp.allclose(traj, traj_f, atol=5e-2)

    print("KERNEL_OK")
</pallas_src>

<mosaic_0001>
module attributes {stable_mosaic.version = 11 : i64} {
  func.func @_mlp_kernel(%arg0: i32, %arg1: memref<8x32xbf16, #tpu.memory_space<vmem>>, %arg2: memref<32x1024xbf16, #tpu.memory_space<vmem>>, %arg3: memref<1x1024xf32, #tpu.memory_space<vmem>>, %arg4: memref<1024x1024xbf16, #tpu.memory_space<vmem>>, %arg5: memref<1x1024xf32, #tpu.memory_space<vmem>>, %arg6: memref<1024x512xbf16, #tpu.memory_space<vmem>>, %arg7: memref<1x512xf32, #tpu.memory_space<vmem>>, %arg8: memref<512x128xbf16, #tpu.memory_space<vmem>>, %arg9: memref<1x128xf32, #tpu.memory_space<vmem>>, %arg10: memref<8x128xf32, #tpu.memory_space<vmem>>) attributes {dimension_semantics = [#tpu.dimension_semantics<parallel>], iteration_bounds = array<i64: 1>, scalar_prefetch = 0 : i64, scratch_operands = 0 : i64, tpu.core_type = #tpu.core_type<tc>, window_params = [{transform_indices = @transform_0, window_bounds = array<i64: 8, 32>}, {pipeline_mode = #tpu.pipeline_mode<synchronous>, transform_indices = @transform_1, window_bounds = array<i64: 32, 1024>}, {pipeline_mode = #tpu.pipeline_mode<synchronous>, transform_indices = @transform_2, window_bounds = array<i64: 1, 1024>}, {pipeline_mode = #tpu.pipeline_mode<synchronous>, transform_indices = @transform_3, window_bounds = array<i64: 1024, 1024>}, {pipeline_mode = #tpu.pipeline_mode<synchronous>, transform_indices = @transform_4, window_bounds = array<i64: 1, 1024>}, {pipeline_mode = #tpu.pipeline_mode<synchronous>, transform_indices = @transform_5, window_bounds = array<i64: 1024, 512>}, {pipeline_mode = #tpu.pipeline_mode<synchronous>, transform_indices = @transform_6, window_bounds = array<i64: 1, 512>}, {pipeline_mode = #tpu.pipeline_mode<synchronous>, transform_indices = @transform_7, window_bounds = array<i64: 512, 128>}, {pipeline_mode = #tpu.pipeline_mode<synchronous>, transform_indices = @transform_8, window_bounds = array<i64: 1, 128>}, {transform_indices = @transform_9, window_bounds = array<i64: 8, 128>}]} {
    %c0 = arith.constant 0 : index
    %c0_0 = arith.constant 0 : index
    %0 = vector.load %arg1[%c0, %c0_0] : memref<8x32xbf16, #tpu.memory_space<vmem>>, vector<8x32xbf16>
    %c0_1 = arith.constant 0 : index
    %c0_2 = arith.constant 0 : index
    %1 = vector.load %arg2[%c0_1, %c0_2] : memref<32x1024xbf16, #tpu.memory_space<vmem>>, vector<32x1024xbf16>
    %cst = arith.constant dense<0.000000e+00> : vector<8x1024xf32>
    %2 = tpu.matmul %0, %1, %cst {dimension_numbers = #tpu.dot_dimension_numbers<[1], [0], [0], [1], [0, 0, 1, 1], [], []>} : vector<8x32xbf16>, vector<32x1024xbf16>, vector<8x1024xf32> -> vector<8x1024xf32>
    %c0_3 = arith.constant 0 : index
    %c0_4 = arith.constant 0 : index
    %3 = vector.load %arg3[%c0_3, %c0_4] : memref<1x1024xf32, #tpu.memory_space<vmem>>, vector<1x1024xf32>
    %4 = vector.broadcast %3 : vector<1x1024xf32> to vector<8x1024xf32>
    %5 = arith.addf %2, %4 : vector<8x1024xf32>
    %cst_5 = arith.constant 5.000000e-01 : f32
    %6 = vector.broadcast %cst_5 : f32 to vector<8x1024xf32>
    %7 = arith.mulf %6, %5 : vector<8x1024xf32>
    %cst_6 = arith.constant 0.707106769 : f32
    %8 = vector.broadcast %cst_6 : f32 to vector<8x1024xf32>
    %9 = arith.mulf %5, %8 : vector<8x1024xf32>
    %10 = math.erf %9 : vector<8x1024xf32>
    %cst_7 = arith.constant 1.000000e+00 : f32
    %11 = vector.broadcast %cst_7 : f32 to vector<8x1024xf32>
    %12 = arith.addf %11, %10 : vector<8x1024xf32>
    %13 = arith.mulf %7, %12 : vector<8x1024xf32>
    %14 = arith.truncf %13 : vector<8x1024xf32> to vector<8x1024xbf16>
    %c0_8 = arith.constant 0 : index
    %c0_9 = arith.constant 0 : index
    %15 = vector.load %arg4[%c0_8, %c0_9] : memref<1024x1024xbf16, #tpu.memory_space<vmem>>, vector<1024x1024xbf16>
    %cst_10 = arith.constant dense<0.000000e+00> : vector<8x1024xf32>
    %16 = tpu.matmul %14, %15, %cst_10 {dimension_numbers = #tpu.dot_dimension_numbers<[1], [0], [0], [1], [0, 0, 1, 1], [], []>} : vector<8x1024xbf16>, vector<1024x1024xbf16>, vector<8x1024xf32> -> vector<8x1024xf32>
    %c0_11 = arith.constant 0 : index
    %c0_12 = arith.constant 0 : index
    %17 = vector.load %arg5[%c0_11, %c0_12] : memref<1x1024xf32, #tpu.memory_space<vmem>>, vector<1x1024xf32>
    %18 = vector.broadcast %17 : vector<1x1024xf32> to vector<8x1024xf32>
    %19 = arith.addf %16, %18 : vector<8x1024xf32>
    %cst_13 = arith.constant 5.000000e-01 : f32
    %20 = vector.broadcast %cst_13 : f32 to vector<8x1024xf32>
    %21 = arith.mulf %20, %19 : vector<8x1024xf32>
    %cst_14 = arith.constant 0.707106769 : f32
    %22 = vector.broadcast %cst_14 : f32 to vector<8x1024xf32>
    %23 = arith.mulf %19, %22 : vector<8x1024xf32>
    %24 = math.erf %23 : vector<8x1024xf32>
    %cst_15 = arith.constant 1.000000e+00 : f32
    %25 = vector.broadcast %cst_15 : f32 to vector<8x1024xf32>
    %26 = arith.addf %25, %24 : vector<8x1024xf32>
    %27 = arith.mulf %21, %26 : vector<8x1024xf32>
    %28 = arith.truncf %27 : vector<8x1024xf32> to vector<8x1024xbf16>
    %c0_16 = arith.constant 0 : index
    %c0_17 = arith.constant 0 : index
    %29 = vector.load %arg6[%c0_16, %c0_17] : memref<1024x512xbf16, #tpu.memory_space<vmem>>, vector<1024x512xbf16>
    %cst_18 = arith.constant dense<0.000000e+00> : vector<8x512xf32>
    %30 = tpu.matmul %28, %29, %cst_18 {dimension_numbers = #tpu.dot_dimension_numbers<[1], [0], [0], [1], [0, 0, 1, 1], [], []>} : vector<8x1024xbf16>, vector<1024x512xbf16>, vector<8x512xf32> -> vector<8x512xf32>
    %c0_19 = arith.constant 0 : index
    %c0_20 = arith.constant 0 : index
    %31 = vector.load %arg7[%c0_19, %c0_20] : memref<1x512xf32, #tpu.memory_space<vmem>>, vector<1x512xf32>
    %32 = vector.broadcast %31 : vector<1x512xf32> to vector<8x512xf32>
    %33 = arith.addf %30, %32 : vector<8x512xf32>
    %cst_21 = arith.constant 5.000000e-01 : f32
    %34 = vector.broadcast %cst_21 : f32 to vector<8x512xf32>
    %35 = arith.mulf %34, %33 : vector<8x512xf32>
    %cst_22 = arith.constant 0.707106769 : f32
    %36 = vector.broadcast %cst_22 : f32 to vector<8x512xf32>
    %37 = arith.mulf %33, %36 : vector<8x512xf32>
    %38 = math.erf %37 : vector<8x512xf32>
    %cst_23 = arith.constant 1.000000e+00 : f32
    %39 = vector.broadcast %cst_23 : f32 to vector<8x512xf32>
    %40 = arith.addf %39, %38 : vector<8x512xf32>
    %41 = arith.mulf %35, %40 : vector<8x512xf32>
    %42 = arith.truncf %41 : vector<8x512xf32> to vector<8x512xbf16>
    %c0_24 = arith.constant 0 : index
    %c0_25 = arith.constant 0 : index
    %43 = vector.load %arg8[%c0_24, %c0_25] : memref<512x128xbf16, #tpu.memory_space<vmem>>, vector<512x128xbf16>
    %cst_26 = arith.constant dense<0.000000e+00> : vector<8x128xf32>
    %44 = tpu.matmul %42, %43, %cst_26 {dimension_numbers = #tpu.dot_dimension_numbers<[1], [0], [0], [1], [0, 0, 1, 1], [], []>} : vector<8x512xbf16>, vector<512x128xbf16>, vector<8x128xf32> -> vector<8x128xf32>
    %c0_27 = arith.constant 0 : index
    %c0_28 = arith.constant 0 : index
    %45 = vector.load %arg9[%c0_27, %c0_28] : memref<1x128xf32, #tpu.memory_space<vmem>>, vector<1x128xf32>
    %46 = vector.broadcast %45 : vector<1x128xf32> to vector<8x128xf32>
    %47 = arith.addf %44, %46 : vector<8x128xf32>
    %48 = tpu.iota {dimensions = array<i32: 1>} : vector<8x128xi32>
    %c0_i32 = arith.constant 0 : i32
    %49 = vector.broadcast %c0_i32 : i32 to vector<8x128xi32>
    %50 = arith.cmpi eq, %48, %49 : vector<8x128xi32>
    %51 = arith.negf %47 : vector<8x128xf32>
    %52 = math.exp %51 : vector<8x128xf32>
    %cst_29 = arith.constant 1.000000e+00 : f32
    %53 = vector.broadcast %cst_29 : f32 to vector<8x128xf32>
    %54 = arith.addf %53, %52 : vector<8x128xf32>
    %55 = arith.divf %53, %54 : vector<8x128xf32>
    %56 = arith.select %50, %55, %47 : vector<8x128xi1>, vector<8x128xf32>
    %c0_30 = arith.constant 0 : index
    %c0_31 = arith.constant 0 : index
    %57 = vector.load %arg10[%c0_30, %c0_31] : memref<8x128xf32, #tpu.memory_space<vmem>>, vector<8x128xf32>
    tpu.vector_store %arg10[%c0_30, %c0_31], %56 {strides = array<i32>} : memref<8x128xf32, #tpu.memory_space<vmem>>, vector<8x128xf32>,
    return
  }
  func.func @transform_0(%arg0: i32) -> (i32, i32) {
    %c0_i32 = arith.constant 0 : i32
    %c0_i32_0 = arith.constant 0 : i32
    return %arg0, %c0_i32 : i32, i32
  }
  func.func @transform_1(%arg0: i32) -> (i32, i32) {
    %c0_i32 = arith.constant 0 : i32
    %c0_i32_0 = arith.constant 0 : i32
    %c0_i32_1 = arith.constant 0 : i32
    return %c0_i32, %c0_i32_0 : i32, i32
  }
  func.func @transform_2(%arg0: i32) -> (i32, i32) {
    %c0_i32 = arith.constant 0 : i32
    %c0_i32_0 = arith.constant 0 : i32
    %c0_i32_1 = arith.constant 0 : i32
    return %c0_i32, %c0_i32_0 : i32, i32
  }
  func.func @transform_3(%arg0: i32) -> (i32, i32) {
    %c0_i32 = arith.constant 0 : i32
    %c0_i32_0 = arith.constant 0 : i32
    %c0_i32_1 = arith.constant 0 : i32
    return %c0_i32, %c0_i32_0 : i32, i32
  }
  func.func @transform_4(%arg0: i32) -> (i32, i32) {
    %c0_i32 = arith.constant 0 : i32
    %c0_i32_0 = arith.constant 0 : i32
    %c0_i32_1 = arith.constant 0 : i32
    return %c0_i32, %c0_i32_0 : i32, i32
  }
  func.func @transform_5(%arg0: i32) -> (i32, i32) {
    %c0_i32 = arith.constant 0 : i32
    %c0_i32_0 = arith.constant 0 : i32
    %c0_i32_1 = arith.constant 0 : i32
    return %c0_i32, %c0_i32_0 : i32, i32
  }
  func.func @transform_6(%arg0: i32) -> (i32, i32) {
    %c0_i32 = arith.constant 0 : i32
    %c0_i32_0 = arith.constant 0 : i32
    %c0_i32_1 = arith.constant 0 : i32
    return %c0_i32, %c0_i32_0 : i32, i32
  }
  func.func @transform_7(%arg0: i32) -> (i32, i32) {
    %c0_i32 = arith.constant 0 : i32
    %c0_i32_0 = arith.constant 0 : i32
    %c0_i32_1 = arith.constant 0 : i32
    return %c0_i32, %c0_i32_0 : i32, i32
  }
  func.func @transform_8(%arg0: i32) -> (i32, i32) {
    %c0_i32 = arith.constant 0 : i32
    %c0_i32_0 = arith.constant 0 : i32
    %c0_i32_1 = arith.constant 0 : i32
    return %c0_i32, %c0_i32_0 : i32, i32
  }
  func.func @transform_9(%arg0: i32) -> (i32, i32) {
    %c0_i32 = arith.constant 0 : i32
    %c0_i32_0 = arith.constant 0 : i32
    return %arg0, %c0_i32 : i32, i32
  }
}

</mosaic_0001>

<llo_original>
// kernel: _run_kernel.1
$region0: #{_run_kernel.1}
  #allocation0 [shape = 'u32[]', space=smem, size = 0x4, offset = 0x4, fixed_abs, tag = 'smem constant byte address 0x4 - core index']
  #allocation1 [shape = 'u32[144,128]{1,0:T(1,128)}', space=vmem, size = 0x12000, scoped, tag = 'internal scratch']
  %s0 = inlined_call_operand.hbm [shape: bf16[8,32], index: 0, kind: input, shape index: {}]
  %s1 = inlined_call_operand.hbm [shape: bf16[32,1024], index: 1, kind: input, shape index: {}]
  %s2 = inlined_call_operand.hbm [shape: f32[1,1024], index: 2, kind: input, shape index: {}]
  %s3 = inlined_call_operand.hbm [shape: bf16[1024,1024], index: 3, kind: input, shape index: {}]
  %s4 = inlined_call_operand.hbm [shape: f32[1,1024], index: 4, kind: input, shape index: {}]
  %s5 = inlined_call_operand.hbm [shape: bf16[1024,512], index: 5, kind: input, shape index: {}]
  %s6 = inlined_call_operand.hbm [shape: f32[1,512], index: 6, kind: input, shape index: {}]
  %s7 = inlined_call_operand.hbm [shape: bf16[512,128], index: 7, kind: input, shape index: {}]
  %s8 = inlined_call_operand.hbm [shape: f32[1,128], index: 8, kind: input, shape index: {}]
  %s9 = inlined_call_operand.hbm [shape: f32[8,128], index: 9, kind: output, shape index: {}]
  %s10 = sld [smem:[#allocation0]]
  $region82: #{_run_kernel.1} parent=0
    _
  %s12 = ssub.s32 1, %s10
  %s13 = scalar_select 0, %s12, %s10
  $region1: #{_run_kernel.1} parent=0
    #allocation2 [shape = 'u8[2048]{0}', space=vmem, size = 0x800, scoped, tag = 'input window, operand 0, single buffered']
    #allocation3 [shape = 's32[1]{0}', space=sflag, size = 0x4, scoped, tag = 'scoped memory for _run_kernel.1']
    #allocation4 [shape = 's32[1]{0}', space=sflag, size = 0x4, scoped, tag = 'scoped memory for _run_kernel.1']
    #allocation5 [shape = 'u8[65536]{0}', space=vmem, size = 0x10000, scoped, tag = 'input window, operand 1, single buffered']
    #allocation6 [shape = 's32[1]{0}', space=sflag, size = 0x4, scoped, tag = 'scoped memory for _run_kernel.1']
    #allocation7 [shape = 'u8[4096]{0}', space=vmem, size = 0x1000, scoped, tag = 'input window, operand 2, single buffered']
    #allocation8 [shape = 'u8[2097152]{0}', space=vmem, size = 0x200000, scoped, tag = 'input window, operand 3, single buffered']
    #allocation9 [shape = 's32[1]{0}', space=sflag, size = 0x4, scoped, tag = 'scoped memory for _run_kernel.1']
    #allocation10 [shape = 'u8[4096]{0}', space=vmem, size = 0x1000, scoped, tag = 'input window, operand 4, single buffered']
    #allocation11 [shape = 'u8[1048576]{0}', space=vmem, size = 0x100000, scoped, tag = 'input window, operand 5, single buffered']
    #allocation12 [shape = 's32[1]{0}', space=sflag, size = 0x4, scoped, tag = 'scoped memory for _run_kernel.1']
    #allocation13 [shape = 'u8[2048]{0}', space=vmem, size = 0x800, scoped, tag = 'input window, operand 6, single buffered']
    #allocation14 [shape = 'u8[131072]{0}', space=vmem, size = 0x20000, scoped, tag = 'input window, operand 7, single buffered']
    #allocation15 [shape = 's32[1]{0}', space=sflag, size = 0x4, scoped, tag = 'scoped memory for _run_kernel.1']
    #allocation16 [shape = 'u8[512]{0}', space=vmem, size = 0x400, scoped, tag = 'input window, operand 8, single buffered']
    #allocation17 [shape = 'u8[4096]{0}', space=vmem, size = 0x1000, scoped, tag = 'output window, operand 0, single buffered']
    %14 = vsyncpa [#allocation3], 0
    %15 = vsyncpa [#allocation6], 0
    %16 = vsyncpa [#allocation9], 0
    %17 = vsyncpa [#allocation12], 0
    %18 = vsyncpa [#allocation15], 0
    %19 = vsyncpa [#allocation4], 0
    // Predicated region
    $region2: #{_run_kernel.1} parent=1 // pred_check
      _
    $region3: #{_run_kernel.1} parent=1 // pred_check_branch
      %21 = sbr.rel (0) target = $region5
    $region4: #{_run_kernel.1} parent=1 // pred_region
      %s23 = ssub.s32 64, 64
      %24 = vsyncadd [#allocation3], %s23
      %s26 = sshll.u32 [#allocation2], 4
      %s27 = int_to_ptr.vmem [resolvable:$true] %s26
      %29 = dma.hbm_to_vmem [thread:$0]  %s0, 64, %s27, [#allocation3]
    $region5: #{_run_kernel.1} parent=1 // pred_fallthru
      _
    // Predicated region
    $region6: #{_run_kernel.1} parent=1 // pred_check
      _
    $region7: #{_run_kernel.1} parent=1 // pred_check_branch
      %31 = sbr.rel (0) target = $region9
    $region8: #{_run_kernel.1} parent=1 // pred_region
      %s33 = ssub.s32 2048, 2048
      %34 = vsyncadd [#allocation6], %s33
      %s35 = sshll.u32 [#allocation5], 4
      %s36 = int_to_ptr.vmem [resolvable:$true] %s35
      %41 = dma.hbm_to_vmem [thread:$0]  %s1, 2048, %s36, [#allocation6], 512, 512, 32
    $region9: #{_run_kernel.1} parent=1 // pred_fallthru
      _
    // Predicated region
    $region10: #{_run_kernel.1} parent=1 // pred_check
      _
    $region11: #{_run_kernel.1} parent=1 // pred_check_branch
      %43 = sbr.rel (0) target = $region13
    $region12: #{_run_kernel.1} parent=1 // pred_region
      %s45 = ssub.s32 128, 128
      %46 = vsyncadd [#allocation6], %s45
      %s48 = sshll.u32 [#allocation7], 4
      %s49 = int_to_ptr.vmem [resolvable:$true] %s48
      %51 = dma.hbm_to_vmem [thread:$0]  %s2, 128, %s49, [#allocation6]
    $region13: #{_run_kernel.1} parent=1 // pred_fallthru
      _
    // Predicated region
    $region14: #{_run_kernel.1} parent=1 // pred_check
      _
    $region15: #{_run_kernel.1} parent=1 // pred_check_branch
      %53 = sbr.rel (0) target = $region17
    $region16: #{_run_kernel.1} parent=1 // pred_region
      %s55 = ssub.s32 65536, 65536
      %56 = vsyncadd [#allocation9], %s55
      %s57 = sshll.u32 [#allocation8], 4
      %s58 = int_to_ptr.vmem [resolvable:$true] %s57
      %63 = dma.hbm_to_vmem [thread:$0]  %s3, 65536, %s58, [#allocation9], 512, 512, 32
    $region17: #{_run_kernel.1} parent=1 // pred_fallthru
      _
    // Predicated region
    $region18: #{_run_kernel.1} parent=1 // pred_check
      _
    $region19: #{_run_kernel.1} parent=1 // pred_check_branch
      %65 = sbr.rel (0) target = $region21
    $region20: #{_run_kernel.1} parent=1 // pred_region
      %s67 = ssub.s32 128, 128
      %68 = vsyncadd [#allocation9], %s67
      %s70 = sshll.u32 [#allocation10], 4
      %s71 = int_to_ptr.vmem [resolvable:$true] %s70
      %73 = dma.hbm_to_vmem [thread:$0]  %s4, 128, %s71, [#allocation9]
    $region21: #{_run_kernel.1} parent=1 // pred_fallthru
      _
    // Predicated region
    $region22: #{_run_kernel.1} parent=1 // pred_check
      _
    $region23: #{_run_kernel.1} parent=1 // pred_check_branch
      %75 = sbr.rel (0) target = $region25
    $region24: #{_run_kernel.1} parent=1 // pred_region
      %s77 = ssub.s32 32768, 32768
      %78 = vsyncadd [#allocation12], %s77
      %s79 = sshll.u32 [#allocation11], 4
      %s80 = int_to_ptr.vmem [resolvable:$true] %s79
      %85 = dma.hbm_to_vmem [thread:$0]  %s5, 32768, %s80, [#allocation12], 256, 256, 16
    $region25: #{_run_kernel.1} parent=1 // pred_fallthru
      _
    // Predicated region
    $region26: #{_run_kernel.1} parent=1 // pred_check
      _
    $region27: #{_run_kernel.1} parent=1 // pred_check_branch
      %87 = sbr.rel (0) target = $region29
    $region28: #{_run_kernel.1} parent=1 // pred_region
      %s89 = ssub.s32 64, 64
      %90 = vsyncadd [#allocation12], %s89
      %s92 = sshll.u32 [#allocation13], 4
      %s93 = int_to_ptr.vmem [resolvable:$true] %s92
      %95 = dma.hbm_to_vmem [thread:$0]  %s6, 64, %s93, [#allocation12]
    $region29: #{_run_kernel.1} parent=1 // pred_fallthru
      _
    // Predicated region
    $region30: #{_run_kernel.1} parent=1 // pred_check
      _
    $region31: #{_run_kernel.1} parent=1 // pred_check_branch
      %97 = sbr.rel (0) target = $region33
    $region32: #{_run_kernel.1} parent=1 // pred_region
      %s99 = ssub.s32 4096, 4096
      %100 = vsyncadd [#allocation15], %s99
      %s101 = sshll.u32 [#allocation14], 4
      %s102 = int_to_ptr.vmem [resolvable:$true] %s101
      %107 = dma.hbm_to_vmem [thread:$0]  %s7, 4096, %s102, [#allocation15], 64, 64, 4
    $region33: #{_run_kernel.1} parent=1 // pred_fallthru
      _
    // Predicated region
    $region34: #{_run_kernel.1} parent=1 // pred_check
      _
    $region35: #{_run_kernel.1} parent=1 // pred_check_branch
      %109 = sbr.rel (0) target = $region37
    $region36: #{_run_kernel.1} parent=1 // pred_region
      %s111 = ssub.s32 16, 16
      %112 = vsyncadd [#allocation15], %s111
      %s114 = sshll.u32 [#allocation16], 4
      %s115 = int_to_ptr.vmem [resolvable:$true] %s114
      %117 = dma.hbm_to_vmem [thread:$0]  %s8, 16, %s115, [#allocation15]
    $region37: #{_run_kernel.1} parent=1 // pred_fallthru
      _
    // Predicated region
    $region38: #{_run_kernel.1} parent=1 // pred_check
      _
    $region39: #{_run_kernel.1} parent=1 // pred_check_branch
      %119 = sbr.rel (0) target = $region41
    $region40: #{_run_kernel.1} parent=1 // pred_region
      %120 = dma.done [#allocation3], 64
    $region41: #{_run_kernel.1} parent=1 // pred_fallthru
      _
    // Predicated region
    $region42: #{_run_kernel.1} parent=1 // pred_check
      _
    $region43: #{_run_kernel.1} parent=1 // pred_check_branch
      %122 = sbr.rel (0) target = $region45
    $region44: #{_run_kernel.1} parent=1 // pred_region
      %123 = dma.done [#allocation6], 2048
    $region45: #{_run_kernel.1} parent=1 // pred_fallthru
      _
    // Predicated region
    $region46: #{_run_kernel.1} parent=1 // pred_check
      _
    $region47: #{_run_kernel.1} parent=1 // pred_check_branch
      %125 = sbr.rel (0) target = $region49
    $region48: #{_run_kernel.1} parent=1 // pred_region
      %126 = dma.done [#allocation6], 128
    $region49: #{_run_kernel.1} parent=1 // pred_fallthru
      _
    // Predicated region
    $region50: #{_run_kernel.1} parent=1 // pred_check
      _
    $region51: #{_run_kernel.1} parent=1 // pred_check_branch
      %128 = sbr.rel (0) target = $region53
    $region52: #{_run_kernel.1} parent=1 // pred_region
      %129 = dma.done [#allocation9], 65536
    $region53: #{_run_kernel.1} parent=1 // pred_fallthru
      _
    // Predicated region
    $region54: #{_run_kernel.1} parent=1 // pred_check
      _
    $region55: #{_run_kernel.1} parent=1 // pred_check_branch
      %131 = sbr.rel (0) target = $region57
    $region56: #{_run_kernel.1} parent=1 // pred_region
      %132 = dma.done [#allocation9], 128
    $region57: #{_run_kernel.1} parent=1 // pred_fallthru
      _
    // Predicated region
    $region58: #{_run_kernel.1} parent=1 // pred_check
      _
    $region59: #{_run_kernel.1} parent=1 // pred_check_branch
      %134 = sbr.rel (0) target = $region61
    $region60: #{_run_kernel.1} parent=1 // pred_region
      %135 = dma.done [#allocation12], 32768
    $region61: #{_run_kernel.1} parent=1 // pred_fallthru
      _
    // Predicated region
    $region62: #{_run_kernel.1} parent=1 // pred_check
      _
    $region63: #{_run_kernel.1} parent=1 // pred_check_branch
      %137 = sbr.rel (0) target = $region65
    $region64: #{_run_kernel.1} parent=1 // pred_region
      %138 = dma.done [#allocation12], 64
    $region65: #{_run_kernel.1} parent=1 // pred_fallthru
      _
    // Predicated region
    $region66: #{_run_kernel.1} parent=1 // pred_check
      _
    $region67: #{_run_kernel.1} parent=1 // pred_check_branch
      %140 = sbr.rel (0) target = $region69
    $region68: #{_run_kernel.1} parent=1 // pred_region
      %141 = dma.done [#allocation15], 4096
    $region69: #{_run_kernel.1} parent=1 // pred_fallthru
      _
    // Predicated region
    $region70: #{_run_kernel.1} parent=1 // pred_check
      _
    $region71: #{_run_kernel.1} parent=1 // pred_check_branch
      %143 = sbr.rel (0) target = $region73
    $region72: #{_run_kernel.1} parent=1 // pred_region
      %144 = dma.done [#allocation15], 16
    $region73: #{_run_kernel.1} parent=1 // pred_fallthru
      _
    %v146 = vld [vmem:[#allocation2] sm:$0xf]
    %v147 = vld [vmem:[#allocation5] sm:$0xff]
    %v148 = vld [vmem:[#allocation5 + $0x8] sm:$0xff]
    %v149 = vld [vmem:[#allocation5 + $0x10] sm:$0xff]
    %v150 = vld [vmem:[#allocation5 + $0x18] sm:$0xff]
    %v151 = vld [vmem:[#allocation5 + $0x20] sm:$0xff]
    %v152 = vld [vmem:[#allocation5 + $0x28] sm:$0xff]
    %v153 = vld [vmem:[#allocation5 + $0x30] sm:$0xff]
    %v154 = vld [vmem:[#allocation5 + $0x38] sm:$0xff]
    %v155 = vld [vmem:[#allocation5 + $0x40] sm:$0xff]
    %v156 = vld [vmem:[#allocation5 + $0x48] sm:$0xff]
    %v157 = vld [vmem:[#allocation5 + $0x50] sm:$0xff]
    %v158 = vld [vmem:[#allocation5 + $0x58] sm:$0xff]
    %v159 = vld [vmem:[#allocation5 + $0x60] sm:$0xff]
    %v160 = vld [vmem:[#allocation5 + $0x68] sm:$0xff]
    %v161 = vld [vmem:[#allocation5 + $0x70] sm:$0xff]
    %v162 = vld [vmem:[#allocation5 + $0x78] sm:$0xff]
    %v163 = vld [vmem:[#allocation7] sm:$0xff]
    %v165 = vlaneseq
    %v166 = vshrl.u32 %v165, 7
    %v167 = vsub.s32 0, %v166
    %v168 = vrot.slane %v163, %v167
    %v169 = vlaneseq
    %v170 = vshrl.u32 %v169, 7
    %v171 = vsub.s32 1, %v170
    %v172 = vrot.slane %v163, %v171
    %v173 = vlaneseq
    %v174 = vshrl.u32 %v173, 7
    %v175 = vsub.s32 2, %v174
    %v176 = vrot.slane %v163, %v175
    %v177 = vlaneseq
    %v178 = vshrl.u32 %v177, 7
    %v179 = vsub.s32 3, %v178
    %v180 = vrot.slane %v163, %v179
    %v181 = vlaneseq
    %v182 = vshrl.u32 %v181, 7
    %v183 = vsub.s32 4, %v182
    %v184 = vrot.slane %v163, %v183
    %v185 = vlaneseq
    %v186 = vshrl.u32 %v185, 7
    %v187 = vsub.s32 5, %v186
    %v188 = vrot.slane %v163, %v187
    %v189 = vlaneseq
    %v190 = vshrl.u32 %v189, 7
    %v191 = vsub.s32 6, %v190
    %v192 = vrot.slane %v163, %v191
    %v193 = vlaneseq
    %v194 = vshrl.u32 %v193, 7
    %v195 = vsub.s32 7, %v194
    %v196 = vrot.slane %v163, %v195
    %v221 = vunpack.c.l.b16 %v147
    %v222 = vunpack.c.h.b16 %v147
    %v223 = vunpack.c.l.b16 %v148
    %v224 = vunpack.c.h.b16 %v148
    %v225 = vunpack.c.l.b16 %v149
    %v226 = vunpack.c.h.b16 %v149
    %v227 = vunpack.c.l.b16 %v150
    %v228 = vunpack.c.h.b16 %v150
    %v229 = vunpack.c.l.b16 %v151
    %v230 = vunpack.c.h.b16 %v151
    %v231 = vunpack.c.l.b16 %v152
    %v232 = vunpack.c.h.b16 %v152
    %v233 = vunpack.c.l.b16 %v153
    %v234 = vunpack.c.h.b16 %v153
    %v235 = vunpack.c.l.b16 %v154
    %v236 = vunpack.c.h.b16 %v154
    %v237 = vunpack.c.l.b16 %v155
    %v238 = vunpack.c.h.b16 %v155
    %v239 = vunpack.c.l.b16 %v156
    %v240 = vunpack.c.h.b16 %v156
    %v241 = vunpack.c.l.b16 %v157
    %v242 = vunpack.c.h.b16 %v157
    %v243 = vunpack.c.l.b16 %v158
    %v244 = vunpack.c.h.b16 %v158
    %v245 = vunpack.c.l.b16 %v159
    %v246 = vunpack.c.h.b16 %v159
    %v247 = vunpack.c.l.b16 %v160
    %v248 = vunpack.c.h.b16 %v160
    %v249 = vunpack.c.l.b16 %v161
    %v250 = vunpack.c.h.b16 %v161
    %v251 = vunpack.c.l.b16 %v162
    %v252 = vunpack.c.h.b16 %v162
    %v253 = vpack.c.b16 %v229, %v221
    %v254 = vpack.c.b16 %v230, %v222
    %v255 = vpack.c.b16 %v231, %v223
    %v256 = vpack.c.b16 %v232, %v224
    %v257 = vpack.c.b16 %v233, %v225
    %v258 = vpack.c.b16 %v234, %v226
    %v259 = vpack.c.b16 %v235, %v227
    %v260 = vpack.c.b16 %v236, %v228
    %v261 = vpack.c.b16 %v245, %v237
    %v262 = vpack.c.b16 %v246, %v238
    %v263 = vpack.c.b16 %v247, %v239
    %v264 = vpack.c.b16 %v248, %v240
    %v265 = vpack.c.b16 %v249, %v241
    %v266 = vpack.c.b16 %v250, %v242
    %v267 = vpack.c.b16 %v251, %v243
    %v268 = vpack.c.b16 %v252, %v244
    %vm285 = vcmask 261120
    %v287 = vsel %vm285, %v146, 0
    %289 = vmatprep.subr.bf16.mxu0 %v254
    %290 = vmatpush1.bf16.msra.mxu0 %v253
    %291 = vmatprep.subr.bf16.mxu0 %v262
    %292 = vmatpush1.bf16.msra.mxu0 %v261
    %293 = vmatprep.subr.bf16.mxu0 0
    %294 = vmatpush1.bf16.msra.mxu0 0
    %295 = vmatprep.subr.bf16.mxu0 0
    %296 = vmatpush1.bf16.msra.mxu0 0
    %297 = vmatprep.subr.bf16.mxu0 0
    %298 = vmatpush1.bf16.msra.mxu0 0
    %299 = vmatprep.subr.bf16.mxu0 0
    %300 = vmatpush1.bf16.msra.mxu0 0
    %301 = vmatprep.subr.bf16.mxu0 0
    %302 = vmatpush1.bf16.msra.mxu0 0
    %303 = vmatprep.subr.bf16.mxu0 0
    %304 = vmatpush1.bf16.msra.mxu0 0
    %305 = vmatprep.subr.bf16.mxu0 0
    %306 = vmatpush1.bf16.msra.mxu0 0
    %307 = vmatprep.subr.bf16.mxu0 0
    %308 = vmatpush1.bf16.msra.mxu0 0
    %309 = vmatprep.subr.bf16.mxu0 0
    %310 = vmatpush1.bf16.msra.mxu0 0
    %311 = vmatprep.subr.bf16.mxu0 0
    %312 = vmatpush1.bf16.msra.mxu0 0
    %313 = vmatprep.subr.bf16.mxu0 0
    %314 = vmatpush1.bf16.msra.mxu0 0
    %315 = vmatprep.subr.bf16.mxu0 0
    %316 = vmatpush1.bf16.msra.mxu0 0
    %317 = vmatprep.subr.bf16.mxu0 0
    %318 = vmatpush1.bf16.msra.mxu0 0
    %319 = vmatprep.subr.bf16.mxu0 0
    %320 = vmatpush1.bf16.msra.mxu0 0
    %321 = vmatprep.mubr.bf16.mxu0 0
    %322 = vmatmul.mubr.bf16.gmra.mrb[0].mxu0 %v287
    %v323 = vpop.f32.mrb[0].mxu0
    %v324 = vadd.f32 %v168, %v323
    %v325 = vpop.f32.mrb[0].mxu0
    %v326 = vadd.f32 %v172, %v325
    %v327 = vpop.f32.mrb[0].mxu0
    %v328 = vpop.f32.mrb[0].mxu0
    %329 = vdwg.mxu0
    %330 = vmatprep.subr.bf16.mxu0 %v256
    %331 = vmatpush1.bf16.msra.mxu0 %v255
    %332 = vmatprep.subr.bf16.mxu0 %v264
    %333 = vmatpush1.bf16.msra.mxu0 %v263
    %334 = vmatprep.subr.bf16.mxu0 0
    %335 = vmatpush1.bf16.msra.mxu0 0
    %336 = vmatprep.subr.bf16.mxu0 0
    %337 = vmatpush1.bf16.msra.mxu0 0
    %338 = vmatprep.subr.bf16.mxu0 0
    %339 = vmatpush1.bf16.msra.mxu0 0
    %340 = vmatprep.subr.bf16.mxu0 0
    %341 = vmatpush1.bf16.msra.mxu0 0
    %342 = vmatprep.subr.bf16.mxu0 0
    %343 = vmatpush1.bf16.msra.mxu0 0
    %344 = vmatprep.subr.bf16.mxu0 0
    %345 = vmatpush1.bf16.msra.mxu0 0
    %346 = vmatprep.subr.bf16.mxu0 0
    %347 = vmatpush1.bf16.msra.mxu0 0
    %348 = vmatprep.subr.bf16.mxu0 0
    %349 = vmatpush1.bf16.msra.mxu0 0
    %350 = vmatprep.subr.bf16.mxu0 0
    %351 = vmatpush1.bf16.msra.mxu0 0
    %352 = vmatprep.subr.bf16.mxu0 0
    %353 = vmatpush1.bf16.msra.mxu0 0
    %354 = vmatprep.subr.bf16.mxu0 0
    %355 = vmatpush1.bf16.msra.mxu0 0
    %356 = vmatprep.subr.bf16.mxu0 0
    %357 = vmatpush1.bf16.msra.mxu0 0
    %358 = vmatprep.subr.bf16.mxu0 0
    %359 = vmatpush1.bf16.msra.mxu0 0
    %360 = vmatprep.subr.bf16.mxu0 0
    %361 = vmatpush1.bf16.msra.mxu0 0
    %362 = vmatprep.mubr.bf16.mxu0 0
    %363 = vmatmul.mubr.bf16.gmra.mrb[0].mxu0 %v287
    %v364 = vpop.f32.mrb[0].mxu0
    %v365 = vadd.f32 %v176, %v364
    %v366 = vpop.f32.mrb[0].mxu0
    %v367 = vadd.f32 %v180, %v366
    %v368 = vpop.f32.mrb[0].mxu0
    %v369 = vpop.f32.mrb[0].mxu0
    %370 = vdwg.mxu0
    %371 = vmatprep.subr.bf16.mxu0 %v258
    %372 = vmatpush1.bf16.msra.mxu0 %v257
    %373 = vmatprep.subr.bf16.mxu0 %v266
    %374 = vmatpush1.bf16.msra.mxu0 %v265
    %375 = vmatprep.subr.bf16.mxu0 0
    %376 = vmatpush1.bf16.msra.mxu0 0
    %377 = vmatprep.subr.bf16.mxu0 0
    %378 = vmatpush1.bf16.msra.mxu0 0
    %379 = vmatprep.subr.bf16.mxu0 0
    %380 = vmatpush1.bf16.msra.mxu0 0
    %381 = vmatprep.subr.bf16.mxu0 0
    %382 = vmatpush1.bf16.msra.mxu0 0
    %383 = vmatprep.subr.bf16.mxu0 0
    %384 = vmatpush1.bf16.msra.mxu0 0
    %385 = vmatprep.subr.bf16.mxu0 0
    %386 = vmatpush1.bf16.msra.mxu0 0
    %387 = vmatprep.subr.bf16.mxu0 0
    %388 = vmatpush1.bf16.msra.mxu0 0
    %389 = vmatprep.subr.bf16.mxu0 0
    %390 = vmatpush1.bf16.msra.mxu0 0
    %391 = vmatprep.subr.bf16.mxu0 0
    %392 = vmatpush1.bf16.msra.mxu0 0
    %393 = vmatprep.subr.bf16.mxu0 0
    %394 = vmatpush1.bf16.msra.mxu0 0
    %395 = vmatprep.subr.bf16.mxu0 0
    %396 = vmatpush1.bf16.msra.mxu0 0
    %397 = vmatprep.subr.bf16.mxu0 0
    %398 = vmatpush1.bf16.msra.mxu0 0
    %399 = vmatprep.subr.bf16.mxu0 0
    %400 = vmatpush1.bf16.msra.mxu0 0
    %401 = vmatprep.subr.bf16.mxu0 0
    %402 = vmatpush1.bf16.msra.mxu0 0
    %403 = vmatprep.mubr.bf16.mxu0 0
    %404 = vmatmul.mubr.bf16.gmra.mrb[0].mxu0 %v287
    %v405 = vpop.f32.mrb[0].mxu0
    %v406 = vadd.f32 %v184, %v405
    %v407 = vpop.f32.mrb[0].mxu0
    %v408 = vadd.f32 %v188, %v407
    %v409 = vpop.f32.mrb[0].mxu0
    %v410 = vpop.f32.mrb[0].mxu0
    %411 = vdwg.mxu0
    %412 = vmatprep.subr.bf16.mxu0 %v260
    %413 = vmatpush1.bf16.msra.mxu0 %v259
    %414 = vmatprep.subr.bf16.mxu0 %v268
    %415 = vmatpush1.bf16.msra.mxu0 %v267
    %416 = vmatprep.subr.bf16.mxu0 0
    %417 = vmatpush1.bf16.msra.mxu0 0
    %418 = vmatprep.subr.bf16.mxu0 0
    %419 = vmatpush1.bf16.msra.mxu0 0
    %420 = vmatprep.subr.bf16.mxu0 0
    %421 = vmatpush1.bf16.msra.mxu0 0
    %422 = vmatprep.subr.bf16.mxu0 0
    %423 = vmatpush1.bf16.msra.mxu0 0
    %424 = vmatprep.subr.bf16.mxu0 0
    %425 = vmatpush1.bf16.msra.mxu0 0
    %426 = vmatprep.subr.bf16.mxu0 0
    %427 = vmatpush1.bf16.msra.mxu0 0
    %428 = vmatprep.subr.bf16.mxu0 0
    %429 = vmatpush1.bf16.msra.mxu0 0
    %430 = vmatprep.subr.bf16.mxu0 0
    %431 = vmatpush1.bf16.msra.mxu0 0
    %432 = vmatprep.subr.bf16.mxu0 0
    %433 = vmatpush1.bf16.msra.mxu0 0
    %434 = vmatprep.subr.bf16.mxu0 0
    %435 = vmatpush1.bf16.msra.mxu0 0
    %436 = vmatprep.subr.bf16.mxu0 0
    %437 = vmatpush1.bf16.msra.mxu0 0
    %438 = vmatprep.subr.bf16.mxu0 0
    %439 = vmatpush1.bf16.msra.mxu0 0
    %440 = vmatprep.subr.bf16.mxu0 0
    %441 = vmatpush1.bf16.msra.mxu0 0
    %442 = vmatprep.subr.bf16.mxu0 0
    %443 = vmatpush1.bf16.msra.mxu0 0
    %444 = vmatprep.mubr.bf16.mxu0 0
    %445 = vmatmul.mubr.bf16.gmra.mrb[0].mxu0 %v287
    %v446 = vpop.f32.mrb[0].mxu0
    %v447 = vadd.f32 %v192, %v446
    %v448 = vpop.f32.mrb[0].mxu0
    %v449 = vadd.f32 %v196, %v448
    %v450 = vpop.f32.mrb[0].mxu0
    %v451 = vpop.f32.mrb[0].mxu0
    %452 = vdwg.mxu0
    %v453 = vmul.f32 %v324, 0.5
    %v454 = vmul.f32 %v326, 0.5
    %v455 = vmul.f32 %v365, 0.5
    %v456 = vmul.f32 %v367, 0.5
    %v457 = vmul.f32 %v406, 0.5
    %v458 = vmul.f32 %v408, 0.5
    %v459 = vmul.f32 %v447, 0.5
    %v460 = vmul.f32 %v449, 0.5
    %v461 = vmul.f32 %v324, 0.70710677
    %v462 = vmul.f32 %v326, 0.70710677
    %v463 = vmul.f32 %v365, 0.70710677
    %v464 = vmul.f32 %v367, 0.70710677
    %v465 = vmul.f32 %v406, 0.70710677
    %v466 = vmul.f32 %v408, 0.70710677
    %v467 = vmul.f32 %v447, 0.70710677
    %v468 = vmul.f32 %v449, 0.70710677
    %v469 = verf.f32.pop %v461
    %v470 = verf.f32.pop %v462
    %v471 = verf.f32.pop %v463
    %v472 = verf.f32.pop %v464
    %v473 = verf.f32.pop %v465
    %v474 = verf.f32.pop %v466
    %v475 = verf.f32.pop %v467
    %v476 = verf.f32.pop %v468
    %v477 = vadd.f32 %v469, 1.0
    %v478 = vadd.f32 %v470, 1.0
    %v479 = vadd.f32 %v471, 1.0
    %v480 = vadd.f32 %v472, 1.0
    %v481 = vadd.f32 %v473, 1.0
    %v482 = vadd.f32 %v474, 1.0
    %v483 = vadd.f32 %v475, 1.0
    %v484 = vadd.f32 %v476, 1.0
    %v485 = vmul.f32 %v453, %v477
    %v486 = vmul.f32 %v454, %v478
    %v487 = vmul.f32 %v455, %v479
    %v488 = vmul.f32 %v456, %v480
    %v489 = vmul.f32 %v457, %v481
    %v490 = vmul.f32 %v458, %v482
    %v491 = vmul.f32 %v459, %v483
    %v492 = vmul.f32 %v460, %v484
    %v493 = vpack.c.bf16 %v485, %v485
    %v494 = vpack.c.bf16 %v486, %v486
    %v495 = vpack.c.bf16 %v487, %v487
    %v496 = vpack.c.bf16 %v488, %v488
    %v497 = vpack.c.bf16 %v489, %v489
    %v498 = vpack.c.bf16 %v490, %v490
    %v499 = vpack.c.bf16 %v491, %v491
    %v500 = vpack.c.bf16 %v492, %v492
    %v501 = vld [vmem:[#allocation8] sm:$0xff]
    %v502 = vld [vmem:[#allocation8 + $0x8] sm:$0xff]
    %v503 = vld [vmem:[#allocation8 + $0x10] sm:$0xff]
    %v504 = vld [vmem:[#allocation8 + $0x18] sm:$0xff]
    %v505 = vld [vmem:[#allocation8 + $0x20] sm:$0xff]
    %v506 = vld [vmem:[#allocation8 + $0x28] sm:$0xff]
    %v507 = vld [vmem:[#allocation8 + $0x30] sm:$0xff]
    %v508 = vld [vmem:[#allocation8 + $0x38] sm:$0xff]
    %v509 = vld [vmem:[#allocation8 + $0x40] sm:$0xff]
    %v510 = vld [vmem:[#allocation8 + $0x48] sm:$0xff]
    %v511 = vld [vmem:[#allocation8 + $0x50] sm:$0xff]
    %v512 = vld [vmem:[#allocation8 + $0x58] sm:$0xff]
    %v513 = vld [vmem:[#allocation8 + $0x60] sm:$0xff]
    %v514 = vld [vmem:[#allocation8 + $0x68] sm:$0xff]
    %v515 = vld [vmem:[#allocation8 + $0x70] sm:$0xff]
    %v516 = vld [vmem:[#allocation8 + $0x78] sm:$0xff]
    %v517 = vld [vmem:[#allocation8 + $0x80] sm:$0xff]
    %v518 = vld [vmem:[#allocation8 + $0x88] sm:$0xff]
    %v519 = vld [vmem:[#allocation8 + $0x90] sm:$0xff]
    %v520 = vld [vmem:[#allocation8 + $0x98] sm:$0xff]
    %v521 = vld [vmem:[#allocation8 + $0xa0] sm:$0xff]
    %v522 = vld [vmem:[#allocation8 + $0xa8] sm:$0xff]
    %v523 = vld [vmem:[#allocation8 + $0xb0] sm:$0xff]
    %v524 = vld [vmem:[#allocation8 + $0xb8] sm:$0xff]
    %v525 = vld [vmem:[#allocation8 + $0xc0] sm:$0xff]
    %v526 = vld [vmem:[#allocation8 + $0xc8] sm:$0xff]
    %v527 = vld [vmem:[#allocation8 + $0xd0] sm:$0xff]
    %v528 = vld [vmem:[#allocation8 + $0xd8] sm:$0xff]
    %v529 = vld [vmem:[#allocation8 + $0xe0] sm:$0xff]
    %v530 = vld [vmem:[#allocation8 + $0xe8] sm:$0xff]
    %v531 = vld [vmem:[#allocation8 + $0xf0] sm:$0xff]
    %v532 = vld [vmem:[#allocation8 + $0xf8] sm:$0xff]
    %v533 = vld [vmem:[#allocation8 + $0x100] sm:$0xff]
    %v534 = vld [vmem:[#allocation8 + $0x108] sm:$0xff]
    %v535 = vld [vmem:[#allocation8 + $0x110] sm:$0xff]
    %v536 = vld [vmem:[#allocation8 + $0x118] sm:$0xff]
    %v537 = vld [vmem:[#allocation8 + $0x120] sm:$0xff]
    %v538 = vld [vmem:[#allocation8 + $0x128] sm:$0xff]
    %v539 = vld [vmem:[#allocation8 + $0x130] sm:$0xff]
    %v540 = vld [vmem:[#allocation8 + $0x138] sm:$0xff]
    %v541 = vld [vmem:[#allocation8 + $0x140] sm:$0xff]
    %v542 = vld [vmem:[#allocation8 + $0x148] sm:$0xff]
    %v543 = vld [vmem:[#allocation8 + $0x150] sm:$0xff]
    %v544 = vld [vmem:[#allocation8 + $0x158] sm:$0xff]
    %v545 = vld [vmem:[#allocation8 + $0x160] sm:$0xff]
    %v546 = vld [vmem:[#allocation8 + $0x168] sm:$0xff]
    %v547 = vld [vmem:[#allocation8 + $0x170] sm:$0xff]
    %v548 = vld [vmem:[#allocation8 + $0x178] sm:$0xff]
    %v549 = vld [vmem:[#allocation8 + $0x180] sm:$0xff]
    %v550 = vld [vmem:[#allocation8 + $0x188] sm:$0xff]
    %v551 = vld [vmem:[#allocation8 + $0x190] sm:$0xff]
    %v552 = vld [vmem:[#allocation8 + $0x198] sm:$0xff]
    %v553 = vld [vmem:[#allocation8 + $0x1a0] sm:$0xff]
    %v554 = vld [vmem:[#allocation8 + $0x1a8] sm:$0xff]
    %v555 = vld [vmem:[#allocation8 + $0x1b0] sm:$0xff]
    %v556 = vld [vmem:[#allocation8 + $0x1b8] sm:$0xff]
    %v557 = vld [vmem:[#allocation8 + $0x1c0] sm:$0xff]
    %v558 = vld [vmem:[#allocation8 + $0x1c8] sm:$0xff]
    %v559 = vld [vmem:[#allocation8 + $0x1d0] sm:$0xff]
    %v560 = vld [vmem:[#allocation8 + $0x1d8] sm:$0xff]
    %v561 = vld [vmem:[#allocation8 + $0x1e0] sm:$0xff]
    %v562 = vld [vmem:[#allocation8 + $0x1e8] sm:$0xff]
    %v563 = vld [vmem:[#allocation8 + $0x1f0] sm:$0xff]
    %v564 = vld [vmem:[#allocation8 + $0x1f8] sm:$0xff]
    %v565 = vld [vmem:[#allocation8 + $0x200] sm:$0xff]
    %v566 = vld [vmem:[#allocation8 + $0x208] sm:$0xff]
    %v567 = vld [vmem:[#allocation8 + $0x210] sm:$0xff]
    %v568 = vld [vmem:[#allocation8 + $0x218] sm:$0xff]
    %v569 = vld [vmem:[#allocation8 + $0x220] sm:$0xff]
    %v570 = vld [vmem:[#allocation8 + $0x228] sm:$0xff]
    %v571 = vld [vmem:[#allocation8 + $0x230] sm:$0xff]
    %v572 = vld [vmem:[#allocation8 + $0x238] sm:$0xff]
    %v573 = vld [vmem:[#allocation8 + $0x240] sm:$0xff]
    %v574 = vld [vmem:[#allocation8 + $0x248] sm:$0xff]
    %v575 = vld [vmem:[#allocation8 + $0x250] sm:$0xff]
    %v576 = vld [vmem:[#allocation8 + $0x258] sm:$0xff]
    %v577 = vld [vmem:[#allocation8 + $0x260] sm:$0xff]
    %v578 = vld [vmem:[#allocation8 + $0x268] sm:$0xff]
    %v579 = vld [vmem:[#allocation8 + $0x270] sm:$0xff]
    %v580 = vld [vmem:[#allocation8 + $0x278] sm:$0xff]
    %v581 = vld [vmem:[#allocation8 + $0x280] sm:$0xff]
    %v582 = vld [vmem:[#allocation8 + $0x288] sm:$0xff]
    %v583 = vld [vmem:[#allocation8 + $0x290] sm:$0xff]
    %v584 = vld [vmem:[#allocation8 + $0x298] sm:$0xff]
    %v585 = vld [vmem:[#allocation8 + $0x2a0] sm:$0xff]
    %v586 = vld [vmem:[#allocation8 + $0x2a8] sm:$0xff]
    %v587 = vld [vmem:[#allocation8 + $0x2b0] sm:$0xff]
    %v588 = vld [vmem:[#allocation8 + $0x2b8] sm:$0xff]
    %v589 = vld [vmem:[#allocation8 + $0x2c0] sm:$0xff]
    %v590 = vld [vmem:[#allocation8 + $0x2c8] sm:$0xff]
    %v591 = vld [vmem:[#allocation8 + $0x2d0] sm:$0xff]
    %v592 = vld [vmem:[#allocation8 + $0x2d8] sm:$0xff]
    %v593 = vld [vmem:[#allocation8 + $0x2e0] sm:$0xff]
    %v594 = vld [vmem:[#allocation8 + $0x2e8] sm:$0xff]
    %v595 = vld [vmem:[#allocation8 + $0x2f0] sm:$0xff]
    %v596 = vld [vmem:[#allocation8 + $0x2f8] sm:$0xff]
    %v597 = vld [vmem:[#allocation8 + $0x300] sm:$0xff]
    %v598 = vld [vmem:[#allocation8 + $0x308] sm:$0xff]
    %v599 = vld [vmem:[#allocation8 + $0x310] sm:$0xff]
    %v600 = vld [vmem:[#allocation8 + $0x318] sm:$0xff]
    %v601 = vld [vmem:[#allocation8 + $0x320] sm:$0xff]
    %v602 = vld [vmem:[#allocation8 + $0x328] sm:$0xff]
    %v603 = vld [vmem:[#allocation8 + $0x330] sm:$0xff]
    %v604 = vld [vmem:[#allocation8 + $0x338] sm:$0xff]
    %v605 = vld [vmem:[#allocation8 + $0x340] sm:$0xff]
    %v606 = vld [vmem:[#allocation8 + $0x348] sm:$0xff]
    %v607 = vld [vmem:[#allocation8 + $0x350] sm:$0xff]
    %v608 = vld [vmem:[#allocation8 + $0x358] sm:$0xff]
    %v609 = vld [vmem:[#allocation8 + $0x360] sm:$0xff]
    %v610 = vld [vmem:[#allocation8 + $0x368] sm:$0xff]
    %v611 = vld [vmem:[#allocation8 + $0x370] sm:$0xff]
    %v612 = vld [vmem:[#allocation8 + $0x378] sm:$0xff]
    %v613 = vld [vmem:[#allocation8 + $0x380] sm:$0xff]
    %v614 = vld [vmem:[#allocation8 + $0x388] sm:$0xff]
    %v615 = vld [vmem:[#allocation8 + $0x390] sm:$0xff]
    %v616 = vld [vmem:[#allocation8 + $0x398] sm:$0xff]
    %v617 = vld [vmem:[#allocation8 + $0x3a0] sm:$0xff]
    %v618 = vld [vmem:[#allocation8 + $0x3a8] sm:$0xff]
    %v619 = vld [vmem:[#allocation8 + $0x3b0] sm:$0xff]
    %v620 = vld [vmem:[#allocation8 + $0x3b8] sm:$0xff]
    %v621 = vld [vmem:[#allocation8 + $0x3c0] sm:$0xff]
    %v622 = vld [vmem:[#allocation8 + $0x3c8] sm:$0xff]
    %v623 = vld [vmem:[#allocation8 + $0x3d0] sm:$0xff]
    %v624 = vld [vmem:[#allocation8 + $0x3d8] sm:$0xff]
    %v625 = vld [vmem:[#allocation8 + $0x3e0] sm:$0xff]
    %v626 = vld [vmem:[#allocation8 + $0x3e8] sm:$0xff]
    %v627 = vld [vmem:[#allocation8 + $0x3f0] sm:$0xff]
    %v628 = vld [vmem:[#allocation8 + $0x3f8] sm:$0xff]
    %v629 = vld [vmem:[#allocation8 + $0x400] sm:$0xff]
    %v630 = vld [vmem:[#allocation8 + $0x408] sm:$0xff]
    %v631 = vld [vmem:[#allocation8 + $0x410] sm:$0xff]
    %v632 = vld [vmem:[#allocation8 + $0x418] sm:$0xff]
    %v633 = vld [vmem:[#allocation8 + $0x420] sm:$0xff]
    %v634 = vld [vmem:[#allocation8 + $0x428] sm:$0xff]
    %v635 = vld [vmem:[#allocation8 + $0x430] sm:$0xff]
    %v636 = vld [vmem:[#allocation8 + $0x438] sm:$0xff]
    %v637 = vld [vmem:[#allocation8 + $0x440] sm:$0xff]
    %v638 = vld [vmem:[#allocation8 + $0x448] sm:$0xff]
    %v639 = vld [vmem:[#allocation8 + $0x450] sm:$0xff]
    %v640 = vld [vmem:[#allocation8 + $0x458] sm:$0xff]
    %v641 = vld [vmem:[#allocation8 + $0x460] sm:$0xff]
    %v642 = vld [vmem:[#allocation8 + $0x468] sm:$0xff]
    %v643 = vld [vmem:[#allocation8 + $0x470] sm:$0xff]
    %v644 = vld [vmem:[#allocation8 + $0x478] sm:$0xff]
    %v645 = vld [vmem:[#allocation8 + $0x480] sm:$0xff]
    %v646 = vld [vmem:[#allocation8 + $0x488] sm:$0xff]
    %v647 = vld [vmem:[#allocation8 + $0x490] sm:$0xff]
    %v648 = vld [vmem:[#allocation8 + $0x498] sm:$0xff]
    %v649 = vld [vmem:[#allocation8 + $0x4a0] sm:$0xff]
    %v650 = vld [vmem:[#allocation8 + $0x4a8] sm:$0xff]
    %v651 = vld [vmem:[#allocation8 + $0x4b0] sm:$0xff]
    %v652 = vld [vmem:[#allocation8 + $0x4b8] sm:$0xff]
    %v653 = vld [vmem:[#allocation8 + $0x4c0] sm:$0xff]
    %v654 = vld [vmem:[#allocation8 + $0x4c8] sm:$0xff]
    %v655 = vld [vmem:[#allocation8 + $0x4d0] sm:$0xff]
    %v656 = vld [vmem:[#allocation8 + $0x4d8] sm:$0xff]
    %v657 = vld [vmem:[#allocation8 + $0x4e0] sm:$0xff]
    %v658 = vld [vmem:[#allocation8 + $0x4e8] sm:$0xff]
    %v659 = vld [vmem:[#allocation8 + $0x4f0] sm:$0xff]
    %v660 = vld [vmem:[#allocation8 + $0x4f8] sm:$0xff]
    %v661 = vld [vmem:[#allocation8 + $0x500] sm:$0xff]
    %v662 = vld [vmem:[#allocation8 + $0x508] sm:$0xff]
    %v663 = vld [vmem:[#allocation8 + $0x510] sm:$0xff]
    %v664 = vld [vmem:[#allocation8 + $0x518] sm:$0xff]
    %v665 = vld [vmem:[#allocation8 + $0x520] sm:$0xff]
    %v666 = vld [vmem:[#allocation8 + $0x528] sm:$0xff]
    %v667 = vld [vmem:[#allocation8 + $0x530] sm:$0xff]
    %v668 = vld [vmem:[#allocation8 + $0x538] sm:$0xff]
    %v669 = vld [vmem:[#allocation8 + $0x540] sm:$0xff]
    %v670 = vld [vmem:[#allocation8 + $0x548] sm:$0xff]
    %v671 = vld [vmem:[#allocation8 + $0x550] sm:$0xff]
    %v672 = vld [vmem:[#allocation8 + $0x558] sm:$0xff]
    %v673 = vld [vmem:[#allocation8 + $0x560] sm:$0xff]
    %v674 = vld [vmem:[#allocation8 + $0x568] sm:$0xff]
    %v675 = vld [vmem:[#allocation8 + $0x570] sm:$0xff]
    %v676 = vld [vmem:[#allocation8 + $0x578] sm:$0xff]
    %v677 = vld [vmem:[#allocation8 + $0x580] sm:$0xff]
    %v678 = vld [vmem:[#allocation8 + $0x588] sm:$0xff]
    %v679 = vld [vmem:[#allocation8 + $0x590] sm:$0xff]
    %v680 = vld [vmem:[#allocation8 + $0x598] sm:$0xff]
    %v681 = vld [vmem:[#allocation8 + $0x5a0] sm:$0xff]
    %v682 = vld [vmem:[#allocation8 + $0x5a8] sm:$0xff]
    %v683 = vld [vmem:[#allocation8 + $0x5b0] sm:$0xff]
    %v684 = vld [vmem:[#allocation8 + $0x5b8] sm:$0xff]
    %v685 = vld [vmem:[#allocation8 + $0x5c0] sm:$0xff]
    %v686 = vld [vmem:[#allocation8 + $0x5c8] sm:$0xff]
    %v687 = vld [vmem:[#allocation8 + $0x5d0] sm:$0xff]
    %v688 = vld [vmem:[#allocation8 + $0x5d8] sm:$0xff]
    %v689 = vld [vmem:[#allocation8 + $0x5e0] sm:$0xff]
    %v690 = vld [vmem:[#allocation8 + $0x5e8] sm:$0xff]
    %v691 = vld [vmem:[#allocation8 + $0x5f0] sm:$0xff]
    %v692 = vld [vmem:[#allocation8 + $0x5f8] sm:$0xff]
    %v693 = vld [vmem:[#allocation8 + $0x600] sm:$0xff]
    %v694 = vld [vmem:[#allocation8 + $0x608] sm:$0xff]
    %v695 = vld [vmem:[#allocation8 + $0x610] sm:$0xff]
    %v696 = vld [vmem:[#allocation8 + $0x618] sm:$0xff]
    %v697 = vld [vmem:[#allocation8 + $0x620] sm:$0xff]
    %v698 = vld [vmem:[#allocation8 + $0x628] sm:$0xff]
    %v699 = vld [vmem:[#allocation8 + $0x630] sm:$0xff]
    %v700 = vld [vmem:[#allocation8 + $0x638] sm:$0xff]
    %v701 = vld [vmem:[#allocation8 + $0x640] sm:$0xff]
    %v702 = vld [vmem:[#allocation8 + $0x648] sm:$0xff]
    %v703 = vld [vmem:[#allocation8 + $0x650] sm:$0xff]
    %v704 = vld [vmem:[#allocation8 + $0x658] sm:$0xff]
    %v705 = vld [vmem:[#allocation8 + $0x660] sm:$0xff]
    %v706 = vld [vmem:[#allocation8 + $0x668] sm:$0xff]
    %v707 = vld [vmem:[#allocation8 + $0x670] sm:$0xff]
    %v708 = vld [vmem:[#allocation8 + $0x678] sm:$0xff]
    %v709 = vld [vmem:[#allocation8 + $0x680] sm:$0xff]
    %v710 = vld [vmem:[#allocation8 + $0x688] sm:$0xff]
    %v711 = vld [vmem:[#allocation8 + $0x690] sm:$0xff]
    %v712 = vld [vmem:[#allocation8 + $0x698] sm:$0xff]
    %v713 = vld [vmem:[#allocation8 + $0x6a0] sm:$0xff]
    %v714 = vld [vmem:[#allocation8 + $0x6a8] sm:$0xff]
    %v715 = vld [vmem:[#allocation8 + $0x6b0] sm:$0xff]
    %v716 = vld [vmem:[#allocation8 + $0x6b8] sm:$0xff]
    %v717 = vld [vmem:[#allocation8 + $0x6c0] sm:$0xff]
    %v718 = vld [vmem:[#allocation8 + $0x6c8] sm:$0xff]
    %v719 = vld [vmem:[#allocation8 + $0x6d0] sm:$0xff]
    %v720 = vld [vmem:[#allocation8 + $0x6d8] sm:$0xff]
    %v721 = vld [vmem:[#allocation8 + $0x6e0] sm:$0xff]
    %v722 = vld [vmem:[#allocation8 + $0x6e8] sm:$0xff]
    %v723 = vld [vmem:[#allocation8 + $0x6f0] sm:$0xff]
    %v724 = vld [vmem:[#allocation8 + $0x6f8] sm:$0xff]
    %v725 = vld [vmem:[#allocation8 + $0x700] sm:$0xff]
    %v726 = vld [vmem:[#allocation8 + $0x708] sm:$0xff]
    %v727 = vld [vmem:[#allocation8 + $0x710] sm:$0xff]
    %v728 = vld [vmem:[#allocation8 + $0x718] sm:$0xff]
    %v729 = vld [vmem:[#allocation8 + $0x720] sm:$0xff]
    %v730 = vld [vmem:[#allocation8 + $0x728] sm:$0xff]
    %v731 = vld [vmem:[#allocation8 + $0x730] sm:$0xff]
    %v732 = vld [vmem:[#allocation8 + $0x738] sm:$0xff]
    %v733 = vld [vmem:[#allocation8 + $0x740] sm:$0xff]
    %v734 = vld [vmem:[#allocation8 + $0x748] sm:$0xff]
    %v735 = vld [vmem:[#allocation8 + $0x750] sm:$0xff]
    %v736 = vld [vmem:[#allocation8 + $0x758] sm:$0xff]
    %v737 = vld [vmem:[#allocation8 + $0x760] sm:$0xff]
    %v738 = vld [vmem:[#allocation8 + $0x768] sm:$0xff]
    %v739 = vld [vmem:[#allocation8 + $0x770] sm:$0xff]
    %v740 = vld [vmem:[#allocation8 + $0x778] sm:$0xff]
    %v741 = vld [vmem:[#allocation8 + $0x780] sm:$0xff]
    %v742 = vld [vmem:[#allocation8 + $0x788] sm:$0xff]
    %v743 = vld [vmem:[#allocation8 + $0x790] sm:$0xff]
    %v744 = vld [vmem:[#allocation8 + $0x798] sm:$0xff]
    %v745 = vld [vmem:[#allocation8 + $0x7a0] sm:$0xff]
    %v746 = vld [vmem:[#allocation8 + $0x7a8] sm:$0xff]
    %v747 = vld [vmem:[#allocation8 + $0x7b0] sm:$0xff]
    %v748 = vld [vmem:[#allocation8 + $0x7b8] sm:$0xff]
    %v749 = vld [vmem:[#allocation8 + $0x7c0] sm:$0xff]
    %v750 = vld [vmem:[#allocation8 + $0x7c8] sm:$0xff]
    %v751 = vld [vmem:[#allocation8 + $0x7d0] sm:$0xff]
    %v752 = vld [vmem:[#allocation8 + $0x7d8] sm:$0xff]
    %v753 = vld [vmem:[#allocation8 + $0x7e0] sm:$0xff]
    %v754 = vld [vmem:[#allocation8 + $0x7e8] sm:$0xff]
    %v755 = vld [vmem:[#allocation8 + $0x7f0] sm:$0xff]
    %v756 = vld [vmem:[#allocation8 + $0x7f8] sm:$0xff]
    %v757 = vld [vmem:[#allocation8 + $0x800] sm:$0xff]
    %v758 = vld [vmem:[#allocation8 + $0x808] sm:$0xff]
    %v759 = vld [vmem:[#allocation8 + $0x810] sm:$0xff]
    %v760 = vld [vmem:[#allocation8 + $0x818] sm:$0xff]
    %v761 = vld [vmem:[#allocation8 + $0x820] sm:$0xff]
    %v762 = vld [vmem:[#allocation8 + $0x828] sm:$0xff]
    %v763 = vld [vmem:[#allocation8 + $0x830] sm:$0xff]
    %v764 = vld [vmem:[#allocation8 + $0x838] sm:$0xff]
    %v765 = vld [vmem:[#allocation8 + $0x840] sm:$0xff]
    %v766 = vld [vmem:[#allocation8 + $0x848] sm:$0xff]
    %v767 = vld [vmem:[#allocation8 + $0x850] sm:$0xff]
    %v768 = vld [vmem:[#allocation8 + $0x858] sm:$0xff]
    %v769 = vld [vmem:[#allocation8 + $0x860] sm:$0xff]
    %v770 = vld [vmem:[#allocation8 + $0x868] sm:$0xff]
    %v771 = vld [vmem:[#allocation8 + $0x870] sm:$0xff]
    %v772 = vld [vmem:[#allocation8 + $0x878] sm:$0xff]
    %v773 = vld [vmem:[#allocation8 + $0x880] sm:$0xff]
    %v774 = vld [vmem:[#allocation8 + $0x888] sm:$0xff]
    %v775 = vld [vmem:[#allocation8 + $0x890] sm:$0xff]
    %v776 = vld [vmem:[#allocation8 + $0x898] sm:$0xff]
    %v777 = vld [vmem:[#allocation8 + $0x8a0] sm:$0xff]
    %v778 = vld [vmem:[#allocation8 + $0x8a8] sm:$0xff]
    %v779 = vld [vmem:[#allocation8 + $0x8b0] sm:$0xff]
    %v780 = vld [vmem:[#allocation8 + $0x8b8] sm:$0xff]
    %v781 = vld [vmem:[#allocation8 + $0x8c0] sm:$0xff]
    %v782 = vld [vmem:[#allocation8 + $0x8c8] sm:$0xff]
    %v783 = vld [vmem:[#allocation8 + $0x8d0] sm:$0xff]
    %v784 = vld [vmem:[#allocation8 + $0x8d8] sm:$0xff]
    %v785 = vld [vmem:[#allocation8 + $0x8e0] sm:$0xff]
    %v786 = vld [vmem:[#allocation8 + $0x8e8] sm:$0xff]
    %v787 = vld [vmem:[#allocation8 + $0x8f0] sm:$0xff]
    %v788 = vld [vmem:[#allocation8 + $0x8f8] sm:$0xff]
    %v789 = vld [vmem:[#allocation8 + $0x900] sm:$0xff]
    %v790 = vld [vmem:[#allocation8 + $0x908] sm:$0xff]
    %v791 = vld [vmem:[#allocation8 + $0x910] sm:$0xff]
    %v792 = vld [vmem:[#allocation8 + $0x918] sm:$0xff]
    %v793 = vld [vmem:[#allocation8 + $0x920] sm:$0xff]
    %v794 = vld [vmem:[#allocation8 + $0x928] sm:$0xff]
    %v795 = vld [vmem:[#allocation8 + $0x930] sm:$0xff]
    %v796 = vld [vmem:[#allocation8 + $0x938] sm:$0xff]
    %v797 = vld [vmem:[#allocation8 + $0x940] sm:$0xff]
    %v798 = vld [vmem:[#allocation8 + $0x948] sm:$0xff]
    %v799 = vld [vmem:[#allocation8 + $0x950] sm:$0xff]
    %v800 = vld [vmem:[#allocation8 + $0x958] sm:$0xff]
    %v801 = vld [vmem:[#allocation8 + $0x960] sm:$0xff]
    %v802 = vld [vmem:[#allocation8 + $0x968] sm:$0xff]
    %v803 = vld [vmem:[#allocation8 + $0x970] sm:$0xff]
    %v804 = vld [vmem:[#allocation8 + $0x978] sm:$0xff]
    %v805 = vld [vmem:[#allocation8 + $0x980] sm:$0xff]
    %v806 = vld [vmem:[#allocation8 + $0x988] sm:$0xff]
    %v807 = vld [vmem:[#allocation8 + $0x990] sm:$0xff]
    %v808 = vld [vmem:[#allocation8 + $0x998] sm:$0xff]
    %v809 = vld [vmem:[#allocation8 + $0x9a0] sm:$0xff]
    %v810 = vld [vmem:[#allocation8 + $0x9a8] sm:$0xff]
    %v811 = vld [vmem:[#allocation8 + $0x9b0] sm:$0xff]
    %v812 = vld [vmem:[#allocation8 + $0x9b8] sm:$0xff]
    %v813 = vld [vmem:[#allocation8 + $0x9c0] sm:$0xff]
    %v814 = vld [vmem:[#allocation8 + $0x9c8] sm:$0xff]
    %v815 = vld [vmem:[#allocation8 + $0x9d0] sm:$0xff]
    %v816 = vld [vmem:[#allocation8 + $0x9d8] sm:$0xff]
    %v817 = vld [vmem:[#allocation8 + $0x9e0] sm:$0xff]
    %v818 = vld [vmem:[#allocation8 + $0x9e8] sm:$0xff]
    %v819 = vld [vmem:[#allocation8 + $0x9f0] sm:$0xff]
    %v820 = vld [vmem:[#allocation8 + $0x9f8] sm:$0xff]
    %v821 = vld [vmem:[#allocation8 + $0xa00] sm:$0xff]
    %v822 = vld [vmem:[#allocation8 + $0xa08] sm:$0xff]
    %v823 = vld [vmem:[#allocation8 + $0xa10] sm:$0xff]
    %v824 = vld [vmem:[#allocation8 + $0xa18] sm:$0xff]
    %v825 = vld [vmem:[#allocation8 + $0xa20] sm:$0xff]
    %v826 = vld [vmem:[#allocation8 + $0xa28] sm:$0xff]
    %v827 = vld [vmem:[#allocation8 + $0xa30] sm:$0xff]
    %v828 = vld [vmem:[#allocation8 + $0xa38] sm:$0xff]
    %v829 = vld [vmem:[#allocation8 + $0xa40] sm:$0xff]
    %v830 = vld [vmem:[#allocation8 + $0xa48] sm:$0xff]
    %v831 = vld [vmem:[#allocation8 + $0xa50] sm:$0xff]
    %v832 = vld [vmem:[#allocation8 + $0xa58] sm:$0xff]
    %v833 = vld [vmem:[#allocation8 + $0xa60] sm:$0xff]
    %v834 = vld [vmem:[#allocation8 + $0xa68] sm:$0xff]
    %v835 = vld [vmem:[#allocation8 + $0xa70] sm:$0xff]
    %v836 = vld [vmem:[#allocation8 + $0xa78] sm:$0xff]
    %v837 = vld [vmem:[#allocation8 + $0xa80] sm:$0xff]
    %v838 = vld [vmem:[#allocation8 + $0xa88] sm:$0xff]
    %v839 = vld [vmem:[#allocation8 + $0xa90] sm:$0xff]
    %v840 = vld [vmem:[#allocation8 + $0xa98] sm:$0xff]
    %v841 = vld [vmem:[#allocation8 + $0xaa0] sm:$0xff]
    %v842 = vld [vmem:[#allocation8 + $0xaa8] sm:$0xff]
    %v843 = vld [vmem:[#allocation8 + $0xab0] sm:$0xff]
    %v844 = vld [vmem:[#allocation8 + $0xab8] sm:$0xff]
    %v845 = vld [vmem:[#allocation8 + $0xac0] sm:$0xff]
    %v846 = vld [vmem:[#allocation8 + $0xac8] sm:$0xff]
    %v847 = vld [vmem:[#allocation8 + $0xad0] sm:$0xff]
    %v848 = vld [vmem:[#allocation8 + $0xad8] sm:$0xff]
    %v849 = vld [vmem:[#allocation8 + $0xae0] sm:$0xff]
    %v850 = vld [vmem:[#allocation8 + $0xae8] sm:$0xff]
    %v851 = vld [vmem:[#allocation8 + $0xaf0] sm:$0xff]
    %v852 = vld [vmem:[#allocation8 + $0xaf8] sm:$0xff]
    %v853 = vld [vmem:[#allocation8 + $0xb00] sm:$0xff]
    %v854 = vld [vmem:[#allocation8 + $0xb08] sm:$0xff]
    %v855 = vld [vmem:[#allocation8 + $0xb10] sm:$0xff]
    %v856 = vld [vmem:[#allocation8 + $0xb18] sm:$0xff]
    %v857 = vld [vmem:[#allocation8 + $0xb20] sm:$0xff]
    %v858 = vld [vmem:[#allocation8 + $0xb28] sm:$0xff]
    %v859 = vld [vmem:[#allocation8 + $0xb30] sm:$0xff]
    %v860 = vld [vmem:[#allocation8 + $0xb38] sm:$0xff]
    %v861 = vld [vmem:[#allocation8 + $0xb40] sm:$0xff]
    %v862 = vld [vmem:[#allocation8 + $0xb48] sm:$0xff]
    %v863 = vld [vmem:[#allocation8 + $0xb50] sm:$0xff]
    %v864 = vld [vmem:[#allocation8 + $0xb58] sm:$0xff]
    %v865 = vld [vmem:[#allocation8 + $0xb60] sm:$0xff]
    %v866 = vld [vmem:[#allocation8 + $0xb68] sm:$0xff]
    %v867 = vld [vmem:[#allocation8 + $0xb70] sm:$0xff]
    %v868 = vld [vmem:[#allocation8 + $0xb78] sm:$0xff]
    %v869 = vld [vmem:[#allocation8 + $0xb80] sm:$0xff]
    %v870 = vld [vmem:[#allocation8 + $0xb88] sm:$0xff]
    %v871 = vld [vmem:[#allocation8 + $0xb90] sm:$0xff]
    %v872 = vld [vmem:[#allocation8 + $0xb98] sm:$0xff]
    %v873 = vld [vmem:[#allocation8 + $0xba0] sm:$0xff]
    %v874 = vld [vmem:[#allocation8 + $0xba8] sm:$0xff]
    %v875 = vld [vmem:[#allocation8 + $0xbb0] sm:$0xff]
    %v876 = vld [vmem:[#allocation8 + $0xbb8] sm:$0xff]
    %v877 = vld [vmem:[#allocation8 + $0xbc0] sm:$0xff]
    %v878 = vld [vmem:[#allocation8 + $0xbc8] sm:$0xff]
    %v879 = vld [vmem:[#allocation8 + $0xbd0] sm:$0xff]
    %v880 = vld [vmem:[#allocation8 + $0xbd8] sm:$0xff]
    %v881 = vld [vmem:[#allocation8 + $0xbe0] sm:$0xff]
    %v882 = vld [vmem:[#allocation8 + $0xbe8] sm:$0xff]
    %v883 = vld [vmem:[#allocation8 + $0xbf0] sm:$0xff]
    %v884 = vld [vmem:[#allocation8 + $0xbf8] sm:$0xff]
    %v885 = vld [vmem:[#allocation8 + $0xc00] sm:$0xff]
    %v886 = vld [vmem:[#allocation8 + $0xc08] sm:$0xff]
    %v887 = vld [vmem:[#allocation8 + $0xc10] sm:$0xff]
    %v888 = vld [vmem:[#allocation8 + $0xc18] sm:$0xff]
    %v889 = vld [vmem:[#allocation8 + $0xc20] sm:$0xff]
    %v890 = vld [vmem:[#allocation8 + $0xc28] sm:$0xff]
    %v891 = vld [vmem:[#allocation8 + $0xc30] sm:$0xff]
    %v892 = vld [vmem:[#allocation8 + $0xc38] sm:$0xff]
    %v893 = vld [vmem:[#allocation8 + $0xc40] sm:$0xff]
    %v894 = vld [vmem:[#allocation8 + $0xc48] sm:$0xff]
    %v895 = vld [vmem:[#allocation8 + $0xc50] sm:$0xff]
    %v896 = vld [vmem:[#allocation8 + $0xc58] sm:$0xff]
    %v897 = vld [vmem:[#allocation8 + $0xc60] sm:$0xff]
    %v898 = vld [vmem:[#allocation8 + $0xc68] sm:$0xff]
    %v899 = vld [vmem:[#allocation8 + $0xc70] sm:$0xff]
    %v900 = vld [vmem:[#allocation8 + $0xc78] sm:$0xff]
    %v901 = vld [vmem:[#allocation8 + $0xc80] sm:$0xff]
    %v902 = vld [vmem:[#allocation8 + $0xc88] sm:$0xff]
    %v903 = vld [vmem:[#allocation8 + $0xc90] sm:$0xff]
    %v904 = vld [vmem:[#allocation8 + $0xc98] sm:$0xff]
    %v905 = vld [vmem:[#allocation8 + $0xca0] sm:$0xff]
    %v906 = vld [vmem:[#allocation8 + $0xca8] sm:$0xff]
    %v907 = vld [vmem:[#allocation8 + $0xcb0] sm:$0xff]
    %v908 = vld [vmem:[#allocation8 + $0xcb8] sm:$0xff]
    %v909 = vld [vmem:[#allocation8 + $0xcc0] sm:$0xff]
    %v910 = vld [vmem:[#allocation8 + $0xcc8] sm:$0xff]
    %v911 = vld [vmem:[#allocation8 + $0xcd0] sm:$0xff]
    %v912 = vld [vmem:[#allocation8 + $0xcd8] sm:$0xff]
    %v913 = vld [vmem:[#allocation8 + $0xce0] sm:$0xff]
    %v914 = vld [vmem:[#allocation8 + $0xce8] sm:$0xff]
    %v915 = vld [vmem:[#allocation8 + $0xcf0] sm:$0xff]
    %v916 = vld [vmem:[#allocation8 + $0xcf8] sm:$0xff]
    %v917 = vld [vmem:[#allocation8 + $0xd00] sm:$0xff]
    %v918 = vld [vmem:[#allocation8 + $0xd08] sm:$0xff]
    %v919 = vld [vmem:[#allocation8 + $0xd10] sm:$0xff]
    %v920 = vld [vmem:[#allocation8 + $0xd18] sm:$0xff]
    %v921 = vld [vmem:[#allocation8 + $0xd20] sm:$0xff]
    %v922 = vld [vmem:[#allocation8 + $0xd28] sm:$0xff]
    %v923 = vld [vmem:[#allocation8 + $0xd30] sm:$0xff]
    %v924 = vld [vmem:[#allocation8 + $0xd38] sm:$0xff]
    %v925 = vld [vmem:[#allocation8 + $0xd40] sm:$0xff]
    %v926 = vld [vmem:[#allocation8 + $0xd48] sm:$0xff]
    %v927 = vld [vmem:[#allocation8 + $0xd50] sm:$0xff]
    %v928 = vld [vmem:[#allocation8 + $0xd58] sm:$0xff]
    %v929 = vld [vmem:[#allocation8 + $0xd60] sm:$0xff]
    %v930 = vld [vmem:[#allocation8 + $0xd68] sm:$0xff]
    %v931 = vld [vmem:[#allocation8 + $0xd70] sm:$0xff]
    %v932 = vld [vmem:[#allocation8 + $0xd78] sm:$0xff]
    %v933 = vld [vmem:[#allocation8 + $0xd80] sm:$0xff]
    %v934 = vld [vmem:[#allocation8 + $0xd88] sm:$0xff]
    %v935 = vld [vmem:[#allocation8 + $0xd90] sm:$0xff]
    %v936 = vld [vmem:[#allocation8 + $0xd98] sm:$0xff]
    %v937 = vld [vmem:[#allocation8 + $0xda0] sm:$0xff]
    %v938 = vld [vmem:[#allocation8 + $0xda8] sm:$0xff]
    %v939 = vld [vmem:[#allocation8 + $0xdb0] sm:$0xff]
    %v940 = vld [vmem:[#allocation8 + $0xdb8] sm:$0xff]
    %v941 = vld [vmem:[#allocation8 + $0xdc0] sm:$0xff]
    %v942 = vld [vmem:[#allocation8 + $0xdc8] sm:$0xff]
    %v943 = vld [vmem:[#allocation8 + $0xdd0] sm:$0xff]
    %v944 = vld [vmem:[#allocation8 + $0xdd8] sm:$0xff]
    %v945 = vld [vmem:[#allocation8 + $0xde0] sm:$0xff]
    %v946 = vld [vmem:[#allocation8 + $0xde8] sm:$0xff]
    %v947 = vld [vmem:[#allocation8 + $0xdf0] sm:$0xff]
    %v948 = vld [vmem:[#allocation8 + $0xdf8] sm:$0xff]
    %v949 = vld [vmem:[#allocation8 + $0xe00] sm:$0xff]
    %v950 = vld [vmem:[#allocation8 + $0xe08] sm:$0xff]
    %v951 = vld [vmem:[#allocation8 + $0xe10] sm:$0xff]
    %v952 = vld [vmem:[#allocation8 + $0xe18] sm:$0xff]
    %v953 = vld [vmem:[#allocation8 + $0xe20] sm:$0xff]
    %v954 = vld [vmem:[#allocation8 + $0xe28] sm:$0xff]
    %v955 = vld [vmem:[#allocation8 + $0xe30] sm:$0xff]
    %v956 = vld [vmem:[#allocation8 + $0xe38] sm:$0xff]
    %v957 = vld [vmem:[#allocation8 + $0xe40] sm:$0xff]
    %v958 = vld [vmem:[#allocation8 + $0xe48] sm:$0xff]
    %v959 = vld [vmem:[#allocation8 + $0xe50] sm:$0xff]
    %v960 = vld [vmem:[#allocation8 + $0xe58] sm:$0xff]
    %v961 = vld [vmem:[#allocation8 + $0xe60] sm:$0xff]
    %v962 = vld [vmem:[#allocation8 + $0xe68] sm:$0xff]
    %v963 = vld [vmem:[#allocation8 + $0xe70] sm:$0xff]
    %v964 = vld [vmem:[#allocation8 + $0xe78] sm:$0xff]
    %v965 = vld [vmem:[#allocation8 + $0xe80] sm:$0xff]
    %v966 = vld [vmem:[#allocation8 + $0xe88] sm:$0xff]
    %v967 = vld [vmem:[#allocation8 + $0xe90] sm:$0xff]
    %v968 = vld [vmem:[#allocation8 + $0xe98] sm:$0xff]
    %v969 = vld [vmem:[#allocation8 + $0xea0] sm:$0xff]
    %v970 = vld [vmem:[#allocation8 + $0xea8] sm:$0xff]
    %v971 = vld [vmem:[#allocation8 + $0xeb0] sm:$0xff]
    %v972 = vld [vmem:[#allocation8 + $0xeb8] sm:$0xff]
    %v973 = vld [vmem:[#allocation8 + $0xec0] sm:$0xff]
    %v974 = vld [vmem:[#allocation8 + $0xec8] sm:$0xff]
    %v975 = vld [vmem:[#allocation8 + $0xed0] sm:$0xff]
    %v976 = vld [vmem:[#allocation8 + $0xed8] sm:$0xff]
    %v977 = vld [vmem:[#allocation8 + $0xee0] sm:$0xff]
    %v978 = vld [vmem:[#allocation8 + $0xee8] sm:$0xff]
    %v979 = vld [vmem:[#allocation8 + $0xef0] sm:$0xff]
    %v980 = vld [vmem:[#allocation8 + $0xef8] sm:$0xff]
    %v981 = vld [vmem:[#allocation8 + $0xf00] sm:$0xff]
    %v982 = vld [vmem:[#allocation8 + $0xf08] sm:$0xff]
    %v983 = vld [vmem:[#allocation8 + $0xf10] sm:$0xff]
    %v984 = vld [vmem:[#allocation8 + $0xf18] sm:$0xff]
    %v985 = vld [vmem:[#allocation8 + $0xf20] sm:$0xff]
    %v986 = vld [vmem:[#allocation8 + $0xf28] sm:$0xff]
    %v987 = vld [vmem:[#allocation8 + $0xf30] sm:$0xff]
    %v988 = vld [vmem:[#allocation8 + $0xf38] sm:$0xff]
    %v989 = vld [vmem:[#allocation8 + $0xf40] sm:$0xff]
    %v990 = vld [vmem:[#allocation8 + $0xf48] sm:$0xff]
    %v991 = vld [vmem:[#allocation8 + $0xf50] sm:$0xff]
    %v992 = vld [vmem:[#allocation8 + $0xf58] sm:$0xff]
    %v993 = vld [vmem:[#allocation8 + $0xf60] sm:$0xff]
    %v994 = vld [vmem:[#allocation8 + $0xf68] sm:$0xff]
    %v995 = vld [vmem:[#allocation8 + $0xf70] sm:$0xff]
    %v996 = vld [vmem:[#allocation8 + $0xf78] sm:$0xff]
    %v997 = vld [vmem:[#allocation8 + $0xf80] sm:$0xff]
    %v998 = vld [vmem:[#allocation8 + $0xf88] sm:$0xff]
    %v999 = vld [vmem:[#allocation8 + $0xf90] sm:$0xff]
    %v1000 = vld [vmem:[#allocation8 + $0xf98] sm:$0xff]
    %v1001 = vld [vmem:[#allocation8 + $0xfa0] sm:$0xff]
    %v1002 = vld [vmem:[#allocation8 + $0xfa8] sm:$0xff]
    %v1003 = vld [vmem:[#allocation8 + $0xfb0] sm:$0xff]
    %v1004 = vld [vmem:[#allocation8 + $0xfb8] sm:$0xff]
    %v1005 = vld [vmem:[#allocation8 + $0xfc0] sm:$0xff]
    %v1006 = vld [vmem:[#allocation8 + $0xfc8] sm:$0xff]
    %v1007 = vld [vmem:[#allocation8 + $0xfd0] sm:$0xff]
    %v1008 = vld [vmem:[#allocation8 + $0xfd8] sm:$0xff]
    %v1009 = vld [vmem:[#allocation8 + $0xfe0] sm:$0xff]
    %v1010 = vld [vmem:[#allocation8 + $0xfe8] sm:$0xff]
    %v1011 = vld [vmem:[#allocation8 + $0xff0] sm:$0xff]
    %v1012 = vld [vmem:[#allocation8 + $0xff8] sm:$0xff]
    %v1013 = vld [vmem:[#allocation10] sm:$0xff]
    %v1015 = vlaneseq
    %v1016 = vshrl.u32 %v1015, 7
    %v1017 = vsub.s32 0, %v1016
    %v1018 = vrot.slane %v1013, %v1017
    %v1019 = vlaneseq
    %v1020 = vshrl.u32 %v1019, 7
    %v1021 = vsub.s32 1, %v1020
    %v1022 = vrot.slane %v1013, %v1021
    %v1023 = vlaneseq
    %v1024 = vshrl.u32 %v1023, 7
    %v1025 = vsub.s32 2, %v1024
    %v1026 = vrot.slane %v1013, %v1025
    %v1027 = vlaneseq
    %v1028 = vshrl.u32 %v1027, 7
    %v1029 = vsub.s32 3, %v1028
    %v1030 = vrot.slane %v1013, %v1029
    %v1031 = vlaneseq
    %v1032 = vshrl.u32 %v1031, 7
    %v1033 = vsub.s32 4, %v1032
    %v1034 = vrot.slane %v1013, %v1033
    %v1035 = vlaneseq
    %v1036 = vshrl.u32 %v1035, 7
    %v1037 = vsub.s32 5, %v1036
    %v1038 = vrot.slane %v1013, %v1037
    %v1039 = vlaneseq
    %v1040 = vshrl.u32 %v1039, 7
    %v1041 = vsub.s32 6, %v1040
    %v1042 = vrot.slane %v1013, %v1041
    %v1043 = vlaneseq
    %v1044 = vshrl.u32 %v1043, 7
    %v1045 = vsub.s32 7, %v1044
    %v1046 = vrot.slane %v1013, %v1045
    %v1567 = vunpack.c.l.b16 %v501
    %v1568 = vunpack.c.h.b16 %v501
    %v1569 = vunpack.c.l.b16 %v502
    %v1570 = vunpack.c.h.b16 %v502
    %v1571 = vunpack.c.l.b16 %v503
    %v1572 = vunpack.c.h.b16 %v503
    %v1573 = vunpack.c.l.b16 %v504
    %v1574 = vunpack.c.h.b16 %v504
    %v1575 = vunpack.c.l.b16 %v505
    %v1576 = vunpack.c.h.b16 %v505
    %v1577 = vunpack.c.l.b16 %v506
    %v1578 = vunpack.c.h.b16 %v506
    %v1579 = vunpack.c.l.b16 %v507
    %v1580 = vunpack.c.h.b16 %v507
    %v1581 = vunpack.c.l.b16 %v508
    %v1582 = vunpack.c.h.b16 %v508
    %v1583 = vunpack.c.l.b16 %v509
    %v1584 = vunpack.c.h.b16 %v509
    %v1585 = vunpack.c.l.b16 %v510
    %v1586 = vunpack.c.h.b16 %v510
    %v1587 = vunpack.c.l.b16 %v511
    %v1588 = vunpack.c.h.b16 %v511
    %v1589 = vunpack.c.l.b16 %v512
    %v1590 = vunpack.c.h.b16 %v512
    %v1591 = vunpack.c.l.b16 %v513
    %v1592 = vunpack.c.h.b16 %v513
    %v1593 = vunpack.c.l.b16 %v514
    %v1594 = vunpack.c.h.b16 %v514
    %v1595 = vunpack.c.l.b16 %v515
    %v1596 = vunpack.c.h.b16 %v515
    %v1597 = vunpack.c.l.b16 %v516
    %v1598 = vunpack.c.h.b16 %v516
    %v1599 = vunpack.c.l.b16 %v517
    %v1600 = vunpack.c.h.b16 %v517
    %v1601 = vunpack.c.l.b16 %v518
    %v1602 = vunpack.c.h.b16 %v518
    %v1603 = vunpack.c.l.b16 %v519
    %v1604 = vunpack.c.h.b16 %v519
    %v1605 = vunpack.c.l.b16 %v520
    %v1606 = vunpack.c.h.b16 %v520
    %v1607 = vunpack.c.l.b16 %v521
    %v1608 = vunpack.c.h.b16 %v521
    %v1609 = vunpack.c.l.b16 %v522
    %v1610 = vunpack.c.h.b16 %v522
    %v1611 = vunpack.c.l.b16 %v523
    %v1612 = vunpack.c.h.b16 %v523
    %v1613 = vunpack.c.l.b16 %v524
    %v1614 = vunpack.c.h.b16 %v524
    %v1615 = vunpack.c.l.b16 %v525
    %v1616 = vunpack.c.h.b16 %v525
    %v1617 = vunpack.c.l.b16 %v526
    %v1618 = vunpack.c.h.b16 %v526
    %v1619 = vunpack.c.l.b16 %v527
    %v1620 = vunpack.c.h.b16 %v527
    %v1621 = vunpack.c.l.b16 %v528
    %v1622 = vunpack.c.h.b16 %v528
    %v1623 = vunpack.c.l.b16 %v529
    %v1624 = vunpack.c.h.b16 %v529
    %v1625 = vunpack.c.l.b16 %v530
    %v1626 = vunpack.c.h.b16 %v530
    %v1627 = vunpack.c.l.b16 %v531
    %v1628 = vunpack.c.h.b16 %v531
    %v1629 = vunpack.c.l.b16 %v532
    %v1630 = vunpack.c.h.b16 %v532
    %v1631 = vunpack.c.l.b16 %v533
    %v1632 = vunpack.c.h.b16 %v533
    %v1633 = vunpack.c.l.b16 %v534
    %v1634 = vunpack.c.h.b16 %v534
    %v1635 = vunpack.c.l.b16 %v535
    %v1636 = vunpack.c.h.b16 %v535
    %v1637 = vunpack.c.l.b16 %v536
    %v1638 = vunpack.c.h.b16 %v536
    %v1639 = vunpack.c.l.b16 %v537
    %v1640 = vunpack.c.h.b16 %v537
    %v1641 = vunpack.c.l.b16 %v538
    %v1642 = vunpack.c.h.b16 %v538
    %v1643 = vunpack.c.l.b16 %v539
    %v1644 = vunpack.c.h.b16 %v539
    %v1645 = vunpack.c.l.b16 %v540
    %v1646 = vunpack.c.h.b16 %v540
    %v1647 = vunpack.c.l.b16 %v541
    %v1648 = vunpack.c.h.b16 %v541
    %v1649 = vunpack.c.l.b16 %v542
    %v1650 = vunpack.c.h.b16 %v542
    %v1651 = vunpack.c.l.b16 %v543
    %v1652 = vunpack.c.h.b16 %v543
    %v1653 = vunpack.c.l.b16 %v544
    %v1654 = vunpack.c.h.b16 %v544
    %v1655 = vunpack.c.l.b16 %v545
    %v1656 = vunpack.c.h.b16 %v545
    %v1657 = vunpack.c.l.b16 %v546
    %v1658 = vunpack.c.h.b16 %v546
    %v1659 = vunpack.c.l.b16 %v547
    %v1660 = vunpack.c.h.b16 %v547
    %v1661 = vunpack.c.l.b16 %v548
    %v1662 = vunpack.c.h.b16 %v548
    %v1663 = vunpack.c.l.b16 %v549
    %v1664 = vunpack.c.h.b16 %v549
    %v1665 = vunpack.c.l.b16 %v550
    %v1666 = vunpack.c.h.b16 %v550
    %v1667 = vunpack.c.l.b16 %v551
    %v1668 = vunpack.c.h.b16 %v551
    %v1669 = vunpack.c.l.b16 %v552
    %v1670 = vunpack.c.h.b16 %v552
    %v1671 = vunpack.c.l.b16 %v553
    %v1672 = vunpack.c.h.b16 %v553
    %v1673 = vunpack.c.l.b16 %v554
    %v1674 = vunpack.c.h.b16 %v554
    %v1675 = vunpack.c.l.b16 %v555
    %v1676 = vunpack.c.h.b16 %v555
    %v1677 = vunpack.c.l.b16 %v556
    %v1678 = vunpack.c.h.b16 %v556
    %v1679 = vunpack.c.l.b16 %v557
    %v1680 = vunpack.c.h.b16 %v557
    %v1681 = vunpack.c.l.b16 %v558
    %v1682 = vunpack.c.h.b16 %v558
    %v1683 = vunpack.c.l.b16 %v559
    %v1684 = vunpack.c.h.b16 %v559
    %v1685 = vunpack.c.l.b16 %v560
    %v1686 = vunpack.c.h.b16 %v560
    %v1687 = vunpack.c.l.b16 %v561
    %v1688 = vunpack.c.h.b16 %v561
    %v1689 = vunpack.c.l.b16 %v562
    %v1690 = vunpack.c.h.b16 %v562
    %v1691 = vunpack.c.l.b16 %v563
    %v1692 = vunpack.c.h.b16 %v563
    %v1693 = vunpack.c.l.b16 %v564
    %v1694 = vunpack.c.h.b16 %v564
    %v1695 = vunpack.c.l.b16 %v565
    %v1696 = vunpack.c.h.b16 %v565
    %v1697 = vunpack.c.l.b16 %v566
    %v1698 = vunpack.c.h.b16 %v566
    %v1699 = vunpack.c.l.b16 %v567
    %v1700 = vunpack.c.h.b16 %v567
    %v1701 = vunpack.c.l.b16 %v568
    %v1702 = vunpack.c.h.b16 %v568
    %v1703 = vunpack.c.l.b16 %v569
    %v1704 = vunpack.c.h.b16 %v569
    %v1705 = vunpack.c.l.b16 %v570
    %v1706 = vunpack.c.h.b16 %v570
    %v1707 = vunpack.c.l.b16 %v571
    %v1708 = vunpack.c.h.b16 %v571
    %v1709 = vunpack.c.l.b16 %v572
    %v1710 = vunpack.c.h.b16 %v572
    %v1711 = vunpack.c.l.b16 %v573
    %v1712 = vunpack.c.h.b16 %v573
    %v1713 = vunpack.c.l.b16 %v574
    %v1714 = vunpack.c.h.b16 %v574
    %v1715 = vunpack.c.l.b16 %v575
    %v1716 = vunpack.c.h.b16 %v575
    %v1717 = vunpack.c.l.b16 %v576
    %v1718 = vunpack.c.h.b16 %v576
    %v1719 = vunpack.c.l.b16 %v577
    %v1720 = vunpack.c.h.b16 %v577
    %v1721 = vunpack.c.l.b16 %v578
    %v1722 = vunpack.c.h.b16 %v578
    %v1723 = vunpack.c.l.b16 %v579
    %v1724 = vunpack.c.h.b16 %v579
    %v1725 = vunpack.c.l.b16 %v580
    %v1726 = vunpack.c.h.b16 %v580
    %v1727 = vunpack.c.l.b16 %v581
    %v1728 = vunpack.c.h.b16 %v581
    %v1729 = vunpack.c.l.b16 %v582
    %v1730 = vunpack.c.h.b16 %v582
    %v1731 = vunpack.c.l.b16 %v583
    %v1732 = vunpack.c.h.b16 %v583
    %v1733 = vunpack.c.l.b16 %v584
    %v1734 = vunpack.c.h.b16 %v584
    %v1735 = vunpack.c.l.b16 %v585
    %v1736 = vunpack.c.h.b16 %v585
    %v1737 = vunpack.c.l.b16 %v586
    %v1738 = vunpack.c.h.b16 %v586
    %v1739 = vunpack.c.l.b16 %v587
    %v1740 = vunpack.c.h.b16 %v587
    %v1741 = vunpack.c.l.b16 %v588
    %v1742 = vunpack.c.h.b16 %v588
    %v1743 = vunpack.c.l.b16 %v589
    %v1744 = vunpack.c.h.b16 %v589
    %v1745 = vunpack.c.l.b16 %v590
    %v1746 = vunpack.c.h.b16 %v590
    %v1747 = vunpack.c.l.b16 %v591
    %v1748 = vunpack.c.h.b16 %v591
    %v1749 = vunpack.c.l.b16 %v592
    %v1750 = vunpack.c.h.b16 %v592
    %v1751 = vunpack.c.l.b16 %v593
    %v1752 = vunpack.c.h.b16 %v593
    %v1753 = vunpack.c.l.b16 %v594
    %v1754 = vunpack.c.h.b16 %v594
    %v1755 = vunpack.c.l.b16 %v595
    %v1756 = vunpack.c.h.b16 %v595
    %v1757 = vunpack.c.l.b16 %v596
    %v1758 = vunpack.c.h.b16 %v596
    %v1759 = vunpack.c.l.b16 %v597
    %v1760 = vunpack.c.h.b16 %v597
    %v1761 = vunpack.c.l.b16 %v598
    %v1762 = vunpack.c.h.b16 %v598
    %v1763 = vunpack.c.l.b16 %v599
    %v1764 = vunpack.c.h.b16 %v599
    %v1765 = vunpack.c.l.b16 %v600
    %v1766 = vunpack.c.h.b16 %v600
    %v1767 = vunpack.c.l.b16 %v601
    %v1768 = vunpack.c.h.b16 %v601
    %v1769 = vunpack.c.l.b16 %v602
    %v1770 = vunpack.c.h.b16 %v602
    %v1771 = vunpack.c.l.b16 %v603
    %v1772 = vunpack.c.h.b16 %v603
    %v1773 = vunpack.c.l.b16 %v604
    %v1774 = vunpack.c.h.b16 %v604
    %v1775 = vunpack.c.l.b16 %v605
    %v1776 = vunpack.c.h.b16 %v605
    %v1777 = vunpack.c.l.b16 %v606
    %v1778 = vunpack.c.h.b16 %v606
    %v1779 = vunpack.c.l.b16 %v607
    %v1780 = vunpack.c.h.b16 %v607
    %v1781 = vunpack.c.l.b16 %v608
    %v1782 = vunpack.c.h.b16 %v608
    %v1783 = vunpack.c.l.b16 %v609
    %v1784 = vunpack.c.h.b16 %v609
    %v1785 = vunpack.c.l.b16 %v610
    %v1786 = vunpack.c.h.b16 %v610
    %v1787 = vunpack.c.l.b16 %v611
    %v1788 = vunpack.c.h.b16 %v611
    %v1789 = vunpack.c.l.b16 %v612
    %v1790 = vunpack.c.h.b16 %v612
    %v1791 = vunpack.c.l.b16 %v613
    %v1792 = vunpack.c.h.b16 %v613
    %v1793 = vunpack.c.l.b16 %v614
    %v1794 = vunpack.c.h.b16 %v614
    %v1795 = vunpack.c.l.b16 %v615
    %v1796 = vunpack.c.h.b16 %v615
    %v1797 = vunpack.c.l.b16 %v616
    %v1798 = vunpack.c.h.b16 %v616
    %v1799 = vunpack.c.l.b16 %v617
    %v1800 = vunpack.c.h.b16 %v617
    %v1801 = vunpack.c.l.b16 %v618
    %v1802 = vunpack.c.h.b16 %v618
    %v1803 = vunpack.c.l.b16 %v619
    %v1804 = vunpack.c.h.b16 %v619
    %v1805 = vunpack.c.l.b16 %v620
    %v1806 = vunpack.c.h.b16 %v620
    %v1807 = vunpack.c.l.b16 %v621
    %v1808 = vunpack.c.h.b16 %v621
    %v1809 = vunpack.c.l.b16 %v622
    %v1810 = vunpack.c.h.b16 %v622
    %v1811 = vunpack.c.l.b16 %v623
    %v1812 = vunpack.c.h.b16 %v623
    %v1813 = vunpack.c.l.b16 %v624
    %v1814 = vunpack.c.h.b16 %v624
    %v1815 = vunpack.c.l.b16 %v625
    %v1816 = vunpack.c.h.b16 %v625
    %v1817 = vunpack.c.l.b16 %v626
    %v1818 = vunpack.c.h.b16 %v626
    %v1819 = vunpack.c.l.b16 %v627
    %v1820 = vunpack.c.h.b16 %v627
    %v1821 = vunpack.c.l.b16 %v628
    %v1822 = vunpack.c.h.b16 %v628
    %v1823 = vunpack.c.l.b16 %v629
    %v1824 = vunpack.c.h.b16 %v629
    %v1825 = vunpack.c.l.b16 %v630
    %v1826 = vunpack.c.h.b16 %v630
    %v1827 = vunpack.c.l.b16 %v631
    %v1828 = vunpack.c.h.b16 %v631
    %v1829 = vunpack.c.l.b16 %v632
    %v1830 = vunpack.c.h.b16 %v632
    %v1831 = vunpack.c.l.b16 %v633
    %v1832 = vunpack.c.h.b16 %v633
    %v1833 = vunpack.c.l.b16 %v634
    %v1834 = vunpack.c.h.b16 %v634
    %v1835 = vunpack.c.l.b16 %v635
    %v1836 = vunpack.c.h.b16 %v635
    %v1837 = vunpack.c.l.b16 %v636
    %v1838 = vunpack.c.h.b16 %v636
    %v1839 = vunpack.c.l.b16 %v637
    %v1840 = vunpack.c.h.b16 %v637
    %v1841 = vunpack.c.l.b16 %v638
    %v1842 = vunpack.c.h.b16 %v638
    %v1843 = vunpack.c.l.b16 %v639
    %v1844 = vunpack.c.h.b16 %v639
    %v1845 = vunpack.c.l.b16 %v640
    %v1846 = vunpack.c.h.b16 %v640
    %v1847 = vunpack.c.l.b16 %v641
    %v1848 = vunpack.c.h.b16 %v641
    %v1849 = vunpack.c.l.b16 %v642
    %v1850 = vunpack.c.h.b16 %v642
    %v1851 = vunpack.c.l.b16 %v643
    %v1852 = vunpack.c.h.b16 %v643
    %v1853 = vunpack.c.l.b16 %v644
    %v1854 = vunpack.c.h.b16 %v644
    %v1855 = vunpack.c.l.b16 %v645
    %v1856 = vunpack.c.h.b16 %v645
    %v1857 = vunpack.c.l.b16 %v646
    %v1858 = vunpack.c.h.b16 %v646
    %v1859 = vunpack.c.l.b16 %v647
    %v1860 = vunpack.c.h.b16 %v647
    %v1861 = vunpack.c.l.b16 %v648
    %v1862 = vunpack.c.h.b16 %v648
    %v1863 = vunpack.c.l.b16 %v649
    %v1864 = vunpack.c.h.b16 %v649
    %v1865 = vunpack.c.l.b16 %v650
    %v1866 = vunpack.c.h.b16 %v650
    %v1867 = vunpack.c.l.b16 %v651
    %v1868 = vunpack.c.h.b16 %v651
    %v1869 = vunpack.c.l.b16 %v652
    %v1870 = vunpack.c.h.b16 %v652
    %v1871 = vunpack.c.l.b16 %v653
    %v1872 = vunpack.c.h.b16 %v653
    %v1873 = vunpack.c.l.b16 %v654
    %v1874 = vunpack.c.h.b16 %v654
    %v1875 = vunpack.c.l.b16 %v655
    %v1876 = vunpack.c.h.b16 %v655
    %v1877 = vunpack.c.l.b16 %v656
    %v1878 = vunpack.c.h.b16 %v656
    %v1879 = vunpack.c.l.b16 %v657
    %v1880 = vunpack.c.h.b16 %v657
    %v1881 = vunpack.c.l.b16 %v658
    %v1882 = vunpack.c.h.b16 %v658
    %v1883 = vunpack.c.l.b16 %v659
    %v1884 = vunpack.c.h.b16 %v659
    %v1885 = vunpack.c.l.b16 %v660
    %v1886 = vunpack.c.h.b16 %v660
    %v1887 = vunpack.c.l.b16 %v661
    %v1888 = vunpack.c.h.b16 %v661
    %v1889 = vunpack.c.l.b16 %v662
    %v1890 = vunpack.c.h.b16 %v662
    %v1891 = vunpack.c.l.b16 %v663
    %v1892 = vunpack.c.h.b16 %v663
    %v1893 = vunpack.c.l.b16 %v664
    %v1894 = vunpack.c.h.b16 %v664
    %v1895 = vunpack.c.l.b16 %v665
    %v1896 = vunpack.c.h.b16 %v665
    %v1897 = vunpack.c.l.b16 %v666
    %v1898 = vunpack.c.h.b16 %v666
    %v1899 = vunpack.c.l.b16 %v667
    %v1900 = vunpack.c.h.b16 %v667
    %v1901 = vunpack.c.l.b16 %v668
    %v1902 = vunpack.c.h.b16 %v668
    %v1903 = vunpack.c.l.b16 %v669
    %v1904 = vunpack.c.h.b16 %v669
    %v1905 = vunpack.c.l.b16 %v670
    %v1906 = vunpack.c.h.b16 %v670
    %v1907 = vunpack.c.l.b16 %v671
    %v1908 = vunpack.c.h.b16 %v671
    %v1909 = vunpack.c.l.b16 %v672
    %v1910 = vunpack.c.h.b16 %v672
    %v1911 = vunpack.c.l.b16 %v673
    %v1912 = vunpack.c.h.b16 %v673
    %v1913 = vunpack.c.l.b16 %v674
    %v1914 = vunpack.c.h.b16 %v674
    %v1915 = vunpack.c.l.b16 %v675
    %v1916 = vunpack.c.h.b16 %v675
    %v1917 = vunpack.c.l.b16 %v676
    %v1918 = vunpack.c.h.b16 %v676
    %v1919 = vunpack.c.l.b16 %v677
    %v1920 = vunpack.c.h.b16 %v677
    %v1921 = vunpack.c.l.b16 %v678
    %v1922 = vunpack.c.h.b16 %v678
    %v1923 = vunpack.c.l.b16 %v679
    %v1924 = vunpack.c.h.b16 %v679
    %v1925 = vunpack.c.l.b16 %v680
    %v1926 = vunpack.c.h.b16 %v680
    %v1927 = vunpack.c.l.b16 %v681
    %v1928 = vunpack.c.h.b16 %v681
    %v1929 = vunpack.c.l.b16 %v682
    %v1930 = vunpack.c.h.b16 %v682
    %v1931 = vunpack.c.l.b16 %v683
    %v1932 = vunpack.c.h.b16 %v683
    %v1933 = vunpack.c.l.b16 %v684
    %v1934 = vunpack.c.h.b16 %v684
    %v1935 = vunpack.c.l.b16 %v685
    %v1936 = vunpack.c.h.b16 %v685
    %v1937 = vunpack.c.l.b16 %v686
    %v1938 = vunpack.c.h.b16 %v686
    %v1939 = vunpack.c.l.b16 %v687
    %v1940 = vunpack.c.h.b16 %v687
    %v1941 = vunpack.c.l.b16 %v688
    %v1942 = vunpack.c.h.b16 %v688
    %v1943 = vunpack.c.l.b16 %v689
    %v1944 = vunpack.c.h.b16 %v689
    %v1945 = vunpack.c.l.b16 %v690
    %v1946 = vunpack.c.h.b16 %v690
    %v1947 = vunpack.c.l.b16 %v691
    %v1948 = vunpack.c.h.b16 %v691
    %v1949 = vunpack.c.l.b16 %v692
    %v1950 = vunpack.c.h.b16 %v692
    %v1951 = vunpack.c.l.b16 %v693
    %v1952 = vunpack.c.h.b16 %v693
    %v1953 = vunpack.c.l.b16 %v694
    %v1954 = vunpack.c.h.b16 %v694
    %v1955 = vunpack.c.l.b16 %v695
    %v1956 = vunpack.c.h.b16 %v695
    %v1957 = vunpack.c.l.b16 %v696
    %v1958 = vunpack.c.h.b16 %v696
    %v1959 = vunpack.c.l.b16 %v697
    %v1960 = vunpack.c.h.b16 %v697
    %v1961 = vunpack.c.l.b16 %v698
    %v1962 = vunpack.c.h.b16 %v698
    %v1963 = vunpack.c.l.b16 %v699
    %v1964 = vunpack.c.h.b16 %v699
    %v1965 = vunpack.c.l.b16 %v700
    %v1966 = vunpack.c.h.b16 %v700
    %v1967 = vunpack.c.l.b16 %v701
    %v1968 = vunpack.c.h.b16 %v701
    %v1969 = vunpack.c.l.b16 %v702
    %v1970 = vunpack.c.h.b16 %v702
    %v1971 = vunpack.c.l.b16 %v703
    %v1972 = vunpack.c.h.b16 %v703
    %v1973 = vunpack.c.l.b16 %v704
    %v1974 = vunpack.c.h.b16 %v704
    %v1975 = vunpack.c.l.b16 %v705
    %v1976 = vunpack.c.h.b16 %v705
    %v1977 = vunpack.c.l.b16 %v706
    %v1978 = vunpack.c.h.b16 %v706
    %v1979 = vunpack.c.l.b16 %v707
    %v1980 = vunpack.c.h.b16 %v707
    %v1981 = vunpack.c.l.b16 %v708
    %v1982 = vunpack.c.h.b16 %v708
    %v1983 = vunpack.c.l.b16 %v709
    %v1984 = vunpack.c.h.b16 %v709
    %v1985 = vunpack.c.l.b16 %v710
    %v1986 = vunpack.c.h.b16 %v710
    %v1987 = vunpack.c.l.b16 %v711
    %v1988 = vunpack.c.h.b16 %v711
    %v1989 = vunpack.c.l.b16 %v712
    %v1990 = vunpack.c.h.b16 %v712
    %v1991 = vunpack.c.l.b16 %v713
    %v1992 = vunpack.c.h.b16 %v713
    %v1993 = vunpack.c.l.b16 %v714
    %v1994 = vunpack.c.h.b16 %v714
    %v1995 = vunpack.c.l.b16 %v715
    %v1996 = vunpack.c.h.b16 %v715
    %v1997 = vunpack.c.l.b16 %v716
    %v1998 = vunpack.c.h.b16 %v716
    %v1999 = vunpack.c.l.b16 %v717
    %v2000 = vunpack.c.h.b16 %v717
    %v2001 = vunpack.c.l.b16 %v718
    %v2002 = vunpack.c.h.b16 %v718
    %v2003 = vunpack.c.l.b16 %v719
    %v2004 = vunpack.c.h.b16 %v719
    %v2005 = vunpack.c.l.b16 %v720
    %v2006 = vunpack.c.h.b16 %v720
    %v2007 = vunpack.c.l.b16 %v721
    %v2008 = vunpack.c.h.b16 %v721
    %v2009 = vunpack.c.l.b16 %v722
    %v2010 = vunpack.c.h.b16 %v722
    %v2011 = vunpack.c.l.b16 %v723
    %v2012 = vunpack.c.h.b16 %v723
    %v2013 = vunpack.c.l.b16 %v724
    %v2014 = vunpack.c.h.b16 %v724
    %v2015 = vunpack.c.l.b16 %v725
    %v2016 = vunpack.c.h.b16 %v725
    %v2017 = vunpack.c.l.b16 %v726
    %v2018 = vunpack.c.h.b16 %v726
    %v2019 = vunpack.c.l.b16 %v727
    %v2020 = vunpack.c.h.b16 %v727
    %v2021 = vunpack.c.l.b16 %v728
    %v2022 = vunpack.c.h.b16 %v728
    %v2023 = vunpack.c.l.b16 %v729
    %v2024 = vunpack.c.h.b16 %v729
    %v2025 = vunpack.c.l.b16 %v730
    %v2026 = vunpack.c.h.b16 %v730
    %v2027 = vunpack.c.l.b16 %v731
    %v2028 = vunpack.c.h.b16 %v731
    %v2029 = vunpack.c.l.b16 %v732
    %v2030 = vunpack.c.h.b16 %v732
    %v2031 = vunpack.c.l.b16 %v733
    %v2032 = vunpack.c.h.b16 %v733
    %v2033 = vunpack.c.l.b16 %v734
    %v2034 = vunpack.c.h.b16 %v734
    %v2035 = vunpack.c.l.b16 %v735
    %v2036 = vunpack.c.h.b16 %v735
    %v2037 = vunpack.c.l.b16 %v736
    %v2038 = vunpack.c.h.b16 %v736
    %v2039 = vunpack.c.l.b16 %v737
    %v2040 = vunpack.c.h.b16 %v737
    %v2041 = vunpack.c.l.b16 %v738
    %v2042 = vunpack.c.h.b16 %v738
    %v2043 = vunpack.c.l.b16 %v739
    %v2044 = vunpack.c.h.b16 %v739
    %v2045 = vunpack.c.l.b16 %v740
    %v2046 = vunpack.c.h.b16 %v740
    %v2047 = vunpack.c.l.b16 %v741
    %v2048 = vunpack.c.h.b16 %v741
    %v2049 = vunpack.c.l.b16 %v742
    %v2050 = vunpack.c.h.b16 %v742
    %v2051 = vunpack.c.l.b16 %v743
    %v2052 = vunpack.c.h.b16 %v743
    %v2053 = vunpack.c.l.b16 %v744
    %v2054 = vunpack.c.h.b16 %v744
    %v2055 = vunpack.c.l.b16 %v745
    %v2056 = vunpack.c.h.b16 %v745
    %v2057 = vunpack.c.l.b16 %v746
    %v2058 = vunpack.c.h.b16 %v746
    %v2059 = vunpack.c.l.b16 %v747
    %v2060 = vunpack.c.h.b16 %v747
    %v2061 = vunpack.c.l.b16 %v748
    %v2062 = vunpack.c.h.b16 %v748
    %v2063 = vunpack.c.l.b16 %v749
    %v2064 = vunpack.c.h.b16 %v749
    %v2065 = vunpack.c.l.b16 %v750
    %v2066 = vunpack.c.h.b16 %v750
    %v2067 = vunpack.c.l.b16 %v751
    %v2068 = vunpack.c.h.b16 %v751
    %v2069 = vunpack.c.l.b16 %v752
    %v2070 = vunpack.c.h.b16 %v752
    %v2071 = vunpack.c.l.b16 %v753
    %v2072 = vunpack.c.h.b16 %v753
    %v2073 = vunpack.c.l.b16 %v754
    %v2074 = vunpack.c.h.b16 %v754
    %v2075 = vunpack.c.l.b16 %v755
    %v2076 = vunpack.c.h.b16 %v755
    %v2077 = vunpack.c.l.b16 %v756
    %v2078 = vunpack.c.h.b16 %v756
    %v2079 = vunpack.c.l.b16 %v757
    %v2080 = vunpack.c.h.b16 %v757
    %v2081 = vunpack.c.l.b16 %v758
    %v2082 = vunpack.c.h.b16 %v758
    %v2083 = vunpack.c.l.b16 %v759
    %v2084 = vunpack.c.h.b16 %v759
    %v2085 = vunpack.c.l.b16 %v760
    %v2086 = vunpack.c.h.b16 %v760
    %v2087 = vunpack.c.l.b16 %v761
    %v2088 = vunpack.c.h.b16 %v761
    %v2089 = vunpack.c.l.b16 %v762
    %v2090 = vunpack.c.h.b16 %v762
    %v2091 = vunpack.c.l.b16 %v763
    %v2092 = vunpack.c.h.b16 %v763
    %v2093 = vunpack.c.l.b16 %v764
    %v2094 = vunpack.c.h.b16 %v764
    %v2095 = vunpack.c.l.b16 %v765
    %v2096 = vunpack.c.h.b16 %v765
    %v2097 = vunpack.c.l.b16 %v766
    %v2098 = vunpack.c.h.b16 %v766
    %v2099 = vunpack.c.l.b16 %v767
    %v2100 = vunpack.c.h.b16 %v767
    %v2101 = vunpack.c.l.b16 %v768
    %v2102 = vunpack.c.h.b16 %v768
    %v2103 = vunpack.c.l.b16 %v769
    %v2104 = vunpack.c.h.b16 %v769
    %v2105 = vunpack.c.l.b16 %v770
    %v2106 = vunpack.c.h.b16 %v770
    %v2107 = vunpack.c.l.b16 %v771
    %v2108 = vunpack.c.h.b16 %v771
    %v2109 = vunpack.c.l.b16 %v772
    %v2110 = vunpack.c.h.b16 %v772
    %v2111 = vunpack.c.l.b16 %v773
    %v2112 = vunpack.c.h.b16 %v773
    %v2113 = vunpack.c.l.b16 %v774
    %v2114 = vunpack.c.h.b16 %v774
    %v2115 = vunpack.c.l.b16 %v775
    %v2116 = vunpack.c.h.b16 %v775
    %v2117 = vunpack.c.l.b16 %v776
    %v2118 = vunpack.c.h.b16 %v776
    %v2119 = vunpack.c.l.b16 %v777
    %v2120 = vunpack.c.h.b16 %v777
    %v2121 = vunpack.c.l.b16 %v778
    %v2122 = vunpack.c.h.b16 %v778
    %v2123 = vunpack.c.l.b16 %v779
    %v2124 = vunpack.c.h.b16 %v779
    %v2125 = vunpack.c.l.b16 %v780
    %v2126 = vunpack.c.h.b16 %v780
    %v2127 = vunpack.c.l.b16 %v781
    %v2128 = vunpack.c.h.b16 %v781
    %v2129 = vunpack.c.l.b16 %v782
    %v2130 = vunpack.c.h.b16 %v782
    %v2131 = vunpack.c.l.b16 %v783
    %v2132 = vunpack.c.h.b16 %v783
    %v2133 = vunpack.c.l.b16 %v784
    %v2134 = vunpack.c.h.b16 %v784
    %v2135 = vunpack.c.l.b16 %v785
    %v2136 = vunpack.c.h.b16 %v785
    %v2137 = vunpack.c.l.b16 %v786
    %v2138 = vunpack.c.h.b16 %v786
    %v2139 = vunpack.c.l.b16 %v787
    %v2140 = vunpack.c.h.b16 %v787
    %v2141 = vunpack.c.l.b16 %v788
    %v2142 = vunpack.c.h.b16 %v788
    %v2143 = vunpack.c.l.b16 %v789
    %v2144 = vunpack.c.h.b16 %v789
    %v2145 = vunpack.c.l.b16 %v790
    %v2146 = vunpack.c.h.b16 %v790
    %v2147 = vunpack.c.l.b16 %v791
    %v2148 = vunpack.c.h.b16 %v791
    %v2149 = vunpack.c.l.b16 %v792
    %v2150 = vunpack.c.h.b16 %v792
    %v2151 = vunpack.c.l.b16 %v793
    %v2152 = vunpack.c.h.b16 %v793
    %v2153 = vunpack.c.l.b16 %v794
    %v2154 = vunpack.c.h.b16 %v794
    %v2155 = vunpack.c.l.b16 %v795
    %v2156 = vunpack.c.h.b16 %v795
    %v2157 = vunpack.c.l.b16 %v796
    %v2158 = vunpack.c.h.b16 %v796
    %v2159 = vunpack.c.l.b16 %v797
    %v2160 = vunpack.c.h.b16 %v797
    %v2161 = vunpack.c.l.b16 %v798
    %v2162 = vunpack.c.h.b16 %v798
    %v2163 = vunpack.c.l.b16 %v799
    %v2164 = vunpack.c.h.b16 %v799
    %v2165 = vunpack.c.l.b16 %v800
    %v2166 = vunpack.c.h.b16 %v800
    %v2167 = vunpack.c.l.b16 %v801
    %v2168 = vunpack.c.h.b16 %v801
    %v2169 = vunpack.c.l.b16 %v802
    %v2170 = vunpack.c.h.b16 %v802
    %v2171 = vunpack.c.l.b16 %v803
    %v2172 = vunpack.c.h.b16 %v803
    %v2173 = vunpack.c.l.b16 %v804
    %v2174 = vunpack.c.h.b16 %v804
    %v2175 = vunpack.c.l.b16 %v805
    %v2176 = vunpack.c.h.b16 %v805
    %v2177 = vunpack.c.l.b16 %v806
    %v2178 = vunpack.c.h.b16 %v806
    %v2179 = vunpack.c.l.b16 %v807
    %v2180 = vunpack.c.h.b16 %v807
    %v2181 = vunpack.c.l.b16 %v808
    %v2182 = vunpack.c.h.b16 %v808
    %v2183 = vunpack.c.l.b16 %v809
    %v2184 = vunpack.c.h.b16 %v809
    %v2185 = vunpack.c.l.b16 %v810
    %v2186 = vunpack.c.h.b16 %v810
    %v2187 = vunpack.c.l.b16 %v811
    %v2188 = vunpack.c.h.b16 %v811
    %v2189 = vunpack.c.l.b16 %v812
    %v2190 = vunpack.c.h.b16 %v812
    %v2191 = vunpack.c.l.b16 %v813
    %v2192 = vunpack.c.h.b16 %v813
    %v2193 = vunpack.c.l.b16 %v814
    %v2194 = vunpack.c.h.b16 %v814
    %v2195 = vunpack.c.l.b16 %v815
    %v2196 = vunpack.c.h.b16 %v815
    %v2197 = vunpack.c.l.b16 %v816
    %v2198 = vunpack.c.h.b16 %v816
    %v2199 = vunpack.c.l.b16 %v817
    %v2200 = vunpack.c.h.b16 %v817
    %v2201 = vunpack.c.l.b16 %v818
    %v2202 = vunpack.c.h.b16 %v818
    %v2203 = vunpack.c.l.b16 %v819
    %v2204 = vunpack.c.h.b16 %v819
    %v2205 = vunpack.c.l.b16 %v820
    %v2206 = vunpack.c.h.b16 %v820
    %v2207 = vunpack.c.l.b16 %v821
    %v2208 = vunpack.c.h.b16 %v821
    %v2209 = vunpack.c.l.b16 %v822
    %v2210 = vunpack.c.h.b16 %v822
    %v2211 = vunpack.c.l.b16 %v823
    %v2212 = vunpack.c.h.b16 %v823
    %v2213 = vunpack.c.l.b16 %v824
    %v2214 = vunpack.c.h.b16 %v824
    %v2215 = vunpack.c.l.b16 %v825
    %v2216 = vunpack.c.h.b16 %v825
    %v2217 = vunpack.c.l.b16 %v826
    %v2218 = vunpack.c.h.b16 %v826
    %v2219 = vunpack.c.l.b16 %v827
    %v2220 = vunpack.c.h.b16 %v827
    %v2221 = vunpack.c.l.b16 %v828
    %v2222 = vunpack.c.h.b16 %v828
    %v2223 = vunpack.c.l.b16 %v829
    %v2224 = vunpack.c.h.b16 %v829
    %v2225 = vunpack.c.l.b16 %v830
    %v2226 = vunpack.c.h.b16 %v830
    %v2227 = vunpack.c.l.b16 %v831
    %v2228 = vunpack.c.h.b16 %v831
    %v2229 = vunpack.c.l.b16 %v832
    %v2230 = vunpack.c.h.b16 %v832
    %v2231 = vunpack.c.l.b16 %v833
    %v2232 = vunpack.c.h.b16 %v833
    %v2233 = vunpack.c.l.b16 %v834
    %v2234 = vunpack.c.h.b16 %v834
    %v2235 = vunpack.c.l.b16 %v835
    %v2236 = vunpack.c.h.b16 %v835
    %v2237 = vunpack.c.l.b16 %v836
    %v2238 = vunpack.c.h.b16 %v836
    %v2239 = vunpack.c.l.b16 %v837
    %v2240 = vunpack.c.h.b16 %v837
    %v2241 = vunpack.c.l.b16 %v838
    %v2242 = vunpack.c.h.b16 %v838
    %v2243 = vunpack.c.l.b16 %v839
    %v2244 = vunpack.c.h.b16 %v839
    %v2245 = vunpack.c.l.b16 %v840
    %v2246 = vunpack.c.h.b16 %v840
    %v2247 = vunpack.c.l.b16 %v841
    %v2248 = vunpack.c.h.b16 %v841
    %v2249 = vunpack.c.l.b16 %v842
    %v2250 = vunpack.c.h.b16 %v842
    %v2251 = vunpack.c.l.b16 %v843
    %v2252 = vunpack.c.h.b16 %v843
    %v2253 = vunpack.c.l.b16 %v844
    %v2254 = vunpack.c.h.b16 %v844
    %v2255 = vunpack.c.l.b16 %v845
    %v2256 = vunpack.c.h.b16 %v845
    %v2257 = vunpack.c.l.b16 %v846
    %v2258 = vunpack.c.h.b16 %v846
    %v2259 = vunpack.c.l.b16 %v847
    %v2260 = vunpack.c.h.b16 %v847
    %v2261 = vunpack.c.l.b16 %v848
    %v2262 = vunpack.c.h.b16 %v848
    %v2263 = vunpack.c.l.b16 %v849
    %v2264 = vunpack.c.h.b16 %v849
    %v2265 = vunpack.c.l.b16 %v850
    %v2266 = vunpack.c.h.b16 %v850
    %v2267 = vunpack.c.l.b16 %v851
    %v2268 = vunpack.c.h.b16 %v851
    %v2269 = vunpack.c.l.b16 %v852
    %v2270 = vunpack.c.h.b16 %v852
    %v2271 = vunpack.c.l.b16 %v853
    %v2272 = vunpack.c.h.b16 %v853
    %v2273 = vunpack.c.l.b16 %v854
    %v2274 = vunpack.c.h.b16 %v854
    %v2275 = vunpack.c.l.b16 %v855
    %v2276 = vunpack.c.h.b16 %v855
    %v2277 = vunpack.c.l.b16 %v856
    %v2278 = vunpack.c.h.b16 %v856
    %v2279 = vunpack.c.l.b16 %v857
    %v2280 = vunpack.c.h.b16 %v857
    %v2281 = vunpack.c.l.b16 %v858
    %v2282 = vunpack.c.h.b16 %v858
    %v2283 = vunpack.c.l.b16 %v859
    %v2284 = vunpack.c.h.b16 %v859
    %v2285 = vunpack.c.l.b16 %v860
    %v2286 = vunpack.c.h.b16 %v860
    %v2287 = vunpack.c.l.b16 %v861
    %v2288 = vunpack.c.h.b16 %v861
    %v2289 = vunpack.c.l.b16 %v862
    %v2290 = vunpack.c.h.b16 %v862
    %v2291 = vunpack.c.l.b16 %v863
    %v2292 = vunpack.c.h.b16 %v863
    %v2293 = vunpack.c.l.b16 %v864
    %v2294 = vunpack.c.h.b16 %v864
    %v2295 = vunpack.c.l.b16 %v865
    %v2296 = vunpack.c.h.b16 %v865
    %v2297 = vunpack.c.l.b16 %v866
    %v2298 = vunpack.c.h.b16 %v866
    %v2299 = vunpack.c.l.b16 %v867
    %v2300 = vunpack.c.h.b16 %v867
    %v2301 = vunpack.c.l.b16 %v868
    %v2302 = vunpack.c.h.b16 %v868
    %v2303 = vunpack.c.l.b16 %v869
    %v2304 = vunpack.c.h.b16 %v869
    %v2305 = vunpack.c.l.b16 %v870
    %v2306 = vunpack.c.h.b16 %v870
    %v2307 = vunpack.c.l.b16 %v871
    %v2308 = vunpack.c.h.b16 %v871
    %v2309 = vunpack.c.l.b16 %v872
    %v2310 = vunpack.c.h.b16 %v872
    %v2311 = vunpack.c.l.b16 %v873
    %v2312 = vunpack.c.h.b16 %v873
    %v2313 = vunpack.c.l.b16 %v874
    %v2314 = vunpack.c.h.b16 %v874
    %v2315 = vunpack.c.l.b16 %v875
    %v2316 = vunpack.c.h.b16 %v875
    %v2317 = vunpack.c.l.b16 %v876
    %v2318 = vunpack.c.h.b16 %v876
    %v2319 = vunpack.c.l.b16 %v877
    %v2320 = vunpack.c.h.b16 %v877
    %v2321 = vunpack.c.l.b16 %v878
    %v2322 = vunpack.c.h.b16 %v878
    %v2323 = vunpack.c.l.b16 %v879
    %v2324 = vunpack.c.h.b16 %v879
    %v2325 = vunpack.c.l.b16 %v880
    %v2326 = vunpack.c.h.b16 %v880
    %v2327 = vunpack.c.l.b16 %v881
    %v2328 = vunpack.c.h.b16 %v881
    %v2329 = vunpack.c.l.b16 %v882
    %v2330 = vunpack.c.h.b16 %v882
    %v2331 = vunpack.c.l.b16 %v883
    %v2332 = vunpack.c.h.b16 %v883
    %v2333 = vunpack.c.l.b16 %v884
    %v2334 = vunpack.c.h.b16 %v884
    %v2335 = vunpack.c.l.b16 %v885
    %v2336 = vunpack.c.h.b16 %v885
    %v2337 = vunpack.c.l.b16 %v886
    %v2338 = vunpack.c.h.b16 %v886
    %v2339 = vunpack.c.l.b16 %v887
    %v2340 = vunpack.c.h.b16 %v887
    %v2341 = vunpack.c.l.b16 %v888
    %v2342 = vunpack.c.h.b16 %v888
    %v2343 = vunpack.c.l.b16 %v889
    %v2344 = vunpack.c.h.b16 %v889
    %v2345 = vunpack.c.l.b16 %v890
    %v2346 = vunpack.c.h.b16 %v890
    %v2347 = vunpack.c.l.b16 %v891
    %v2348 = vunpack.c.h.b16 %v891
    %v2349 = vunpack.c.l.b16 %v892
    %v2350 = vunpack.c.h.b16 %v892
    %v2351 = vunpack.c.l.b16 %v893
    %v2352 = vunpack.c.h.b16 %v893
    %v2353 = vunpack.c.l.b16 %v894
    %v2354 = vunpack.c.h.b16 %v894
    %v2355 = vunpack.c.l.b16 %v895
    %v2356 = vunpack.c.h.b16 %v895
    %v2357 = vunpack.c.l.b16 %v896
    %v2358 = vunpack.c.h.b16 %v896
    %v2359 = vunpack.c.l.b16 %v897
    %v2360 = vunpack.c.h.b16 %v897
    %v2361 = vunpack.c.l.b16 %v898
    %v2362 = vunpack.c.h.b16 %v898
    %v2363 = vunpack.c.l.b16 %v899
    %v2364 = vunpack.c.h.b16 %v899
    %v2365 = vunpack.c.l.b16 %v900
    %v2366 = vunpack.c.h.b16 %v900
    %v2367 = vunpack.c.l.b16 %v901
    %v2368 = vunpack.c.h.b16 %v901
    %v2369 = vunpack.c.l.b16 %v902
    %v2370 = vunpack.c.h.b16 %v902
    %v2371 = vunpack.c.l.b16 %v903
    %v2372 = vunpack.c.h.b16 %v903
    %v2373 = vunpack.c.l.b16 %v904
    %v2374 = vunpack.c.h.b16 %v904
    %v2375 = vunpack.c.l.b16 %v905
    %v2376 = vunpack.c.h.b16 %v905
    %v2377 = vunpack.c.l.b16 %v906
    %v2378 = vunpack.c.h.b16 %v906
    %v2379 = vunpack.c.l.b16 %v907
    %v2380 = vunpack.c.h.b16 %v907
    %v2381 = vunpack.c.l.b16 %v908
    %v2382 = vunpack.c.h.b16 %v908
    %v2383 = vunpack.c.l.b16 %v909
    %v2384 = vunpack.c.h.b16 %v909
    %v2385 = vunpack.c.l.b16 %v910
    %v2386 = vunpack.c.h.b16 %v910
    %v2387 = vunpack.c.l.b16 %v911
    %v2388 = vunpack.c.h.b16 %v911
    %v2389 = vunpack.c.l.b16 %v912
    %v2390 = vunpack.c.h.b16 %v912
    %v2391 = vunpack.c.l.b16 %v913
    %v2392 = vunpack.c.h.b16 %v913
    %v2393 = vunpack.c.l.b16 %v914
    %v2394 = vunpack.c.h.b16 %v914
    %v2395 = vunpack.c.l.b16 %v915
    %v2396 = vunpack.c.h.b16 %v915
    %v2397 = vunpack.c.l.b16 %v916
    %v2398 = vunpack.c.h.b16 %v916
    %v2399 = vunpack.c.l.b16 %v917
    %v2400 = vunpack.c.h.b16 %v917
    %v2401 = vunpack.c.l.b16 %v918
    %v2402 = vunpack.c.h.b16 %v918
    %v2403 = vunpack.c.l.b16 %v919
    %v2404 = vunpack.c.h.b16 %v919
    %v2405 = vunpack.c.l.b16 %v920
    %v2406 = vunpack.c.h.b16 %v920
    %v2407 = vunpack.c.l.b16 %v921
    %v2408 = vunpack.c.h.b16 %v921
    %v2409 = vunpack.c.l.b16 %v922
    %v2410 = vunpack.c.h.b16 %v922
    %v2411 = vunpack.c.l.b16 %v923
    %v2412 = vunpack.c.h.b16 %v923
    %v2413 = vunpack.c.l.b16 %v924
    %v2414 = vunpack.c.h.b16 %v924
    %v2415 = vunpack.c.l.b16 %v925
    %v2416 = vunpack.c.h.b16 %v925
    %v2417 = vunpack.c.l.b16 %v926
    %v2418 = vunpack.c.h.b16 %v926
    %v2419 = vunpack.c.l.b16 %v927
    %v2420 = vunpack.c.h.b16 %v927
    %v2421 = vunpack.c.l.b16 %v928
    %v2422 = vunpack.c.h.b16 %v928
    %v2423 = vunpack.c.l.b16 %v929
    %v2424 = vunpack.c.h.b16 %v929
    %v2425 = vunpack.c.l.b16 %v930
    %v2426 = vunpack.c.h.b16 %v930
    %v2427 = vunpack.c.l.b16 %v931
    %v2428 = vunpack.c.h.b16 %v931
    %v2429 = vunpack.c.l.b16 %v932
    %v2430 = vunpack.c.h.b16 %v932
    %v2431 = vunpack.c.l.b16 %v933
    %v2432 = vunpack.c.h.b16 %v933
    %v2433 = vunpack.c.l.b16 %v934
    %v2434 = vunpack.c.h.b16 %v934
    %v2435 = vunpack.c.l.b16 %v935
    %v2436 = vunpack.c.h.b16 %v935
    %v2437 = vunpack.c.l.b16 %v936
    %v2438 = vunpack.c.h.b16 %v936
    %v2439 = vunpack.c.l.b16 %v937
    %v2440 = vunpack.c.h.b16 %v937
    %v2441 = vunpack.c.l.b16 %v938
    %v2442 = vunpack.c.h.b16 %v938
    %v2443 = vunpack.c.l.b16 %v939
    %v2444 = vunpack.c.h.b16 %v939
    %v2445 = vunpack.c.l.b16 %v940
    %v2446 = vunpack.c.h.b16 %v940
    %v2447 = vunpack.c.l.b16 %v941
    %v2448 = vunpack.c.h.b16 %v941
    %v2449 = vunpack.c.l.b16 %v942
    %v2450 = vunpack.c.h.b16 %v942
    %v2451 = vunpack.c.l.b16 %v943
    %v2452 = vunpack.c.h.b16 %v943
    %v2453 = vunpack.c.l.b16 %v944
    %v2454 = vunpack.c.h.b16 %v944
    %v2455 = vunpack.c.l.b16 %v945
    %v2456 = vunpack.c.h.b16 %v945
    %v2457 = vunpack.c.l.b16 %v946
    %v2458 = vunpack.c.h.b16 %v946
    %v2459 = vunpack.c.l.b16 %v947
    %v2460 = vunpack.c.h.b16 %v947
    %v2461 = vunpack.c.l.b16 %v948
    %v2462 = vunpack.c.h.b16 %v948
    %v2463 = vunpack.c.l.b16 %v949
    %v2464 = vunpack.c.h.b16 %v949
    %v2465 = vunpack.c.l.b16 %v950
    %v2466 = vunpack.c.h.b16 %v950
    %v2467 = vunpack.c.l.b16 %v951
    %v2468 = vunpack.c.h.b16 %v951
    %v2469 = vunpack.c.l.b16 %v952
    %v2470 = vunpack.c.h.b16 %v952
    %v2471 = vunpack.c.l.b16 %v953
    %v2472 = vunpack.c.h.b16 %v953
    %v2473 = vunpack.c.l.b16 %v954
    %v2474 = vunpack.c.h.b16 %v954
    %v2475 = vunpack.c.l.b16 %v955
    %v2476 = vunpack.c.h.b16 %v955
    %v2477 = vunpack.c.l.b16 %v956
    %v2478 = vunpack.c.h.b16 %v956
    %v2479 = vunpack.c.l.b16 %v957
    %v2480 = vunpack.c.h.b16 %v957
    %v2481 = vunpack.c.l.b16 %v958
    %v2482 = vunpack.c.h.b16 %v958
    %v2483 = vunpack.c.l.b16 %v959
    %v2484 = vunpack.c.h.b16 %v959
    %v2485 = vunpack.c.l.b16 %v960
    %v2486 = vunpack.c.h.b16 %v960
    %v2487 = vunpack.c.l.b16 %v961
    %v2488 = vunpack.c.h.b16 %v961
    %v2489 = vunpack.c.l.b16 %v962
    %v2490 = vunpack.c.h.b16 %v962
    %v2491 = vunpack.c.l.b16 %v963
    %v2492 = vunpack.c.h.b16 %v963
    %v2493 = vunpack.c.l.b16 %v964
    %v2494 = vunpack.c.h.b16 %v964
    %v2495 = vunpack.c.l.b16 %v965
    %v2496 = vunpack.c.h.b16 %v965
    %v2497 = vunpack.c.l.b16 %v966
    %v2498 = vunpack.c.h.b16 %v966
    %v2499 = vunpack.c.l.b16 %v967
    %v2500 = vunpack.c.h.b16 %v967
    %v2501 = vunpack.c.l.b16 %v968
    %v2502 = vunpack.c.h.b16 %v968
    %v2503 = vunpack.c.l.b16 %v969
    %v2504 = vunpack.c.h.b16 %v969
    %v2505 = vunpack.c.l.b16 %v970
    %v2506 = vunpack.c.h.b16 %v970
    %v2507 = vunpack.c.l.b16 %v971
    %v2508 = vunpack.c.h.b16 %v971
    %v2509 = vunpack.c.l.b16 %v972
    %v2510 = vunpack.c.h.b16 %v972
    %v2511 = vunpack.c.l.b16 %v973
    %v2512 = vunpack.c.h.b16 %v973
    %v2513 = vunpack.c.l.b16 %v974
    %v2514 = vunpack.c.h.b16 %v974
    %v2515 = vunpack.c.l.b16 %v975
    %v2516 = vunpack.c.h.b16 %v975
    %v2517 = vunpack.c.l.b16 %v976
    %v2518 = vunpack.c.h.b16 %v976
    %v2519 = vunpack.c.l.b16 %v977
    %v2520 = vunpack.c.h.b16 %v977
    %v2521 = vunpack.c.l.b16 %v978
    %v2522 = vunpack.c.h.b16 %v978
    %v2523 = vunpack.c.l.b16 %v979
    %v2524 = vunpack.c.h.b16 %v979
    %v2525 = vunpack.c.l.b16 %v980
    %v2526 = vunpack.c.h.b16 %v980
    %v2527 = vunpack.c.l.b16 %v981
    %v2528 = vunpack.c.h.b16 %v981
    %v2529 = vunpack.c.l.b16 %v982
    %v2530 = vunpack.c.h.b16 %v982
    %v2531 = vunpack.c.l.b16 %v983
    %v2532 = vunpack.c.h.b16 %v983
    %v2533 = vunpack.c.l.b16 %v984
    %v2534 = vunpack.c.h.b16 %v984
    %v2535 = vunpack.c.l.b16 %v985
    %v2536 = vunpack.c.h.b16 %v985
    %v2537 = vunpack.c.l.b16 %v986
    %v2538 = vunpack.c.h.b16 %v986
    %v2539 = vunpack.c.l.b16 %v987
    %v2540 = vunpack.c.h.b16 %v987
    %v2541 = vunpack.c.l.b16 %v988
    %v2542 = vunpack.c.h.b16 %v988
    %v2543 = vunpack.c.l.b16 %v989
    %v2544 = vunpack.c.h.b16 %v989
    %v2545 = vunpack.c.l.b16 %v990
    %v2546 = vunpack.c.h.b16 %v990
    %v2547 = vunpack.c.l.b16 %v991
    %v2548 = vunpack.c.h.b16 %v991
    %v2549 = vunpack.c.l.b16 %v992
    %v2550 = vunpack.c.h.b16 %v992
    %v2551 = vunpack.c.l.b16 %v993
    %v2552 = vunpack.c.h.b16 %v993
    %v2553 = vunpack.c.l.b16 %v994
    %v2554 = vunpack.c.h.b16 %v994
    %v2555 = vunpack.c.l.b16 %v995
    %v2556 = vunpack.c.h.b16 %v995
    %v2557 = vunpack.c.l.b16 %v996
    %v2558 = vunpack.c.h.b16 %v996
    %v2559 = vunpack.c.l.b16 %v997
    %v2560 = vunpack.c.h.b16 %v997
    %v2561 = vunpack.c.l.b16 %v998
    %v2562 = vunpack.c.h.b16 %v998
    %v2563 = vunpack.c.l.b16 %v999
    %v2564 = vunpack.c.h.b16 %v999
    %v2565 = vunpack.c.l.b16 %v1000
    %v2566 = vunpack.c.h.b16 %v1000
    %v2567 = vunpack.c.l.b16 %v1001
    %v2568 = vunpack.c.h.b16 %v1001
    %v2569 = vunpack.c.l.b16 %v1002
    %v2570 = vunpack.c.h.b16 %v1002
    %v2571 = vunpack.c.l.b16 %v1003
    %v2572 = vunpack.c.h.b16 %v1003
    %v2573 = vunpack.c.l.b16 %v1004
    %v2574 = vunpack.c.h.b16 %v1004
    %v2575 = vunpack.c.l.b16 %v1005
    %v2576 = vunpack.c.h.b16 %v1005
    %v2577 = vunpack.c.l.b16 %v1006
    %v2578 = vunpack.c.h.b16 %v1006
    %v2579 = vunpack.c.l.b16 %v1007
    %v2580 = vunpack.c.h.b16 %v1007
    %v2581 = vunpack.c.l.b16 %v1008
    %v2582 = vunpack.c.h.b16 %v1008
    %v2583 = vunpack.c.l.b16 %v1009
    %v2584 = vunpack.c.h.b16 %v1009
    %v2585 = vunpack.c.l.b16 %v1010
    %v2586 = vunpack.c.h.b16 %v1010
    %v2587 = vunpack.c.l.b16 %v1011
    %v2588 = vunpack.c.h.b16 %v1011
    %v2589 = vunpack.c.l.b16 %v1012
    %v2590 = vunpack.c.h.b16 %v1012
    %v2591 = vpack.c.b16 %v1575, %v1567
    %v2592 = vpack.c.b16 %v1576, %v1568
    %v2593 = vpack.c.b16 %v1577, %v1569
    %v2594 = vpack.c.b16 %v1578, %v1570
    %v2595 = vpack.c.b16 %v1579, %v1571
    %v2596 = vpack.c.b16 %v1580, %v1572
    %v2597 = vpack.c.b16 %v1581, %v1573
    %v2598 = vpack.c.b16 %v1582, %v1574
    %v2599 = vpack.c.b16 %v1591, %v1583
    %v2600 = vpack.c.b16 %v1592, %v1584
    %v2601 = vpack.c.b16 %v1593, %v1585
    %v2602 = vpack.c.b16 %v1594, %v1586
    %v2603 = vpack.c.b16 %v1595, %v1587
    %v2604 = vpack.c.b16 %v1596, %v1588
    %v2605 = vpack.c.b16 %v1597, %v1589
    %v2606 = vpack.c.b16 %v1598, %v1590
    %v2607 = vpack.c.b16 %v1607, %v1599
    %v2608 = vpack.c.b16 %v1608, %v1600
    %v2609 = vpack.c.b16 %v1609, %v1601
    %v2610 = vpack.c.b16 %v1610, %v1602
    %v2611 = vpack.c.b16 %v1611, %v1603
    %v2612 = vpack.c.b16 %v1612, %v1604
    %v2613 = vpack.c.b16 %v1613, %v1605
    %v2614 = vpack.c.b16 %v1614, %v1606
    %v2615 = vpack.c.b16 %v1623, %v1615
    %v2616 = vpack.c.b16 %v1624, %v1616
    %v2617 = vpack.c.b16 %v1625, %v1617
    %v2618 = vpack.c.b16 %v1626, %v1618
    %v2619 = vpack.c.b16 %v1627, %v1619
    %v2620 = vpack.c.b16 %v1628, %v1620
    %v2621 = vpack.c.b16 %v1629, %v1621
    %v2622 = vpack.c.b16 %v1630, %v1622
    %v2623 = vpack.c.b16 %v1639, %v1631
    %v2624 = vpack.c.b16 %v1640, %v1632
    %v2625 = vpack.c.b16 %v1641, %v1633
    %v2626 = vpack.c.b16 %v1642, %v1634
    %v2627 = vpack.c.b16 %v1643, %v1635
    %v2628 = vpack.c.b16 %v1644, %v1636
    %v2629 = vpack.c.b16 %v1645, %v1637
    %v2630 = vpack.c.b16 %v1646, %v1638
    %v2631 = vpack.c.b16 %v1655, %v1647
    %v2632 = vpack.c.b16 %v1656, %v1648
    %v2633 = vpack.c.b16 %v1657, %v1649
    %v2634 = vpack.c.b16 %v1658, %v1650
    %v2635 = vpack.c.b16 %v1659, %v1651
    %v2636 = vpack.c.b16 %v1660, %v1652
    %v2637 = vpack.c.b16 %v1661, %v1653
    %v2638 = vpack.c.b16 %v1662, %v1654
    %v2639 = vpack.c.b16 %v1671, %v1663
    %v2640 = vpack.c.b16 %v1672, %v1664
    %v2641 = vpack.c.b16 %v1673, %v1665
    %v2642 = vpack.c.b16 %v1674, %v1666
    %v2643 = vpack.c.b16 %v1675, %v1667
    %v2644 = vpack.c.b16 %v1676, %v1668
    %v2645 = vpack.c.b16 %v1677, %v1669
    %v2646 = vpack.c.b16 %v1678, %v1670
    %v2647 = vpack.c.b16 %v1687, %v1679
    %v2648 = vpack.c.b16 %v1688, %v1680
    %v2649 = vpack.c.b16 %v1689, %v1681
    %v2650 = vpack.c.b16 %v1690, %v1682
    %v2651 = vpack.c.b16 %v1691, %v1683
    %v2652 = vpack.c.b16 %v1692, %v1684
    %v2653 = vpack.c.b16 %v1693, %v1685
    %v2654 = vpack.c.b16 %v1694, %v1686
    %v2655 = vpack.c.b16 %v1703, %v1695
    %v2656 = vpack.c.b16 %v1704, %v1696
    %v2657 = vpack.c.b16 %v1705, %v1697
    %v2658 = vpack.c.b16 %v1706, %v1698
    %v2659 = vpack.c.b16 %v1707, %v1699
    %v2660 = vpack.c.b16 %v1708, %v1700
    %v2661 = vpack.c.b16 %v1709, %v1701
    %v2662 = vpack.c.b16 %v1710, %v1702
    %v2663 = vpack.c.b16 %v1719, %v1711
    %v2664 = vpack.c.b16 %v1720, %v1712
    %v2665 = vpack.c.b16 %v1721, %v1713
    %v2666 = vpack.c.b16 %v1722, %v1714
    %v2667 = vpack.c.b16 %v1723, %v1715
    %v2668 = vpack.c.b16 %v1724, %v1716
    %v2669 = vpack.c.b16 %v1725, %v1717
    %v2670 = vpack.c.b16 %v1726, %v1718
    %v2671 = vpack.c.b16 %v1735, %v1727
    %v2672 = vpack.c.b16 %v1736, %v1728
    %v2673 = vpack.c.b16 %v1737, %v1729
    %v2674 = vpack.c.b16 %v1738, %v1730
    %v2675 = vpack.c.b16 %v1739, %v1731
    %v2676 = vpack.c.b16 %v1740, %v1732
    %v2677 = vpack.c.b16 %v1741, %v1733
    %v2678 = vpack.c.b16 %v1742, %v1734
    %v2679 = vpack.c.b16 %v1751, %v1743
    %v2680 = vpack.c.b16 %v1752, %v1744
    %v2681 = vpack.c.b16 %v1753, %v1745
    %v2682 = vpack.c.b16 %v1754, %v1746
    %v2683 = vpack.c.b16 %v1755, %v1747
    %v2684 = vpack.c.b16 %v1756, %v1748
    %v2685 = vpack.c.b16 %v1757, %v1749
    %v2686 = vpack.c.b16 %v1758, %v1750
    %v2687 = vpack.c.b16 %v1767, %v1759
    %v2688 = vpack.c.b16 %v1768, %v1760
    %v2689 = vpack.c.b16 %v1769, %v1761
    %v2690 = vpack.c.b16 %v1770, %v1762
    %v2691 = vpack.c.b16 %v1771, %v1763
    %v2692 = vpack.c.b16 %v1772, %v1764
    %v2693 = vpack.c.b16 %v1773, %v1765
    %v2694 = vpack.c.b16 %v1774, %v1766
    %v2695 = vpack.c.b16 %v1783, %v1775
    %v2696 = vpack.c.b16 %v1784, %v1776
    %v2697 = vpack.c.b16 %v1785, %v1777
    %v2698 = vpack.c.b16 %v1786, %v1778
    %v2699 = vpack.c.b16 %v1787, %v1779
    %v2700 = vpack.c.b16 %v1788, %v1780
    %v2701 = vpack.c.b16 %v1789, %v1781
    %v2702 = vpack.c.b16 %v1790, %v1782
    %v2703 = vpack.c.b16 %v1799, %v1791
    %v2704 = vpack.c.b16 %v1800, %v1792
    %v2705 = vpack.c.b16 %v1801, %v1793
    %v2706 = vpack.c.b16 %v1802, %v1794
    %v2707 = vpack.c.b16 %v1803, %v1795
    %v2708 = vpack.c.b16 %v1804, %v1796
    %v2709 = vpack.c.b16 %v1805, %v1797
    %v2710 = vpack.c.b16 %v1806, %v1798
    %v2711 = vpack.c.b16 %v1815, %v1807
    %v2712 = vpack.c.b16 %v1816, %v1808
    %v2713 = vpack.c.b16 %v1817, %v1809
    %v2714 = vpack.c.b16 %v1818, %v1810
    %v2715 = vpack.c.b16 %v1819, %v1811
    %v2716 = vpack.c.b16 %v1820, %v1812
    %v2717 = vpack.c.b16 %v1821, %v1813
    %v2718 = vpack.c.b16 %v1822, %v1814
    %v2719 = vpack.c.b16 %v1831, %v1823
    %v2720 = vpack.c.b16 %v1832, %v1824
    %v2721 = vpack.c.b16 %v1833, %v1825
    %v2722 = vpack.c.b16 %v1834, %v1826
    %v2723 = vpack.c.b16 %v1835, %v1827
    %v2724 = vpack.c.b16 %v1836, %v1828
    %v2725 = vpack.c.b16 %v1837, %v1829
    %v2726 = vpack.c.b16 %v1838, %v1830
    %v2727 = vpack.c.b16 %v1847, %v1839
    %v2728 = vpack.c.b16 %v1848, %v1840
    %v2729 = vpack.c.b16 %v1849, %v1841
    %v2730 = vpack.c.b16 %v1850, %v1842
    %v2731 = vpack.c.b16 %v1851, %v1843
    %v2732 = vpack.c.b16 %v1852, %v1844
    %v2733 = vpack.c.b16 %v1853, %v1845
    %v2734 = vpack.c.b16 %v1854, %v1846
    %v2735 = vpack.c.b16 %v1863, %v1855
    %v2736 = vpack.c.b16 %v1864, %v1856
    %v2737 = vpack.c.b16 %v1865, %v1857
    %v2738 = vpack.c.b16 %v1866, %v1858
    %v2739 = vpack.c.b16 %v1867, %v1859
    %v2740 = vpack.c.b16 %v1868, %v1860
    %v2741 = vpack.c.b16 %v1869, %v1861
    %v2742 = vpack.c.b16 %v1870, %v1862
    %v2743 = vpack.c.b16 %v1879, %v1871
    %v2744 = vpack.c.b16 %v1880, %v1872
    %v2745 = vpack.c.b16 %v1881, %v1873
    %v2746 = vpack.c.b16 %v1882, %v1874
    %v2747 = vpack.c.b16 %v1883, %v1875
    %v2748 = vpack.c.b16 %v1884, %v1876
    %v2749 = vpack.c.b16 %v1885, %v1877
    %v2750 = vpack.c.b16 %v1886, %v1878
    %v2751 = vpack.c.b16 %v1895, %v1887
    %v2752 = vpack.c.b16 %v1896, %v1888
    %v2753 = vpack.c.b16 %v1897, %v1889
    %v2754 = vpack.c.b16 %v1898, %v1890
    %v2755 = vpack.c.b16 %v1899, %v1891
    %v2756 = vpack.c.b16 %v1900, %v1892
    %v2757 = vpack.c.b16 %v1901, %v1893
    %v2758 = vpack.c.b16 %v1902, %v1894
    %v2759 = vpack.c.b16 %v1911, %v1903
    %v2760 = vpack.c.b16 %v1912, %v1904
    %v2761 = vpack.c.b16 %v1913, %v1905
    %v2762 = vpack.c.b16 %v1914, %v1906
    %v2763 = vpack.c.b16 %v1915, %v1907
    %v2764 = vpack.c.b16 %v1916, %v1908
    %v2765 = vpack.c.b16 %v1917, %v1909
    %v2766 = vpack.c.b16 %v1918, %v1910
    %v2767 = vpack.c.b16 %v1927, %v1919
    %v2768 = vpack.c.b16 %v1928, %v1920
    %v2769 = vpack.c.b16 %v1929, %v1921
    %v2770 = vpack.c.b16 %v1930, %v1922
    %v2771 = vpack.c.b16 %v1931, %v1923
    %v2772 = vpack.c.b16 %v1932, %v1924
    %v2773 = vpack.c.b16 %v1933, %v1925
    %v2774 = vpack.c.b16 %v1934, %v1926
    %v2775 = vpack.c.b16 %v1943, %v1935
    %v2776 = vpack.c.b16 %v1944, %v1936
    %v2777 = vpack.c.b16 %v1945, %v1937
    %v2778 = vpack.c.b16 %v1946, %v1938
    %v2779 = vpack.c.b16 %v1947, %v1939
    %v2780 = vpack.c.b16 %v1948, %v1940
    %v2781 = vpack.c.b16 %v1949, %v1941
    %v2782 = vpack.c.b16 %v1950, %v1942
    %v2783 = vpack.c.b16 %v1959, %v1951
    %v2784 = vpack.c.b16 %v1960, %v1952
    %v2785 = vpack.c.b16 %v1961, %v1953
    %v2786 = vpack.c.b16 %v1962, %v1954
    %v2787 = vpack.c.b16 %v1963, %v1955
    %v2788 = vpack.c.b16 %v1964, %v1956
    %v2789 = vpack.c.b16 %v1965, %v1957
    %v2790 = vpack.c.b16 %v1966, %v1958
    %v2791 = vpack.c.b16 %v1975, %v1967
    %v2792 = vpack.c.b16 %v1976, %v1968
    %v2793 = vpack.c.b16 %v1977, %v1969
    %v2794 = vpack.c.b16 %v1978, %v1970
    %v2795 = vpack.c.b16 %v1979, %v1971
    %v2796 = vpack.c.b16 %v1980, %v1972
    %v2797 = vpack.c.b16 %v1981, %v1973
    %v2798 = vpack.c.b16 %v1982, %v1974
    %v2799 = vpack.c.b16 %v1991, %v1983
    %v2800 = vpack.c.b16 %v1992, %v1984
    %v2801 = vpack.c.b16 %v1993, %v1985
    %v2802 = vpack.c.b16 %v1994, %v1986
    %v2803 = vpack.c.b16 %v1995, %v1987
    %v2804 = vpack.c.b16 %v1996, %v1988
    %v2805 = vpack.c.b16 %v1997, %v1989
    %v2806 = vpack.c.b16 %v1998, %v1990
    %v2807 = vpack.c.b16 %v2007, %v1999
    %v2808 = vpack.c.b16 %v2008, %v2000
    %v2809 = vpack.c.b16 %v2009, %v2001
    %v2810 = vpack.c.b16 %v2010, %v2002
    %v2811 = vpack.c.b16 %v2011, %v2003
    %v2812 = vpack.c.b16 %v2012, %v2004
    %v2813 = vpack.c.b16 %v2013, %v2005
    %v2814 = vpack.c.b16 %v2014, %v2006
    %v2815 = vpack.c.b16 %v2023, %v2015
    %v2816 = vpack.c.b16 %v2024, %v2016
    %v2817 = vpack.c.b16 %v2025, %v2017
    %v2818 = vpack.c.b16 %v2026, %v2018
    %v2819 = vpack.c.b16 %v2027, %v2019
    %v2820 = vpack.c.b16 %v2028, %v2020
    %v2821 = vpack.c.b16 %v2029, %v2021
    %v2822 = vpack.c.b16 %v2030, %v2022
    %v2823 = vpack.c.b16 %v2039, %v2031
    %v2824 = vpack.c.b16 %v2040, %v2032
    %v2825 = vpack.c.b16 %v2041, %v2033
    %v2826 = vpack.c.b16 %v2042, %v2034
    %v2827 = vpack.c.b16 %v2043, %v2035
    %v2828 = vpack.c.b16 %v2044, %v2036
    %v2829 = vpack.c.b16 %v2045, %v2037
    %v2830 = vpack.c.b16 %v2046, %v2038
    %v2831 = vpack.c.b16 %v2055, %v2047
    %v2832 = vpack.c.b16 %v2056, %v2048
    %v2833 = vpack.c.b16 %v2057, %v2049
    %v2834 = vpack.c.b16 %v2058, %v2050
    %v2835 = vpack.c.b16 %v2059, %v2051
    %v2836 = vpack.c.b16 %v2060, %v2052
    %v2837 = vpack.c.b16 %v2061, %v2053
    %v2838 = vpack.c.b16 %v2062, %v2054
    %v2839 = vpack.c.b16 %v2071, %v2063
    %v2840 = vpack.c.b16 %v2072, %v2064
    %v2841 = vpack.c.b16 %v2073, %v2065
    %v2842 = vpack.c.b16 %v2074, %v2066
    %v2843 = vpack.c.b16 %v2075, %v2067
    %v2844 = vpack.c.b16 %v2076, %v2068
    %v2845 = vpack.c.b16 %v2077, %v2069
    %v2846 = vpack.c.b16 %v2078, %v2070
    %v2847 = vpack.c.b16 %v2087, %v2079
    %v2848 = vpack.c.b16 %v2088, %v2080
    %v2849 = vpack.c.b16 %v2089, %v2081
    %v2850 = vpack.c.b16 %v2090, %v2082
    %v2851 = vpack.c.b16 %v2091, %v2083
    %v2852 = vpack.c.b16 %v2092, %v2084
    %v2853 = vpack.c.b16 %v2093, %v2085
    %v2854 = vpack.c.b16 %v2094, %v2086
    %v2855 = vpack.c.b16 %v2103, %v2095
    %v2856 = vpack.c.b16 %v2104, %v2096
    %v2857 = vpack.c.b16 %v2105, %v2097
    %v2858 = vpack.c.b16 %v2106, %v2098
    %v2859 = vpack.c.b16 %v2107, %v2099
    %v2860 = vpack.c.b16 %v2108, %v2100
    %v2861 = vpack.c.b16 %v2109, %v2101
    %v2862 = vpack.c.b16 %v2110, %v2102
    %v2863 = vpack.c.b16 %v2119, %v2111
    %v2864 = vpack.c.b16 %v2120, %v2112
    %v2865 = vpack.c.b16 %v2121, %v2113
    %v2866 = vpack.c.b16 %v2122, %v2114
    %v2867 = vpack.c.b16 %v2123, %v2115
    %v2868 = vpack.c.b16 %v2124, %v2116
    %v2869 = vpack.c.b16 %v2125, %v2117
    %v2870 = vpack.c.b16 %v2126, %v2118
    %v2871 = vpack.c.b16 %v2135, %v2127
    %v2872 = vpack.c.b16 %v2136, %v2128
    %v2873 = vpack.c.b16 %v2137, %v2129
    %v2874 = vpack.c.b16 %v2138, %v2130
    %v2875 = vpack.c.b16 %v2139, %v2131
    %v2876 = vpack.c.b16 %v2140, %v2132
    %v2877 = vpack.c.b16 %v2141, %v2133
    %v2878 = vpack.c.b16 %v2142, %v2134
    %v2879 = vpack.c.b16 %v2151, %v2143
    %v2880 = vpack.c.b16 %v2152, %v2144
    %v2881 = vpack.c.b16 %v2153, %v2145
    %v2882 = vpack.c.b16 %v2154, %v2146
    %v2883 = vpack.c.b16 %v2155, %v2147
    %v2884 = vpack.c.b16 %v2156, %v2148
    %v2885 = vpack.c.b16 %v2157, %v2149
    %v2886 = vpack.c.b16 %v2158, %v2150
    %v2887 = vpack.c.b16 %v2167, %v2159
    %v2888 = vpack.c.b16 %v2168, %v2160
    %v2889 = vpack.c.b16 %v2169, %v2161
    %v2890 = vpack.c.b16 %v2170, %v2162
    %v2891 = vpack.c.b16 %v2171, %v2163
    %v2892 = vpack.c.b16 %v2172, %v2164
    %v2893 = vpack.c.b16 %v2173, %v2165
    %v2894 = vpack.c.b16 %v2174, %v2166
    %v2895 = vpack.c.b16 %v2183, %v2175
    %v2896 = vpack.c.b16 %v2184, %v2176
    %v2897 = vpack.c.b16 %v2185, %v2177
    %v2898 = vpack.c.b16 %v2186, %v2178
    %v2899 = vpack.c.b16 %v2187, %v2179
    %v2900 = vpack.c.b16 %v2188, %v2180
    %v2901 = vpack.c.b16 %v2189, %v2181
    %v2902 = vpack.c.b16 %v2190, %v2182
    %v2903 = vpack.c.b16 %v2199, %v2191
    %v2904 = vpack.c.b16 %v2200, %v2192
    %v2905 = vpack.c.b16 %v2201, %v2193
    %v2906 = vpack.c.b16 %v2202, %v2194
    %v2907 = vpack.c.b16 %v2203, %v2195
    %v2908 = vpack.c.b16 %v2204, %v2196
    %v2909 = vpack.c.b16 %v2205, %v2197
    %v2910 = vpack.c.b16 %v2206, %v2198
    %v2911 = vpack.c.b16 %v2215, %v2207
    %v2912 = vpack.c.b16 %v2216, %v2208
    %v2913 = vpack.c.b16 %v2217, %v2209
    %v2914 = vpack.c.b16 %v2218, %v2210
    %v2915 = vpack.c.b16 %v2219, %v2211
    %v2916 = vpack.c.b16 %v2220, %v2212
    %v2917 = vpack.c.b16 %v2221, %v2213
    %v2918 = vpack.c.b16 %v2222, %v2214
    %v2919 = vpack.c.b16 %v2231, %v2223
    %v2920 = vpack.c.b16 %v2232, %v2224
    %v2921 = vpack.c.b16 %v2233, %v2225
    %v2922 = vpack.c.b16 %v2234, %v2226
    %v2923 = vpack.c.b16 %v2235, %v2227
    %v2924 = vpack.c.b16 %v2236, %v2228
    %v2925 = vpack.c.b16 %v2237, %v2229
    %v2926 = vpack.c.b16 %v2238, %v2230
    %v2927 = vpack.c.b16 %v2247, %v2239
    %v2928 = vpack.c.b16 %v2248, %v2240
    %v2929 = vpack.c.b16 %v2249, %v2241
    %v2930 = vpack.c.b16 %v2250, %v2242
    %v2931 = vpack.c.b16 %v2251, %v2243
    %v2932 = vpack.c.b16 %v2252, %v2244
    %v2933 = vpack.c.b16 %v2253, %v2245
    %v2934 = vpack.c.b16 %v2254, %v2246
    %v2935 = vpack.c.b16 %v2263, %v2255
    %v2936 = vpack.c.b16 %v2264, %v2256
    %v2937 = vpack.c.b16 %v2265, %v2257
    %v2938 = vpack.c.b16 %v2266, %v2258
    %v2939 = vpack.c.b16 %v2267, %v2259
    %v2940 = vpack.c.b16 %v2268, %v2260
    %v2941 = vpack.c.b16 %v2269, %v2261
    %v2942 = vpack.c.b16 %v2270, %v2262
    %v2943 = vpack.c.b16 %v2279, %v2271
    %v2944 = vpack.c.b16 %v2280, %v2272
    %v2945 = vpack.c.b16 %v2281, %v2273
    %v2946 = vpack.c.b16 %v2282, %v2274
    %v2947 = vpack.c.b16 %v2283, %v2275
    %v2948 = vpack.c.b16 %v2284, %v2276
    %v2949 = vpack.c.b16 %v2285, %v2277
    %v2950 = vpack.c.b16 %v2286, %v2278
    %v2951 = vpack.c.b16 %v2295, %v2287
    %v2952 = vpack.c.b16 %v2296, %v2288
    %v2953 = vpack.c.b16 %v2297, %v2289
    %v2954 = vpack.c.b16 %v2298, %v2290
    %v2955 = vpack.c.b16 %v2299, %v2291
    %v2956 = vpack.c.b16 %v2300, %v2292
    %v2957 = vpack.c.b16 %v2301, %v2293
    %v2958 = vpack.c.b16 %v2302, %v2294
    %v2959 = vpack.c.b16 %v2311, %v2303
    %v2960 = vpack.c.b16 %v2312, %v2304
    %v2961 = vpack.c.b16 %v2313, %v2305
    %v2962 = vpack.c.b16 %v2314, %v2306
    %v2963 = vpack.c.b16 %v2315, %v2307
    %v2964 = vpack.c.b16 %v2316, %v2308
    %v2965 = vpack.c.b16 %v2317, %v2309
    %v2966 = vpack.c.b16 %v2318, %v2310
    %v2967 = vpack.c.b16 %v2327, %v2319
    %v2968 = vpack.c.b16 %v2328, %v2320
    %v2969 = vpack.c.b16 %v2329, %v2321
    %v2970 = vpack.c.b16 %v2330, %v2322
    %v2971 = vpack.c.b16 %v2331, %v2323
    %v2972 = vpack.c.b16 %v2332, %v2324
    %v2973 = vpack.c.b16 %v2333, %v2325
    %v2974 = vpack.c.b16 %v2334, %v2326
    %v2975 = vpack.c.b16 %v2343, %v2335
    %v2976 = vpack.c.b16 %v2344, %v2336
    %v2977 = vpack.c.b16 %v2345, %v2337
    %v2978 = vpack.c.b16 %v2346, %v2338
    %v2979 = vpack.c.b16 %v2347, %v2339
    %v2980 = vpack.c.b16 %v2348, %v2340
    %v2981 = vpack.c.b16 %v2349, %v2341
    %v2982 = vpack.c.b16 %v2350, %v2342
    %v2983 = vpack.c.b16 %v2359, %v2351
    %v2984 = vpack.c.b16 %v2360, %v2352
    %v2985 = vpack.c.b16 %v2361, %v2353
    %v2986 = vpack.c.b16 %v2362, %v2354
    %v2987 = vpack.c.b16 %v2363, %v2355
    %v2988 = vpack.c.b16 %v2364, %v2356
    %v2989 = vpack.c.b16 %v2365, %v2357
    %v2990 = vpack.c.b16 %v2366, %v2358
    %v2991 = vpack.c.b16 %v2375, %v2367
    %v2992 = vpack.c.b16 %v2376, %v2368
    %v2993 = vpack.c.b16 %v2377, %v2369
    %v2994 = vpack.c.b16 %v2378, %v2370
    %v2995 = vpack.c.b16 %v2379, %v2371
    %v2996 = vpack.c.b16 %v2380, %v2372
    %v2997 = vpack.c.b16 %v2381, %v2373
    %v2998 = vpack.c.b16 %v2382, %v2374
    %v2999 = vpack.c.b16 %v2391, %v2383
    %v3000 = vpack.c.b16 %v2392, %v2384
    %v3001 = vpack.c.b16 %v2393, %v2385
    %v3002 = vpack.c.b16 %v2394, %v2386
    %v3003 = vpack.c.b16 %v2395, %v2387
    %v3004 = vpack.c.b16 %v2396, %v2388
    %v3005 = vpack.c.b16 %v2397, %v2389
    %v3006 = vpack.c.b16 %v2398, %v2390
    %v3007 = vpack.c.b16 %v2407, %v2399
    %v3008 = vpack.c.b16 %v2408, %v2400
    %v3009 = vpack.c.b16 %v2409, %v2401
    %v3010 = vpack.c.b16 %v2410, %v2402
    %v3011 = vpack.c.b16 %v2411, %v2403
    %v3012 = vpack.c.b16 %v2412, %v2404
    %v3013 = vpack.c.b16 %v2413, %v2405
    %v3014 = vpack.c.b16 %v2414, %v2406
    %v3015 = vpack.c.b16 %v2423, %v2415
    %v3016 = vpack.c.b16 %v2424, %v2416
    %v3017 = vpack.c.b16 %v2425, %v2417
    %v3018 = vpack.c.b16 %v2426, %v2418
    %v3019 = vpack.c.b16 %v2427, %v2419
    %v3020 = vpack.c.b16 %v2428, %v2420
    %v3021 = vpack.c.b16 %v2429, %v2421
    %v3022 = vpack.c.b16 %v2430, %v2422
    %v3023 = vpack.c.b16 %v2439, %v2431
    %v3024 = vpack.c.b16 %v2440, %v2432
    %v3025 = vpack.c.b16 %v2441, %v2433
    %v3026 = vpack.c.b16 %v2442, %v2434
    %v3027 = vpack.c.b16 %v2443, %v2435
    %v3028 = vpack.c.b16 %v2444, %v2436
    %v3029 = vpack.c.b16 %v2445, %v2437
    %v3030 = vpack.c.b16 %v2446, %v2438
    %v3031 = vpack.c.b16 %v2455, %v2447
    %v3032 = vpack.c.b16 %v2456, %v2448
    %v3033 = vpack.c.b16 %v2457, %v2449
    %v3034 = vpack.c.b16 %v2458, %v2450
    %v3035 = vpack.c.b16 %v2459, %v2451
    %v3036 = vpack.c.b16 %v2460, %v2452
    %v3037 = vpack.c.b16 %v2461, %v2453
    %v3038 = vpack.c.b16 %v2462, %v2454
    %v3039 = vpack.c.b16 %v2471, %v2463
    %v3040 = vpack.c.b16 %v2472, %v2464
    %v3041 = vpack.c.b16 %v2473, %v2465
    %v3042 = vpack.c.b16 %v2474, %v2466
    %v3043 = vpack.c.b16 %v2475, %v2467
    %v3044 = vpack.c.b16 %v2476, %v2468
    %v3045 = vpack.c.b16 %v2477, %v2469
    %v3046 = vpack.c.b16 %v2478, %v2470
    %v3047 = vpack.c.b16 %v2487, %v2479
    %v3048 = vpack.c.b16 %v2488, %v2480
    %v3049 = vpack.c.b16 %v2489, %v2481
    %v3050 = vpack.c.b16 %v2490, %v2482
    %v3051 = vpack.c.b16 %v2491, %v2483
    %v3052 = vpack.c.b16 %v2492, %v2484
    %v3053 = vpack.c.b16 %v2493, %v2485
    %v3054 = vpack.c.b16 %v2494, %v2486
    %v3055 = vpack.c.b16 %v2503, %v2495
    %v3056 = vpack.c.b16 %v2504, %v2496
    %v3057 = vpack.c.b16 %v2505, %v2497
    %v3058 = vpack.c.b16 %v2506, %v2498
    %v3059 = vpack.c.b16 %v2507, %v2499
    %v3060 = vpack.c.b16 %v2508, %v2500
    %v3061 = vpack.c.b16 %v2509, %v2501
    %v3062 = vpack.c.b16 %v2510, %v2502
    %v3063 = vpack.c.b16 %v2519, %v2511
    %v3064 = vpack.c.b16 %v2520, %v2512
    %v3065 = vpack.c.b16 %v2521, %v2513
    %v3066 = vpack.c.b16 %v2522, %v2514
    %v3067 = vpack.c.b16 %v2523, %v2515
    %v3068 = vpack.c.b16 %v2524, %v2516
    %v3069 = vpack.c.b16 %v2525, %v2517
    %v3070 = vpack.c.b16 %v2526, %v2518
    %v3071 = vpack.c.b16 %v2535, %v2527
    %v3072 = vpack.c.b16 %v2536, %v2528
    %v3073 = vpack.c.b16 %v2537, %v2529
    %v3074 = vpack.c.b16 %v2538, %v2530
    %v3075 = vpack.c.b16 %v2539, %v2531
    %v3076 = vpack.c.b16 %v2540, %v2532
    %v3077 = vpack.c.b16 %v2541, %v2533
    %v3078 = vpack.c.b16 %v2542, %v2534
    %v3079 = vpack.c.b16 %v2551, %v2543
    %v3080 = vpack.c.b16 %v2552, %v2544
    %v3081 = vpack.c.b16 %v2553, %v2545
    %v3082 = vpack.c.b16 %v2554, %v2546
    %v3083 = vpack.c.b16 %v2555, %v2547
    %v3084 = vpack.c.b16 %v2556, %v2548
    %v3085 = vpack.c.b16 %v2557, %v2549
    %v3086 = vpack.c.b16 %v2558, %v2550
    %v3087 = vpack.c.b16 %v2567, %v2559
    %v3088 = vpack.c.b16 %v2568, %v2560
    %v3089 = vpack.c.b16 %v2569, %v2561
    %v3090 = vpack.c.b16 %v2570, %v2562
    %v3091 = vpack.c.b16 %v2571, %v2563
    %v3092 = vpack.c.b16 %v2572, %v2564
    %v3093 = vpack.c.b16 %v2573, %v2565
    %v3094 = vpack.c.b16 %v2574, %v2566
    %v3095 = vpack.c.b16 %v2583, %v2575
    %v3096 = vpack.c.b16 %v2584, %v2576
    %v3097 = vpack.c.b16 %v2585, %v2577
    %v3098 = vpack.c.b16 %v2586, %v2578
    %v3099 = vpack.c.b16 %v2587, %v2579
    %v3100 = vpack.c.b16 %v2588, %v2580
    %v3101 = vpack.c.b16 %v2589, %v2581
    %v3102 = vpack.c.b16 %v2590, %v2582
    %3615 = vmatprep.subr.bf16.mxu0 %v2592
    %3616 = vmatpush1.bf16.msra.mxu0 %v2591
    %3617 = vmatprep.subr.bf16.mxu0 %v2600
    %3618 = vmatpush1.bf16.msra.mxu0 %v2599
    %3619 = vmatprep.subr.bf16.mxu0 %v2608
    %3620 = vmatpush1.bf16.msra.mxu0 %v2607
    %3621 = vmatprep.subr.bf16.mxu0 %v2616
    %3622 = vmatpush1.bf16.msra.mxu0 %v2615
    %3623 = vmatprep.subr.bf16.mxu0 %v2624
    %3624 = vmatpush1.bf16.msra.mxu0 %v2623
    %3625 = vmatprep.subr.bf16.mxu0 %v2632
    %3626 = vmatpush1.bf16.msra.mxu0 %v2631
    %3627 = vmatprep.subr.bf16.mxu0 %v2640
    %3628 = vmatpush1.bf16.msra.mxu0 %v2639
    %3629 = vmatprep.subr.bf16.mxu0 %v2648
    %3630 = vmatpush1.bf16.msra.mxu0 %v2647
    %3631 = vmatprep.subr.bf16.mxu0 %v2656
    %3632 = vmatpush1.bf16.msra.mxu0 %v2655
    %3633 = vmatprep.subr.bf16.mxu0 %v2664
    %3634 = vmatpush1.bf16.msra.mxu0 %v2663
    %3635 = vmatprep.subr.bf16.mxu0 %v2672
    %3636 = vmatpush1.bf16.msra.mxu0 %v2671
    %3637 = vmatprep.subr.bf16.mxu0 %v2680
    %3638 = vmatpush1.bf16.msra.mxu0 %v2679
    %3639 = vmatprep.subr.bf16.mxu0 %v2688
    %3640 = vmatpush1.bf16.msra.mxu0 %v2687
    %3641 = vmatprep.subr.bf16.mxu0 %v2696
    %3642 = vmatpush1.bf16.msra.mxu0 %v2695
    %3643 = vmatprep.subr.bf16.mxu0 %v2704
    %3644 = vmatpush1.bf16.msra.mxu0 %v2703
    %3645 = vmatprep.subr.bf16.mxu0 %v2712
    %3646 = vmatpush1.bf16.msra.mxu0 %v2711
    %3647 = vmatprep.mubr.bf16.mxu0 %v494
    %3648 = vmatmul.mubr.bf16.gmra.mrb[0].mxu0 %v493
    %v3649 = vpop.f32.mrb[0].mxu0
    %v3650 = vadd.f32 %v1018, %v3649
    %v3651 = vpop.f32.mrb[0].mxu0
    %v3652 = vadd.f32 %v1022, %v3651
    %v3653 = vpop.f32.mrb[0].mxu0
    %v3654 = vpop.f32.mrb[0].mxu0
    %3655 = vdwg.mxu0
    %3656 = vmatprep.subr.bf16.mxu0 %v2720
    %3657 = vmatpush1.bf16.msra.mxu0 %v2719
    %3658 = vmatprep.subr.bf16.mxu0 %v2728
    %3659 = vmatpush1.bf16.msra.mxu0 %v2727
    %3660 = vmatprep.subr.bf16.mxu0 %v2736
    %3661 = vmatpush1.bf16.msra.mxu0 %v2735
    %3662 = vmatprep.subr.bf16.mxu0 %v2744
    %3663 = vmatpush1.bf16.msra.mxu0 %v2743
    %3664 = vmatprep.subr.bf16.mxu0 %v2752
    %3665 = vmatpush1.bf16.msra.mxu0 %v2751
    %3666 = vmatprep.subr.bf16.mxu0 %v2760
    %3667 = vmatpush1.bf16.msra.mxu0 %v2759
    %3668 = vmatprep.subr.bf16.mxu0 %v2768
    %3669 = vmatpush1.bf16.msra.mxu0 %v2767
    %3670 = vmatprep.subr.bf16.mxu0 %v2776
    %3671 = vmatpush1.bf16.msra.mxu0 %v2775
    %3672 = vmatprep.subr.bf16.mxu0 %v2784
    %3673 = vmatpush1.bf16.msra.mxu0 %v2783
    %3674 = vmatprep.subr.bf16.mxu0 %v2792
    %3675 = vmatpush1.bf16.msra.mxu0 %v2791
    %3676 = vmatprep.subr.bf16.mxu0 %v2800
    %3677 = vmatpush1.bf16.msra.mxu0 %v2799
    %3678 = vmatprep.subr.bf16.mxu0 %v2808
    %3679 = vmatpush1.bf16.msra.mxu0 %v2807
    %3680 = vmatprep.subr.bf16.mxu0 %v2816
    %3681 = vmatpush1.bf16.msra.mxu0 %v2815
    %3682 = vmatprep.subr.bf16.mxu0 %v2824
    %3683 = vmatpush1.bf16.msra.mxu0 %v2823
    %3684 = vmatprep.subr.bf16.mxu0 %v2832
    %3685 = vmatpush1.bf16.msra.mxu0 %v2831
    %3686 = vmatprep.subr.bf16.mxu0 %v2840
    %3687 = vmatpush1.bf16.msra.mxu0 %v2839
    %3688 = vmatprep.mubr.bf16.mxu0 %v496
    %3689 = vmatmul.mubr.bf16.gmra.mrb[0].mxu0 %v495
    %v3690 = vpop.f32.mrb[0].mxu0
    %v3691 = vadd.f32 %v3650, %v3690
    %v3692 = vpop.f32.mrb[0].mxu0
    %v3693 = vadd.f32 %v3652, %v3692
    %v3694 = vpop.f32.mrb[0].mxu0
    %v3695 = vpop.f32.mrb[0].mxu0
    %3696 = vdwg.mxu0
    %3697 = vmatprep.subr.bf16.mxu0 %v2848
    %3698 = vmatpush1.bf16.msra.mxu0 %v2847
    %3699 = vmatprep.subr.bf16.mxu0 %v2856
    %3700 = vmatpush1.bf16.msra.mxu0 %v2855
    %3701 = vmatprep.subr.bf16.mxu0 %v2864
    %3702 = vmatpush1.bf16.msra.mxu0 %v2863
    %3703 = vmatprep.subr.bf16.mxu0 %v2872
    %3704 = vmatpush1.bf16.msra.mxu0 %v2871
    %3705 = vmatprep.subr.bf16.mxu0 %v2880
    %3706 = vmatpush1.bf16.msra.mxu0 %v2879
    %3707 = vmatprep.subr.bf16.mxu0 %v2888
    %3708 = vmatpush1.bf16.msra.mxu0 %v2887
    %3709 = vmatprep.subr.bf16.mxu0 %v2896
    %3710 = vmatpush1.bf16.msra.mxu0 %v2895
    %3711 = vmatprep.subr.bf16.mxu0 %v2904
    %3712 = vmatpush1.bf16.msra.mxu0 %v2903
    %3713 = vmatprep.subr.bf16.mxu0 %v2912
    %3714 = vmatpush1.bf16.msra.mxu0 %v2911
    %3715 = vmatprep.subr.bf16.mxu0 %v2920
    %3716 = vmatpush1.bf16.msra.mxu0 %v2919
    %3717 = vmatprep.subr.bf16.mxu0 %v2928
    %3718 = vmatpush1.bf16.msra.mxu0 %v2927
    %3719 = vmatprep.subr.bf16.mxu0 %v2936
    %3720 = vmatpush1.bf16.msra.mxu0 %v2935
    %3721 = vmatprep.subr.bf16.mxu0 %v2944
    %3722 = vmatpush1.bf16.msra.mxu0 %v2943
    %3723 = vmatprep.subr.bf16.mxu0 %v2952
    %3724 = vmatpush1.bf16.msra.mxu0 %v2951
    %3725 = vmatprep.subr.bf16.mxu0 %v2960
    %3726 = vmatpush1.bf16.msra.mxu0 %v2959
    %3727 = vmatprep.subr.bf16.mxu0 %v2968
    %3728 = vmatpush1.bf16.msra.mxu0 %v2967
    %3729 = vmatprep.mubr.bf16.mxu0 %v498
    %3730 = vmatmul.mubr.bf16.gmra.mrb[0].mxu0 %v497
    %v3731 = vpop.f32.mrb[0].mxu0
    %v3732 = vadd.f32 %v3691, %v3731
    %v3733 = vpop.f32.mrb[0].mxu0
    %v3734 = vadd.f32 %v3693, %v3733
    %v3735 = vpop.f32.mrb[0].mxu0
    %v3736 = vpop.f32.mrb[0].mxu0
    %3737 = vdwg.mxu0
    %3738 = vmatprep.subr.bf16.mxu0 %v2976
    %3739 = vmatpush1.bf16.msra.mxu0 %v2975
    %3740 = vmatprep.subr.bf16.mxu0 %v2984
    %3741 = vmatpush1.bf16.msra.mxu0 %v2983
    %3742 = vmatprep.subr.bf16.mxu0 %v2992
    %3743 = vmatpush1.bf16.msra.mxu0 %v2991
    %3744 = vmatprep.subr.bf16.mxu0 %v3000
    %3745 = vmatpush1.bf16.msra.mxu0 %v2999
    %3746 = vmatprep.subr.bf16.mxu0 %v3008
    %3747 = vmatpush1.bf16.msra.mxu0 %v3007
    %3748 = vmatprep.subr.bf16.mxu0 %v3016
    %3749 = vmatpush1.bf16.msra.mxu0 %v3015
    %3750 = vmatprep.subr.bf16.mxu0 %v3024
    %3751 = vmatpush1.bf16.msra.mxu0 %v3023
    %3752 = vmatprep.subr.bf16.mxu0 %v3032
    %3753 = vmatpush1.bf16.msra.mxu0 %v3031
    %3754 = vmatprep.subr.bf16.mxu0 %v3040
    %3755 = vmatpush1.bf16.msra.mxu0 %v3039
    %3756 = vmatprep.subr.bf16.mxu0 %v3048
    %3757 = vmatpush1.bf16.msra.mxu0 %v3047
    %3758 = vmatprep.subr.bf16.mxu0 %v3056
    %3759 = vmatpush1.bf16.msra.mxu0 %v3055
    %3760 = vmatprep.subr.bf16.mxu0 %v3064
    %3761 = vmatpush1.bf16.msra.mxu0 %v3063
    %3762 = vmatprep.subr.bf16.mxu0 %v3072
    %3763 = vmatpush1.bf16.msra.mxu0 %v3071
    %3764 = vmatprep.subr.bf16.mxu0 %v3080
    %3765 = vmatpush1.bf16.msra.mxu0 %v3079
    %3766 = vmatprep.subr.bf16.mxu0 %v3088
    %3767 = vmatpush1.bf16.msra.mxu0 %v3087
    %3768 = vmatprep.subr.bf16.mxu0 %v3096
    %3769 = vmatpush1.bf16.msra.mxu0 %v3095
    %3770 = vmatprep.mubr.bf16.mxu0 %v500
    %3771 = vmatmul.mubr.bf16.gmra.mrb[0].mxu0 %v499
    %v3772 = vpop.f32.mrb[0].mxu0
    %v3773 = vadd.f32 %v3732, %v3772
    %v3774 = vpop.f32.mrb[0].mxu0
    %v3775 = vadd.f32 %v3734, %v3774
    %v3776 = vpop.f32.mrb[0].mxu0
    %v3777 = vpop.f32.mrb[0].mxu0
    %3778 = vdwg.mxu0
    %3779 = vmatprep.subr.bf16.mxu0 %v2594
    %3780 = vmatpush1.bf16.msra.mxu0 %v2593
    %3781 = vmatprep.subr.bf16.mxu0 %v2602
    %3782 = vmatpush1.bf16.msra.mxu0 %v2601
    %3783 = vmatprep.subr.bf16.mxu0 %v2610
    %3784 = vmatpush1.bf16.msra.mxu0 %v2609
    %3785 = vmatprep.subr.bf16.mxu0 %v2618
    %3786 = vmatpush1.bf16.msra.mxu0 %v2617
    %3787 = vmatprep.subr.bf16.mxu0 %v2626
    %3788 = vmatpush1.bf16.msra.mxu0 %v2625
    %3789 = vmatprep.subr.bf16.mxu0 %v2634
    %3790 = vmatpush1.bf16.msra.mxu0 %v2633
    %3791 = vmatprep.subr.bf16.mxu0 %v2642
    %3792 = vmatpush1.bf16.msra.mxu0 %v2641
    %3793 = vmatprep.subr.bf16.mxu0 %v2650
    %3794 = vmatpush1.bf16.msra.mxu0 %v2649
    %3795 = vmatprep.subr.bf16.mxu0 %v2658
    %3796 = vmatpush1.bf16.msra.mxu0 %v2657
    %3797 = vmatprep.subr.bf16.mxu0 %v2666
    %3798 = vmatpush1.bf16.msra.mxu0 %v2665
    %3799 = vmatprep.subr.bf16.mxu0 %v2674
    %3800 = vmatpush1.bf16.msra.mxu0 %v2673
    %3801 = vmatprep.subr.bf16.mxu0 %v2682
    %3802 = vmatpush1.bf16.msra.mxu0 %v2681
    %3803 = vmatprep.subr.bf16.mxu0 %v2690
    %3804 = vmatpush1.bf16.msra.mxu0 %v2689
    %3805 = vmatprep.subr.bf16.mxu0 %v2698
    %3806 = vmatpush1.bf16.msra.mxu0 %v2697
    %3807 = vmatprep.subr.bf16.mxu0 %v2706
    %3808 = vmatpush1.bf16.msra.mxu0 %v2705
    %3809 = vmatprep.subr.bf16.mxu0 %v2714
    %3810 = vmatpush1.bf16.msra.mxu0 %v2713
    %3811 = vmatprep.mubr.bf16.mxu0 %v494
    %3812 = vmatmul.mubr.bf16.gmra.mrb[0].mxu0 %v493
    %v3813 = vpop.f32.mrb[0].mxu0
    %v3814 = vadd.f32 %v1026, %v3813
    %v3815 = vpop.f32.mrb[0].mxu0
    %v3816 = vadd.f32 %v1030, %v3815
    %v3817 = vpop.f32.mrb[0].mxu0
    %v3818 = vpop.f32.mrb[0].mxu0
    %3819 = vdwg.mxu0
    %3820 = vmatprep.subr.bf16.mxu0 %v2722
    %3821 = vmatpush1.bf16.msra.mxu0 %v2721
    %3822 = vmatprep.subr.bf16.mxu0 %v2730
    %3823 = vmatpush1.bf16.msra.mxu0 %v2729
    %3824 = vmatprep.subr.bf16.mxu0 %v2738
    %3825 = vmatpush1.bf16.msra.mxu0 %v2737
    %3826 = vmatprep.subr.bf16.mxu0 %v2746
    %3827 = vmatpush1.bf16.msra.mxu0 %v2745
    %3828 = vmatprep.subr.bf16.mxu0 %v2754
    %3829 = vmatpush1.bf16.msra.mxu0 %v2753
    %3830 = vmatprep.subr.bf16.mxu0 %v2762
    %3831 = vmatpush1.bf16.msra.mxu0 %v2761
    %3832 = vmatprep.subr.bf16.mxu0 %v2770
    %3833 = vmatpush1.bf16.msra.mxu0 %v2769
    %3834 = vmatprep.subr.bf16.mxu0 %v2778
    %3835 = vmatpush1.bf16.msra.mxu0 %v2777
    %3836 = vmatprep.subr.bf16.mxu0 %v2786
    %3837 = vmatpush1.bf16.msra.mxu0 %v2785
    %3838 = vmatprep.subr.bf16.mxu0 %v2794
    %3839 = vmatpush1.bf16.msra.mxu0 %v2793
    %3840 = vmatprep.subr.bf16.mxu0 %v2802
    %3841 = vmatpush1.bf16.msra.mxu0 %v2801
    %3842 = vmatprep.subr.bf16.mxu0 %v2810
    %3843 = vmatpush1.bf16.msra.mxu0 %v2809
    %3844 = vmatprep.subr.bf16.mxu0 %v2818
    %3845 = vmatpush1.bf16.msra.mxu0 %v2817
    %3846 = vmatprep.subr.bf16.mxu0 %v2826
    %3847 = vmatpush1.bf16.msra.mxu0 %v2825
    %3848 = vmatprep.subr.bf16.mxu0 %v2834
    %3849 = vmatpush1.bf16.msra.mxu0 %v2833
    %3850 = vmatprep.subr.bf16.mxu0 %v2842
    %3851 = vmatpush1.bf16.msra.mxu0 %v2841
    %3852 = vmatprep.mubr.bf16.mxu0 %v496
    %3853 = vmatmul.mubr.bf16.gmra.mrb[0].mxu0 %v495
    %v3854 = vpop.f32.mrb[0].mxu0
    %v3855 = vadd.f32 %v3814, %v3854
    %v3856 = vpop.f32.mrb[0].mxu0
    %v3857 = vadd.f32 %v3816, %v3856
    %v3858 = vpop.f32.mrb[0].mxu0
    %v3859 = vpop.f32.mrb[0].mxu0
    %3860 = vdwg.mxu0
    %3861 = vmatprep.subr.bf16.mxu0 %v2850
    %3862 = vmatpush1.bf16.msra.mxu0 %v2849
    %3863 = vmatprep.subr.bf16.mxu0 %v2858
    %3864 = vmatpush1.bf16.msra.mxu0 %v2857
    %3865 = vmatprep.subr.bf16.mxu0 %v2866
    %3866 = vmatpush1.bf16.msra.mxu0 %v2865
    %3867 = vmatprep.subr.bf16.mxu0 %v2874
    %3868 = vmatpush1.bf16.msra.mxu0 %v2873
    %3869 = vmatprep.subr.bf16.mxu0 %v2882
    %3870 = vmatpush1.bf16.msra.mxu0 %v2881
    %3871 = vmatprep.subr.bf16.mxu0 %v2890
    %3872 = vmatpush1.bf16.msra.mxu0 %v2889
    %3873 = vmatprep.subr.bf16.mxu0 %v2898
    %3874 = vmatpush1.bf16.msra.mxu0 %v2897
    %3875 = vmatprep.subr.bf16.mxu0 %v2906
    %3876 = vmatpush1.bf16.msra.mxu0 %v2905
    %3877 = vmatprep.subr.bf16.mxu0 %v2914
    %3878 = vmatpush1.bf16.msra.mxu0 %v2913
    %3879 = vmatprep.subr.bf16.mxu0 %v2922
    %3880 = vmatpush1.bf16.msra.mxu0 %v2921
    %3881 = vmatprep.subr.bf16.mxu0 %v2930
    %3882 = vmatpush1.bf16.msra.mxu0 %v2929
    %3883 = vmatprep.subr.bf16.mxu0 %v2938
    %3884 = vmatpush1.bf16.msra.mxu0 %v2937
    %3885 = vmatprep.subr.bf16.mxu0 %v2946
    %3886 = vmatpush1.bf16.msra.mxu0 %v2945
    %3887 = vmatprep.subr.bf16.mxu0 %v2954
    %3888 = vmatpush1.bf16.msra.mxu0 %v2953
    %3889 = vmatprep.subr.bf16.mxu0 %v2962
    %3890 = vmatpush1.bf16.msra.mxu0 %v2961
    %3891 = vmatprep.subr.bf16.mxu0 %v2970
    %3892 = vmatpush1.bf16.msra.mxu0 %v2969
    %3893 = vmatprep.mubr.bf16.mxu0 %v498
    %3894 = vmatmul.mubr.bf16.gmra.mrb[0].mxu0 %v497
    %v3895 = vpop.f32.mrb[0].mxu0
    %v3896 = vadd.f32 %v3855, %v3895
    %v3897 = vpop.f32.mrb[0].mxu0
    %v3898 = vadd.f32 %v3857, %v3897
    %v3899 = vpop.f32.mrb[0].mxu0
    %v3900 = vpop.f32.mrb[0].mxu0
    %3901 = vdwg.mxu0
    %3902 = vmatprep.subr.bf16.mxu0 %v2978
    %3903 = vmatpush1.bf16.msra.mxu0 %v2977
    %3904 = vmatprep.subr.bf16.mxu0 %v2986
    %3905 = vmatpush1.bf16.msra.mxu0 %v2985
    %3906 = vmatprep.subr.bf16.mxu0 %v2994
    %3907 = vmatpush1.bf16.msra.mxu0 %v2993
    %3908 = vmatprep.subr.bf16.mxu0 %v3002
    %3909 = vmatpush1.bf16.msra.mxu0 %v3001
    %3910 = vmatprep.subr.bf16.mxu0 %v3010
    %3911 = vmatpush1.bf16.msra.mxu0 %v3009
    %3912 = vmatprep.subr.bf16.mxu0 %v3018
    %3913 = vmatpush1.bf16.msra.mxu0 %v3017
    %3914 = vmatprep.subr.bf16.mxu0 %v3026
    %3915 = vmatpush1.bf16.msra.mxu0 %v3025
    %3916 = vmatprep.subr.bf16.mxu0 %v3034
    %3917 = vmatpush1.bf16.msra.mxu0 %v3033
    %3918 = vmatprep.subr.bf16.mxu0 %v3042
    %3919 = vmatpush1.bf16.msra.mxu0 %v3041
    %3920 = vmatprep.subr.bf16.mxu0 %v3050
    %3921 = vmatpush1.bf16.msra.mxu0 %v3049
    %3922 = vmatprep.subr.bf16.mxu0 %v3058
    %3923 = vmatpush1.bf16.msra.mxu0 %v3057
    %3924 = vmatprep.subr.bf16.mxu0 %v3066
    %3925 = vmatpush1.bf16.msra.mxu0 %v3065
    %3926 = vmatprep.subr.bf16.mxu0 %v3074
    %3927 = vmatpush1.bf16.msra.mxu0 %v3073
    %3928 = vmatprep.subr.bf16.mxu0 %v3082
    %3929 = vmatpush1.bf16.msra.mxu0 %v3081
    %3930 = vmatprep.subr.bf16.mxu0 %v3090
    %3931 = vmatpush1.bf16.msra.mxu0 %v3089
    %3932 = vmatprep.subr.bf16.mxu0 %v3098
    %3933 = vmatpush1.bf16.msra.mxu0 %v3097
    %3934 = vmatprep.mubr.bf16.mxu0 %v500
    %3935 = vmatmul.mubr.bf16.gmra.mrb[0].mxu0 %v499
    %v3936 = vpop.f32.mrb[0].mxu0
    %v3937 = vadd.f32 %v3896, %v3936
    %v3938 = vpop.f32.mrb[0].mxu0
    %v3939 = vadd.f32 %v3898, %v3938
    %v3940 = vpop.f32.mrb[0].mxu0
    %v3941 = vpop.f32.mrb[0].mxu0
    %3942 = vdwg.mxu0
    %3943 = vmatprep.subr.bf16.mxu0 %v2596
    %3944 = vmatpush1.bf16.msra.mxu0 %v2595
    %3945 = vmatprep.subr.bf16.mxu0 %v2604
    %3946 = vmatpush1.bf16.msra.mxu0 %v2603
    %3947 = vmatprep.subr.bf16.mxu0 %v2612
    %3948 = vmatpush1.bf16.msra.mxu0 %v2611
    %3949 = vmatprep.subr.bf16.mxu0 %v2620
    %3950 = vmatpush1.bf16.msra.mxu0 %v2619
    %3951 = vmatprep.subr.bf16.mxu0 %v2628
    %3952 = vmatpush1.bf16.msra.mxu0 %v2627
    %3953 = vmatprep.subr.bf16.mxu0 %v2636
    %3954 = vmatpush1.bf16.msra.mxu0 %v2635
    %3955 = vmatprep.subr.bf16.mxu0 %v2644
    %3956 = vmatpush1.bf16.msra.mxu0 %v2643
    %3957 = vmatprep.subr.bf16.mxu0 %v2652
    %3958 = vmatpush1.bf16.msra.mxu0 %v2651
    %3959 = vmatprep.subr.bf16.mxu0 %v2660
    %3960 = vmatpush1.bf16.msra.mxu0 %v2659
    %3961 = vmatprep.subr.bf16.mxu0 %v2668
    %3962 = vmatpush1.bf16.msra.mxu0 %v2667
    %3963 = vmatprep.subr.bf16.mxu0 %v2676
    %3964 = vmatpush1.bf16.msra.mxu0 %v2675
    %3965 = vmatprep.subr.bf16.mxu0 %v2684
    %3966 = vmatpush1.bf16.msra.mxu0 %v2683
    %3967 = vmatprep.subr.bf16.mxu0 %v2692
    %3968 = vmatpush1.bf16.msra.mxu0 %v2691
    %3969 = vmatprep.subr.bf16.mxu0 %v2700
    %3970 = vmatpush1.bf16.msra.mxu0 %v2699
    %3971 = vmatprep.subr.bf16.mxu0 %v2708
    %3972 = vmatpush1.bf16.msra.mxu0 %v2707
    %3973 = vmatprep.subr.bf16.mxu0 %v2716
    %3974 = vmatpush1.bf16.msra.mxu0 %v2715
    %3975 = vmatprep.mubr.bf16.mxu0 %v494
    %3976 = vmatmul.mubr.bf16.gmra.mrb[0].mxu0 %v493
    %v3977 = vpop.f32.mrb[0].mxu0
    %v3978 = vadd.f32 %v1034, %v3977
    %v3979 = vpop.f32.mrb[0].mxu0
    %v3980 = vadd.f32 %v1038, %v3979
    %v3981 = vpop.f32.mrb[0].mxu0
    %v3982 = vpop.f32.mrb[0].mxu0
    %3983 = vdwg.mxu0
    %3984 = vmatprep.subr.bf16.mxu0 %v2724
    %3985 = vmatpush1.bf16.msra.mxu0 %v2723
    %3986 = vmatprep.subr.bf16.mxu0 %v2732
    %3987 = vmatpush1.bf16.msra.mxu0 %v2731
    %3988 = vmatprep.subr.bf16.mxu0 %v2740
    %3989 = vmatpush1.bf16.msra.mxu0 %v2739
    %3990 = vmatprep.subr.bf16.mxu0 %v2748
    %3991 = vmatpush1.bf16.msra.mxu0 %v2747
    %3992 = vmatprep.subr.bf16.mxu0 %v2756
    %3993 = vmatpush1.bf16.msra.mxu0 %v2755
    %3994 = vmatprep.subr.bf16.mxu0 %v2764
    %3995 = vmatpush1.bf16.msra.mxu0 %v2763
    %3996 = vmatprep.subr.bf16.mxu0 %v2772
    %3997 = vmatpush1.bf16.msra.mxu0 %v2771
    %3998 = vmatprep.subr.bf16.mxu0 %v2780
    %3999 = vmatpush1.bf16.msra.mxu0 %v2779
    %4000 = vmatprep.subr.bf16.mxu0 %v2788
    %4001 = vmatpush1.bf16.msra.mxu0 %v2787
    %4002 = vmatprep.subr.bf16.mxu0 %v2796
    %4003 = vmatpush1.bf16.msra.mxu0 %v2795
    %4004 = vmatprep.subr.bf16.mxu0 %v2804
    %4005 = vmatpush1.bf16.msra.mxu0 %v2803
    %4006 = vmatprep.subr.bf16.mxu0 %v2812
    %4007 = vmatpush1.bf16.msra.mxu0 %v2811
    %4008 = vmatprep.subr.bf16.mxu0 %v2820
    %4009 = vmatpush1.bf16.msra.mxu0 %v2819
    %4010 = vmatprep.subr.bf16.mxu0 %v2828
    %4011 = vmatpush1.bf16.msra.mxu0 %v2827
    %4012 = vmatprep.subr.bf16.mxu0 %v2836
    %4013 = vmatpush1.bf16.msra.mxu0 %v2835
    %4014 = vmatprep.subr.bf16.mxu0 %v2844
    %4015 = vmatpush1.bf16.msra.mxu0 %v2843
    %4016 = vmatprep.mubr.bf16.mxu0 %v496
    %4017 = vmatmul.mubr.bf16.gmra.mrb[0].mxu0 %v495
    %v4018 = vpop.f32.mrb[0].mxu0
    %v4019 = vadd.f32 %v3978, %v4018
    %v4020 = vpop.f32.mrb[0].mxu0
    %v4021 = vadd.f32 %v3980, %v4020
    %v4022 = vpop.f32.mrb[0].mxu0
    %v4023 = vpop.f32.mrb[0].mxu0
    %4024 = vdwg.mxu0
    %4025 = vmatprep.subr.bf16.mxu0 %v2852
    %4026 = vmatpush1.bf16.msra.mxu0 %v2851
    %4027 = vmatprep.subr.bf16.mxu0 %v2860
    %4028 = vmatpush1.bf16.msra.mxu0 %v2859
    %4029 = vmatprep.subr.bf16.mxu0 %v2868
    %4030 = vmatpush1.bf16.msra.mxu0 %v2867
    %4031 = vmatprep.subr.bf16.mxu0 %v2876
    %4032 = vmatpush1.bf16.msra.mxu0 %v2875
    %4033 = vmatprep.subr.bf16.mxu0 %v2884
    %4034 = vmatpush1.bf16.msra.mxu0 %v2883
    %4035 = vmatprep.subr.bf16.mxu0 %v2892
    %4036 = vmatpush1.bf16.msra.mxu0 %v2891
    %4037 = vmatprep.subr.bf16.mxu0 %v2900
    %4038 = vmatpush1.bf16.msra.mxu0 %v2899
    %4039 = vmatprep.subr.bf16.mxu0 %v2908
    %4040 = vmatpush1.bf16.msra.mxu0 %v2907
    %4041 = vmatprep.subr.bf16.mxu0 %v2916
    %4042 = vmatpush1.bf16.msra.mxu0 %v2915
    %4043 = vmatprep.subr.bf16.mxu0 %v2924
    %4044 = vmatpush1.bf16.msra.mxu0 %v2923
    %4045 = vmatprep.subr.bf16.mxu0 %v2932
    %4046 = vmatpush1.bf16.msra.mxu0 %v2931
    %4047 = vmatprep.subr.bf16.mxu0 %v2940
    %4048 = vmatpush1.bf16.msra.mxu0 %v2939
    %4049 = vmatprep.subr.bf16.mxu0 %v2948
    %4050 = vmatpush1.bf16.msra.mxu0 %v2947
    %4051 = vmatprep.subr.bf16.mxu0 %v2956
    %4052 = vmatpush1.bf16.msra.mxu0 %v2955
    %4053 = vmatprep.subr.bf16.mxu0 %v2964
    %4054 = vmatpush1.bf16.msra.mxu0 %v2963
    %4055 = vmatprep.subr.bf16.mxu0 %v2972
    %4056 = vmatpush1.bf16.msra.mxu0 %v2971
    %4057 = vmatprep.mubr.bf16.mxu0 %v498
    %4058 = vmatmul.mubr.bf16.gmra.mrb[0].mxu0 %v497
    %v4059 = vpop.f32.mrb[0].mxu0
    %v4060 = vadd.f32 %v4019, %v4059
    %v4061 = vpop.f32.mrb[0].mxu0
    %v4062 = vadd.f32 %v4021, %v4061
    %v4063 = vpop.f32.mrb[0].mxu0
    %v4064 = vpop.f32.mrb[0].mxu0
    %4065 = vdwg.mxu0
    %4066 = vmatprep.subr.bf16.mxu0 %v2980
    %4067 = vmatpush1.bf16.msra.mxu0 %v2979
    %4068 = vmatprep.subr.bf16.mxu0 %v2988
    %4069 = vmatpush1.bf16.msra.mxu0 %v2987
    %4070 = vmatprep.subr.bf16.mxu0 %v2996
    %4071 = vmatpush1.bf16.msra.mxu0 %v2995
    %4072 = vmatprep.subr.bf16.mxu0 %v3004
    %4073 = vmatpush1.bf16.msra.mxu0 %v3003
    %4074 = vmatprep.subr.bf16.mxu0 %v3012
    %4075 = vmatpush1.bf16.msra.mxu0 %v3011
    %4076 = vmatprep.subr.bf16.mxu0 %v3020
    %4077 = vmatpush1.bf16.msra.mxu0 %v3019
    %4078 = vmatprep.subr.bf16.mxu0 %v3028
    %4079 = vmatpush1.bf16.msra.mxu0 %v3027
    %4080 = vmatprep.subr.bf16.mxu0 %v3036
    %4081 = vmatpush1.bf16.msra.mxu0 %v3035
    %4082 = vmatprep.subr.bf16.mxu0 %v3044
    %4083 = vmatpush1.bf16.msra.mxu0 %v3043
    %4084 = vmatprep.subr.bf16.mxu0 %v3052
    %4085 = vmatpush1.bf16.msra.mxu0 %v3051
    %4086 = vmatprep.subr.bf16.mxu0 %v3060
    %4087 = vmatpush1.bf16.msra.mxu0 %v3059
    %4088 = vmatprep.subr.bf16.mxu0 %v3068
    %4089 = vmatpush1.bf16.msra.mxu0 %v3067
    %4090 = vmatprep.subr.bf16.mxu0 %v3076
    %4091 = vmatpush1.bf16.msra.mxu0 %v3075
    %4092 = vmatprep.subr.bf16.mxu0 %v3084
    %4093 = vmatpush1.bf16.msra.mxu0 %v3083
    %4094 = vmatprep.subr.bf16.mxu0 %v3092
    %4095 = vmatpush1.bf16.msra.mxu0 %v3091
    %4096 = vmatprep.subr.bf16.mxu0 %v3100
    %4097 = vmatpush1.bf16.msra.mxu0 %v3099
    %4098 = vmatprep.mubr.bf16.mxu0 %v500
    %4099 = vmatmul.mubr.bf16.gmra.mrb[0].mxu0 %v499
    %v4100 = vpop.f32.mrb[0].mxu0
    %v4101 = vadd.f32 %v4060, %v4100
    %v4102 = vpop.f32.mrb[0].mxu0
    %v4103 = vadd.f32 %v4062, %v4102
    %v4104 = vpop.f32.mrb[0].mxu0
    %v4105 = vpop.f32.mrb[0].mxu0
    %4106 = vdwg.mxu0
    %4107 = vmatprep.subr.bf16.mxu0 %v2598
    %4108 = vmatpush1.bf16.msra.mxu0 %v2597
    %4109 = vmatprep.subr.bf16.mxu0 %v2606
    %4110 = vmatpush1.bf16.msra.mxu0 %v2605
    %4111 = vmatprep.subr.bf16.mxu0 %v2614
    %4112 = vmatpush1.bf16.msra.mxu0 %v2613
    %4113 = vmatprep.subr.bf16.mxu0 %v2622
    %4114 = vmatpush1.bf16.msra.mxu0 %v2621
    %4115 = vmatprep.subr.bf16.mxu0 %v2630
    %4116 = vmatpush1.bf16.msra.mxu0 %v2629
    %4117 = vmatprep.subr.bf16.mxu0 %v2638
    %4118 = vmatpush1.bf16.msra.mxu0 %v2637
    %4119 = vmatprep.subr.bf16.mxu0 %v2646
    %4120 = vmatpush1.bf16.msra.mxu0 %v2645
    %4121 = vmatprep.subr.bf16.mxu0 %v2654
    %4122 = vmatpush1.bf16.msra.mxu0 %v2653
    %4123 = vmatprep.subr.bf16.mxu0 %v2662
    %4124 = vmatpush1.bf16.msra.mxu0 %v2661
    %4125 = vmatprep.subr.bf16.mxu0 %v2670
    %4126 = vmatpush1.bf16.msra.mxu0 %v2669
    %4127 = vmatprep.subr.bf16.mxu0 %v2678
    %4128 = vmatpush1.bf16.msra.mxu0 %v2677
    %4129 = vmatprep.subr.bf16.mxu0 %v2686
    %4130 = vmatpush1.bf16.msra.mxu0 %v2685
    %4131 = vmatprep.subr.bf16.mxu0 %v2694
    %4132 = vmatpush1.bf16.msra.mxu0 %v2693
    %4133 = vmatprep.subr.bf16.mxu0 %v2702
    %4134 = vmatpush1.bf16.msra.mxu0 %v2701
    %4135 = vmatprep.subr.bf16.mxu0 %v2710
    %4136 = vmatpush1.bf16.msra.mxu0 %v2709
    %4137 = vmatprep.subr.bf16.mxu0 %v2718
    %4138 = vmatpush1.bf16.msra.mxu0 %v2717
    %4139 = vmatprep.mubr.bf16.mxu0 %v494
    %4140 = vmatmul.mubr.bf16.gmra.mrb[0].mxu0 %v493
    %v4141 = vpop.f32.mrb[0].mxu0
    %v4142 = vadd.f32 %v1042, %v4141
    %v4143 = vpop.f32.mrb[0].mxu0
    %v4144 = vadd.f32 %v1046, %v4143
    %v4145 = vpop.f32.mrb[0].mxu0
    %v4146 = vpop.f32.mrb[0].mxu0
    %4147 = vdwg.mxu0
    %4148 = vmatprep.subr.bf16.mxu0 %v2726
    %4149 = vmatpush1.bf16.msra.mxu0 %v2725
    %4150 = vmatprep.subr.bf16.mxu0 %v2734
    %4151 = vmatpush1.bf16.msra.mxu0 %v2733
    %4152 = vmatprep.subr.bf16.mxu0 %v2742
    %4153 = vmatpush1.bf16.msra.mxu0 %v2741
    %4154 = vmatprep.subr.bf16.mxu0 %v2750
    %4155 = vmatpush1.bf16.msra.mxu0 %v2749
    %4156 = vmatprep.subr.bf16.mxu0 %v2758
    %4157 = vmatpush1.bf16.msra.mxu0 %v2757
    %4158 = vmatprep.subr.bf16.mxu0 %v2766
    %4159 = vmatpush1.bf16.msra.mxu0 %v2765
    %4160 = vmatprep.subr.bf16.mxu0 %v2774
    %4161 = vmatpush1.bf16.msra.mxu0 %v2773
    %4162 = vmatprep.subr.bf16.mxu0 %v2782
    %4163 = vmatpush1.bf16.msra.mxu0 %v2781
    %4164 = vmatprep.subr.bf16.mxu0 %v2790
    %4165 = vmatpush1.bf16.msra.mxu0 %v2789
    %4166 = vmatprep.subr.bf16.mxu0 %v2798
    %4167 = vmatpush1.bf16.msra.mxu0 %v2797
    %4168 = vmatprep.subr.bf16.mxu0 %v2806
    %4169 = vmatpush1.bf16.msra.mxu0 %v2805
    %4170 = vmatprep.subr.bf16.mxu0 %v2814
    %4171 = vmatpush1.bf16.msra.mxu0 %v2813
    %4172 = vmatprep.subr.bf16.mxu0 %v2822
    %4173 = vmatpush1.bf16.msra.mxu0 %v2821
    %4174 = vmatprep.subr.bf16.mxu0 %v2830
    %4175 = vmatpush1.bf16.msra.mxu0 %v2829
    %4176 = vmatprep.subr.bf16.mxu0 %v2838
    %4177 = vmatpush1.bf16.msra.mxu0 %v2837
    %4178 = vmatprep.subr.bf16.mxu0 %v2846
    %4179 = vmatpush1.bf16.msra.mxu0 %v2845
    %4180 = vmatprep.mubr.bf16.mxu0 %v496
    %4181 = vmatmul.mubr.bf16.gmra.mrb[0].mxu0 %v495
    %v4182 = vpop.f32.mrb[0].mxu0
    %v4183 = vadd.f32 %v4142, %v4182
    %v4184 = vpop.f32.mrb[0].mxu0
    %v4185 = vadd.f32 %v4144, %v4184
    %v4186 = vpop.f32.mrb[0].mxu0
    %v4187 = vpop.f32.mrb[0].mxu0
    %4188 = vdwg.mxu0
    %4189 = vmatprep.subr.bf16.mxu0 %v2854
    %4190 = vmatpush1.bf16.msra.mxu0 %v2853
    %4191 = vmatprep.subr.bf16.mxu0 %v2862
    %4192 = vmatpush1.bf16.msra.mxu0 %v2861
    %4193 = vmatprep.subr.bf16.mxu0 %v2870
    %4194 = vmatpush1.bf16.msra.mxu0 %v2869
    %4195 = vmatprep.subr.bf16.mxu0 %v2878
    %4196 = vmatpush1.bf16.msra.mxu0 %v2877
    %4197 = vmatprep.subr.bf16.mxu0 %v2886
    %4198 = vmatpush1.bf16.msra.mxu0 %v2885
    %4199 = vmatprep.subr.bf16.mxu0 %v2894
    %4200 = vmatpush1.bf16.msra.mxu0 %v2893
    %4201 = vmatprep.subr.bf16.mxu0 %v2902
    %4202 = vmatpush1.bf16.msra.mxu0 %v2901
    %4203 = vmatprep.subr.bf16.mxu0 %v2910
    %4204 = vmatpush1.bf16.msra.mxu0 %v2909
    %4205 = vmatprep.subr.bf16.mxu0 %v2918
    %4206 = vmatpush1.bf16.msra.mxu0 %v2917
    %4207 = vmatprep.subr.bf16.mxu0 %v2926
    %4208 = vmatpush1.bf16.msra.mxu0 %v2925
    %4209 = vmatprep.subr.bf16.mxu0 %v2934
    %4210 = vmatpush1.bf16.msra.mxu0 %v2933
    %4211 = vmatprep.subr.bf16.mxu0 %v2942
    %4212 = vmatpush1.bf16.msra.mxu0 %v2941
    %4213 = vmatprep.subr.bf16.mxu0 %v2950
    %4214 = vmatpush1.bf16.msra.mxu0 %v2949
    %4215 = vmatprep.subr.bf16.mxu0 %v2958
    %4216 = vmatpush1.bf16.msra.mxu0 %v2957
    %4217 = vmatprep.subr.bf16.mxu0 %v2966
    %4218 = vmatpush1.bf16.msra.mxu0 %v2965
    %4219 = vmatprep.subr.bf16.mxu0 %v2974
    %4220 = vmatpush1.bf16.msra.mxu0 %v2973
    %4221 = vmatprep.mubr.bf16.mxu0 %v498
    %4222 = vmatmul.mubr.bf16.gmra.mrb[0].mxu0 %v497
    %v4223 = vpop.f32.mrb[0].mxu0
    %v4224 = vadd.f32 %v4183, %v4223
    %v4225 = vpop.f32.mrb[0].mxu0
    %v4226 = vadd.f32 %v4185, %v4225
    %v4227 = vpop.f32.mrb[0].mxu0
    %v4228 = vpop.f32.mrb[0].mxu0
    %4229 = vdwg.mxu0
    %4230 = vmatprep.subr.bf16.mxu0 %v2982
    %4231 = vmatpush1.bf16.msra.mxu0 %v2981
    %4232 = vmatprep.subr.bf16.mxu0 %v2990
    %4233 = vmatpush1.bf16.msra.mxu0 %v2989
    %4234 = vmatprep.subr.bf16.mxu0 %v2998
    %4235 = vmatpush1.bf16.msra.mxu0 %v2997
    %4236 = vmatprep.subr.bf16.mxu0 %v3006
    %4237 = vmatpush1.bf16.msra.mxu0 %v3005
    %4238 = vmatprep.subr.bf16.mxu0 %v3014
    %4239 = vmatpush1.bf16.msra.mxu0 %v3013
    %4240 = vmatprep.subr.bf16.mxu0 %v3022
    %4241 = vmatpush1.bf16.msra.mxu0 %v3021
    %4242 = vmatprep.subr.bf16.mxu0 %v3030
    %4243 = vmatpush1.bf16.msra.mxu0 %v3029
    %4244 = vmatprep.subr.bf16.mxu0 %v3038
    %4245 = vmatpush1.bf16.msra.mxu0 %v3037
    %4246 = vmatprep.subr.bf16.mxu0 %v3046
    %4247 = vmatpush1.bf16.msra.mxu0 %v3045
    %4248 = vmatprep.subr.bf16.mxu0 %v3054
    %4249 = vmatpush1.bf16.msra.mxu0 %v3053
    %4250 = vmatprep.subr.bf16.mxu0 %v3062
    %4251 = vmatpush1.bf16.msra.mxu0 %v3061
    %4252 = vmatprep.subr.bf16.mxu0 %v3070
    %4253 = vmatpush1.bf16.msra.mxu0 %v3069
    %4254 = vmatprep.subr.bf16.mxu0 %v3078
    %4255 = vmatpush1.bf16.msra.mxu0 %v3077
    %4256 = vmatprep.subr.bf16.mxu0 %v3086
    %4257 = vmatpush1.bf16.msra.mxu0 %v3085
    %4258 = vmatprep.subr.bf16.mxu0 %v3094
    %4259 = vmatpush1.bf16.msra.mxu0 %v3093
    %4260 = vmatprep.subr.bf16.mxu0 %v3102
    %4261 = vmatpush1.bf16.msra.mxu0 %v3101
    %4262 = vmatprep.mubr.bf16.mxu0 %v500
    %4263 = vmatmul.mubr.bf16.gmra.mrb[0].mxu0 %v499
    %v4264 = vpop.f32.mrb[0].mxu0
    %v4265 = vadd.f32 %v4224, %v4264
    %v4266 = vpop.f32.mrb[0].mxu0
    %v4267 = vadd.f32 %v4226, %v4266
    %v4268 = vpop.f32.mrb[0].mxu0
    %v4269 = vpop.f32.mrb[0].mxu0
    %4270 = vdwg.mxu0
    %v4271 = vmul.f32 %v3773, 0.5
    %v4272 = vmul.f32 %v3775, 0.5
    %v4273 = vmul.f32 %v3937, 0.5
    %v4274 = vmul.f32 %v3939, 0.5
    %v4275 = vmul.f32 %v4101, 0.5
    %v4276 = vmul.f32 %v4103, 0.5
    %v4277 = vmul.f32 %v4265, 0.5
    %v4278 = vmul.f32 %v4267, 0.5
    %v4279 = vmul.f32 %v3773, 0.70710677
    %v4280 = vmul.f32 %v3775, 0.70710677
    %v4281 = vmul.f32 %v3937, 0.70710677
    %v4282 = vmul.f32 %v3939, 0.70710677
    %v4283 = vmul.f32 %v4101, 0.70710677
    %v4284 = vmul.f32 %v4103, 0.70710677
    %v4285 = vmul.f32 %v4265, 0.70710677
    %v4286 = vmul.f32 %v4267, 0.70710677
    %v4287 = verf.f32.pop %v4279
    %v4288 = verf.f32.pop %v4280
    %v4289 = verf.f32.pop %v4281
    %v4290 = verf.f32.pop %v4282
    %v4291 = verf.f32.pop %v4283
    %v4292 = verf.f32.pop %v4284
    %v4293 = verf.f32.pop %v4285
    %v4294 = verf.f32.pop %v4286
    %v4295 = vadd.f32 %v4287, 1.0
    %v4296 = vadd.f32 %v4288, 1.0
    %v4297 = vadd.f32 %v4289, 1.0
    %v4298 = vadd.f32 %v4290, 1.0
    %v4299 = vadd.f32 %v4291, 1.0
    %v4300 = vadd.f32 %v4292, 1.0
    %v4301 = vadd.f32 %v4293, 1.0
    %v4302 = vadd.f32 %v4294, 1.0
    %v4303 = vmul.f32 %v4271, %v4295
    %v4304 = vmul.f32 %v4272, %v4296
    %v4305 = vmul.f32 %v4273, %v4297
    %v4306 = vmul.f32 %v4274, %v4298
    %v4307 = vmul.f32 %v4275, %v4299
    %v4308 = vmul.f32 %v4276, %v4300
    %v4309 = vmul.f32 %v4277, %v4301
    %v4310 = vmul.f32 %v4278, %v4302
    %v4311 = vpack.c.bf16 %v4303, %v4303
    %v4312 = vpack.c.bf16 %v4304, %v4304
    %v4313 = vpack.c.bf16 %v4305, %v4305
    %v4314 = vpack.c.bf16 %v4306, %v4306
    %v4315 = vpack.c.bf16 %v4307, %v4307
    %v4316 = vpack.c.bf16 %v4308, %v4308
    %v4317 = vpack.c.bf16 %v4309, %v4309
    %v4318 = vpack.c.bf16 %v4310, %v4310
    %v4319 = vld [vmem:[#allocation11] sm:$0xff]
    %v4320 = vld [vmem:[#allocation11 + $0x8] sm:$0xff]
    %v4321 = vld [vmem:[#allocation11 + $0x10] sm:$0xff]
    %v4322 = vld [vmem:[#allocation11 + $0x18] sm:$0xff]
    %v4323 = vld [vmem:[#allocation11 + $0x20] sm:$0xff]
    %v4324 = vld [vmem:[#allocation11 + $0x28] sm:$0xff]
    %v4325 = vld [vmem:[#allocation11 + $0x30] sm:$0xff]
    %v4326 = vld [vmem:[#allocation11 + $0x38] sm:$0xff]
    %v4327 = vld [vmem:[#allocation11 + $0x40] sm:$0xff]
    %v4328 = vld [vmem:[#allocation11 + $0x48] sm:$0xff]
    %v4329 = vld [vmem:[#allocation11 + $0x50] sm:$0xff]
    %v4330 = vld [vmem:[#allocation11 + $0x58] sm:$0xff]
    %v4331 = vld [vmem:[#allocation11 + $0x60] sm:$0xff]
    %v4332 = vld [vmem:[#allocation11 + $0x68] sm:$0xff]
    %v4333 = vld [vmem:[#allocation11 + $0x70] sm:$0xff]
    %v4334 = vld [vmem:[#allocation11 + $0x78] sm:$0xff]
    %v4335 = vld [vmem:[#allocation11 + $0x80] sm:$0xff]
    %v4336 = vld [vmem:[#allocation11 + $0x88] sm:$0xff]
    %v4337 = vld [vmem:[#allocation11 + $0x90] sm:$0xff]
    %v4338 = vld [vmem:[#allocation11 + $0x98] sm:$0xff]
    %v4339 = vld [vmem:[#allocation11 + $0xa0] sm:$0xff]
    %v4340 = vld [vmem:[#allocation11 + $0xa8] sm:$0xff]
    %v4341 = vld [vmem:[#allocation11 + $0xb0] sm:$0xff]
    %v4342 = vld [vmem:[#allocation11 + $0xb8] sm:$0xff]
    %v4343 = vld [vmem:[#allocation11 + $0xc0] sm:$0xff]
    %v4344 = vld [vmem:[#allocation11 + $0xc8] sm:$0xff]
    %v4345 = vld [vmem:[#allocation11 + $0xd0] sm:$0xff]
    %v4346 = vld [vmem:[#allocation11 + $0xd8] sm:$0xff]
    %v4347 = vld [vmem:[#allocation11 + $0xe0] sm:$0xff]
    %v4348 = vld [vmem:[#allocation11 + $0xe8] sm:$0xff]
    %v4349 = vld [vmem:[#allocation11 + $0xf0] sm:$0xff]
    %v4350 = vld [vmem:[#allocation11 + $0xf8] sm:$0xff]
    %v4351 = vld [vmem:[#allocation11 + $0x100] sm:$0xff]
    %v4352 = vld [vmem:[#allocation11 + $0x108] sm:$0xff]
    %v4353 = vld [vmem:[#allocation11 + $0x110] sm:$0xff]
    %v4354 = vld [vmem:[#allocation11 + $0x118] sm:$0xff]
    %v4355 = vld [vmem:[#allocation11 + $0x120] sm:$0xff]
    %v4356 = vld [vmem:[#allocation11 + $0x128] sm:$0xff]
    %v4357 = vld [vmem:[#allocation11 + $0x130] sm:$0xff]
    %v4358 = vld [vmem:[#allocation11 + $0x138] sm:$0xff]
    %v4359 = vld [vmem:[#allocation11 + $0x140] sm:$0xff]
    %v4360 = vld [vmem:[#allocation11 + $0x148] sm:$0xff]
    %v4361 = vld [vmem:[#allocation11 + $0x150] sm:$0xff]
    %v4362 = vld [vmem:[#allocation11 + $0x158] sm:$0xff]
    %v4363 = vld [vmem:[#allocation11 + $0x160] sm:$0xff]
    %v4364 = vld [vmem:[#allocation11 + $0x168] sm:$0xff]
    %v4365 = vld [vmem:[#allocation11 + $0x170] sm:$0xff]
    %v4366 = vld [vmem:[#allocation11 + $0x178] sm:$0xff]
    %v4367 = vld [vmem:[#allocation11 + $0x180] sm:$0xff]
    %v4368 = vld [vmem:[#allocation11 + $0x188] sm:$0xff]
    %v4369 = vld [vmem:[#allocation11 + $0x190] sm:$0xff]
    %v4370 = vld [vmem:[#allocation11 + $0x198] sm:$0xff]
    %v4371 = vld [vmem:[#allocation11 + $0x1a0] sm:$0xff]
    %v4372 = vld [vmem:[#allocation11 + $0x1a8] sm:$0xff]
    %v4373 = vld [vmem:[#allocation11 + $0x1b0] sm:$0xff]
    %v4374 = vld [vmem:[#allocation11 + $0x1b8] sm:$0xff]
    %v4375 = vld [vmem:[#allocation11 + $0x1c0] sm:$0xff]
    %v4376 = vld [vmem:[#allocation11 + $0x1c8] sm:$0xff]
    %v4377 = vld [vmem:[#allocation11 + $0x1d0] sm:$0xff]
    %v4378 = vld [vmem:[#allocation11 + $0x1d8] sm:$0xff]
    %v4379 = vld [vmem:[#allocation11 + $0x1e0] sm:$0xff]
    %v4380 = vld [vmem:[#allocation11 + $0x1e8] sm:$0xff]
    %v4381 = vld [vmem:[#allocation11 + $0x1f0] sm:$0xff]
    %v4382 = vld [vmem:[#allocation11 + $0x1f8] sm:$0xff]
    %v4383 = vld [vmem:[#allocation11 + $0x200] sm:$0xff]
    %v4384 = vld [vmem:[#allocation11 + $0x208] sm:$0xff]
    %v4385 = vld [vmem:[#allocation11 + $0x210] sm:$0xff]
    %v4386 = vld [vmem:[#allocation11 + $0x218] sm:$0xff]
    %v4387 = vld [vmem:[#allocation11 + $0x220] sm:$0xff]
    %v4388 = vld [vmem:[#allocation11 + $0x228] sm:$0xff]
    %v4389 = vld [vmem:[#allocation11 + $0x230] sm:$0xff]
    %v4390 = vld [vmem:[#allocation11 + $0x238] sm:$0xff]
    %v4391 = vld [vmem:[#allocation11 + $0x240] sm:$0xff]
    %v4392 = vld [vmem:[#allocation11 + $0x248] sm:$0xff]
    %v4393 = vld [vmem:[#allocation11 + $0x250] sm:$0xff]
    %v4394 = vld [vmem:[#allocation11 + $0x258] sm:$0xff]
    %v4395 = vld [vmem:[#allocation11 + $0x260] sm:$0xff]
    %v4396 = vld [vmem:[#allocation11 + $0x268] sm:$0xff]
    %v4397 = vld [vmem:[#allocation11 + $0x270] sm:$0xff]
    %v4398 = vld [vmem:[#allocation11 + $0x278] sm:$0xff]
    %v4399 = vld [vmem:[#allocation11 + $0x280] sm:$0xff]
    %v4400 = vld [vmem:[#allocation11 + $0x288] sm:$0xff]
    %v4401 = vld [vmem:[#allocation11 + $0x290] sm:$0xff]
    %v4402 = vld [vmem:[#allocation11 + $0x298] sm:$0xff]
    %v4403 = vld [vmem:[#allocation11 + $0x2a0] sm:$0xff]
    %v4404 = vld [vmem:[#allocation11 + $0x2a8] sm:$0xff]
    %v4405 = vld [vmem:[#allocation11 + $0x2b0] sm:$0xff]
    %v4406 = vld [vmem:[#allocation11 + $0x2b8] sm:$0xff]
    %v4407 = vld [vmem:[#allocation11 + $0x2c0] sm:$0xff]
    %v4408 = vld [vmem:[#allocation11 + $0x2c8] sm:$0xff]
    %v4409 = vld [vmem:[#allocation11 + $0x2d0] sm:$0xff]
    %v4410 = vld [vmem:[#allocation11 + $0x2d8] sm:$0xff]
    %v4411 = vld [vmem:[#allocation11 + $0x2e0] sm:$0xff]
    %v4412 = vld [vmem:[#allocation11 + $0x2e8] sm:$0xff]
    %v4413 = vld [vmem:[#allocation11 + $0x2f0] sm:$0xff]
    %v4414 = vld [vmem:[#allocation11 + $0x2f8] sm:$0xff]
    %v4415 = vld [vmem:[#allocation11 + $0x300] sm:$0xff]
    %v4416 = vld [vmem:[#allocation11 + $0x308] sm:$0xff]
    %v4417 = vld [vmem:[#allocation11 + $0x310] sm:$0xff]
    %v4418 = vld [vmem:[#allocation11 + $0x318] sm:$0xff]
    %v4419 = vld [vmem:[#allocation11 + $0x320] sm:$0xff]
    %v4420 = vld [vmem:[#allocation11 + $0x328] sm:$0xff]
    %v4421 = vld [vmem:[#allocation11 + $0x330] sm:$0xff]
    %v4422 = vld [vmem:[#allocation11 + $0x338] sm:$0xff]
    %v4423 = vld [vmem:[#allocation11 + $0x340] sm:$0xff]
    %v4424 = vld [vmem:[#allocation11 + $0x348] sm:$0xff]
    %v4425 = vld [vmem:[#allocation11 + $0x350] sm:$0xff]
    %v4426 = vld [vmem:[#allocation11 + $0x358] sm:$0xff]
    %v4427 = vld [vmem:[#allocation11 + $0x360] sm:$0xff]
    %v4428 = vld [vmem:[#allocation11 + $0x368] sm:$0xff]
    %v4429 = vld [vmem:[#allocation11 + $0x370] sm:$0xff]
    %v4430 = vld [vmem:[#allocation11 + $0x378] sm:$0xff]
    %v4431 = vld [vmem:[#allocation11 + $0x380] sm:$0xff]
    %v4432 = vld [vmem:[#allocation11 + $0x388] sm:$0xff]
    %v4433 = vld [vmem:[#allocation11 + $0x390] sm:$0xff]
    %v4434 = vld [vmem:[#allocation11 + $0x398] sm:$0xff]
    %v4435 = vld [vmem:[#allocation11 + $0x3a0] sm:$0xff]
    %v4436 = vld [vmem:[#allocation11 + $0x3a8] sm:$0xff]
    %v4437 = vld [vmem:[#allocation11 + $0x3b0] sm:$0xff]
    %v4438 = vld [vmem:[#allocation11 + $0x3b8] sm:$0xff]
    %v4439 = vld [vmem:[#allocation11 + $0x3c0] sm:$0xff]
    %v4440 = vld [vmem:[#allocation11 + $0x3c8] sm:$0xff]
    %v4441 = vld [vmem:[#allocation11 + $0x3d0] sm:$0xff]
    %v4442 = vld [vmem:[#allocation11 + $0x3d8] sm:$0xff]
    %v4443 = vld [vmem:[#allocation11 + $0x3e0] sm:$0xff]
    %v4444 = vld [vmem:[#allocation11 + $0x3e8] sm:$0xff]
    %v4445 = vld [vmem:[#allocation11 + $0x3f0] sm:$0xff]
    %v4446 = vld [vmem:[#allocation11 + $0x3f8] sm:$0xff]
    %v4447 = vld [vmem:[#allocation11 + $0x400] sm:$0xff]
    %v4448 = vld [vmem:[#allocation11 + $0x408] sm:$0xff]
    %v4449 = vld [vmem:[#allocation11 + $0x410] sm:$0xff]
    %v4450 = vld [vmem:[#allocation11 + $0x418] sm:$0xff]
    %v4451 = vld [vmem:[#allocation11 + $0x420] sm:$0xff]
    %v4452 = vld [vmem:[#allocation11 + $0x428] sm:$0xff]
    %v4453 = vld [vmem:[#allocation11 + $0x430] sm:$0xff]
    %v4454 = vld [vmem:[#allocation11 + $0x438] sm:$0xff]
    %v4455 = vld [vmem:[#allocation11 + $0x440] sm:$0xff]
    %v4456 = vld [vmem:[#allocation11 + $0x448] sm:$0xff]
    %v4457 = vld [vmem:[#allocation11 + $0x450] sm:$0xff]
    %v4458 = vld [vmem:[#allocation11 + $0x458] sm:$0xff]
    %v4459 = vld [vmem:[#allocation11 + $0x460] sm:$0xff]
    %v4460 = vld [vmem:[#allocation11 + $0x468] sm:$0xff]
    %v4461 = vld [vmem:[#allocation11 + $0x470] sm:$0xff]
    %v4462 = vld [vmem:[#allocation11 + $0x478] sm:$0xff]
    %v4463 = vld [vmem:[#allocation11 + $0x480] sm:$0xff]
    %v4464 = vld [vmem:[#allocation11 + $0x488] sm:$0xff]
    %v4465 = vld [vmem:[#allocation11 + $0x490] sm:$0xff]
    %v4466 = vld [vmem:[#allocation11 + $0x498] sm:$0xff]
    %v4467 = vld [vmem:[#allocation11 + $0x4a0] sm:$0xff]
    %v4468 = vld [vmem:[#allocation11 + $0x4a8] sm:$0xff]
    %v4469 = vld [vmem:[#allocation11 + $0x4b0] sm:$0xff]
    %v4470 = vld [vmem:[#allocation11 + $0x4b8] sm:$0xff]
    %v4471 = vld [vmem:[#allocation11 + $0x4c0] sm:$0xff]
    %v4472 = vld [vmem:[#allocation11 + $0x4c8] sm:$0xff]
    %v4473 = vld [vmem:[#allocation11 + $0x4d0] sm:$0xff]
    %v4474 = vld [vmem:[#allocation11 + $0x4d8] sm:$0xff]
    %v4475 = vld [vmem:[#allocation11 + $0x4e0] sm:$0xff]
    %v4476 = vld [vmem:[#allocation11 + $0x4e8] sm:$0xff]
    %v4477 = vld [vmem:[#allocation11 + $0x4f0] sm:$0xff]
    %v4478 = vld [vmem:[#allocation11 + $0x4f8] sm:$0xff]
    %v4479 = vld [vmem:[#allocation11 + $0x500] sm:$0xff]
    %v4480 = vld [vmem:[#allocation11 + $0x508] sm:$0xff]
    %v4481 = vld [vmem:[#allocation11 + $0x510] sm:$0xff]
    %v4482 = vld [vmem:[#allocation11 + $0x518] sm:$0xff]
    %v4483 = vld [vmem:[#allocation11 + $0x520] sm:$0xff]
    %v4484 = vld [vmem:[#allocation11 + $0x528] sm:$0xff]
    %v4485 = vld [vmem:[#allocation11 + $0x530] sm:$0xff]
    %v4486 = vld [vmem:[#allocation11 + $0x538] sm:$0xff]
    %v4487 = vld [vmem:[#allocation11 + $0x540] sm:$0xff]
    %v4488 = vld [vmem:[#allocation11 + $0x548] sm:$0xff]
    %v4489 = vld [vmem:[#allocation11 + $0x550] sm:$0xff]
    %v4490 = vld [vmem:[#allocation11 + $0x558] sm:$0xff]
    %v4491 = vld [vmem:[#allocation11 + $0x560] sm:$0xff]
    %v4492 = vld [vmem:[#allocation11 + $0x568] sm:$0xff]
    %v4493 = vld [vmem:[#allocation11 + $0x570] sm:$0xff]
    %v4494 = vld [vmem:[#allocation11 + $0x578] sm:$0xff]
    %v4495 = vld [vmem:[#allocation11 + $0x580] sm:$0xff]
    %v4496 = vld [vmem:[#allocation11 + $0x588] sm:$0xff]
    %v4497 = vld [vmem:[#allocation11 + $0x590] sm:$0xff]
    %v4498 = vld [vmem:[#allocation11 + $0x598] sm:$0xff]
    %v4499 = vld [vmem:[#allocation11 + $0x5a0] sm:$0xff]
    %v4500 = vld [vmem:[#allocation11 + $0x5a8] sm:$0xff]
    %v4501 = vld [vmem:[#allocation11 + $0x5b0] sm:$0xff]
    %v4502 = vld [vmem:[#allocation11 + $0x5b8] sm:$0xff]
    %v4503 = vld [vmem:[#allocation11 + $0x5c0] sm:$0xff]
    %v4504 = vld [vmem:[#allocation11 + $0x5c8] sm:$0xff]
    %v4505 = vld [vmem:[#allocation11 + $0x5d0] sm:$0xff]
    %v4506 = vld [vmem:[#allocation11 + $0x5d8] sm:$0xff]
    %v4507 = vld [vmem:[#allocation11 + $0x5e0] sm:$0xff]
    %v4508 = vld [vmem:[#allocation11 + $0x5e8] sm:$0xff]
    %v4509 = vld [vmem:[#allocation11 + $0x5f0] sm:$0xff]
    %v4510 = vld [vmem:[#allocation11 + $0x5f8] sm:$0xff]
    %v4511 = vld [vmem:[#allocation11 + $0x600] sm:$0xff]
    %v4512 = vld [vmem:[#allocation11 + $0x608] sm:$0xff]
    %v4513 = vld [vmem:[#allocation11 + $0x610] sm:$0xff]
    %v4514 = vld [vmem:[#allocation11 + $0x618] sm:$0xff]
    %v4515 = vld [vmem:[#allocation11 + $0x620] sm:$0xff]
    %v4516 = vld [vmem:[#allocation11 + $0x628] sm:$0xff]
    %v4517 = vld [vmem:[#allocation11 + $0x630] sm:$0xff]
    %v4518 = vld [vmem:[#allocation11 + $0x638] sm:$0xff]
    %v4519 = vld [vmem:[#allocation11 + $0x640] sm:$0xff]
    %v4520 = vld [vmem:[#allocation11 + $0x648] sm:$0xff]
    %v4521 = vld [vmem:[#allocation11 + $0x650] sm:$0xff]
    %v4522 = vld [vmem:[#allocation11 + $0x658] sm:$0xff]
    %v4523 = vld [vmem:[#allocation11 + $0x660] sm:$0xff]
    %v4524 = vld [vmem:[#allocation11 + $0x668] sm:$0xff]
    %v4525 = vld [vmem:[#allocation11 + $0x670] sm:$0xff]
    %v4526 = vld [vmem:[#allocation11 + $0x678] sm:$0xff]
    %v4527 = vld [vmem:[#allocation11 + $0x680] sm:$0xff]
    %v4528 = vld [vmem:[#allocation11 + $0x688] sm:$0xff]
    %v4529 = vld [vmem:[#allocation11 + $0x690] sm:$0xff]
    %v4530 = vld [vmem:[#allocation11 + $0x698] sm:$0xff]
    %v4531 = vld [vmem:[#allocation11 + $0x6a0] sm:$0xff]
    %v4532 = vld [vmem:[#allocation11 + $0x6a8] sm:$0xff]
    %v4533 = vld [vmem:[#allocation11 + $0x6b0] sm:$0xff]
    %v4534 = vld [vmem:[#allocation11 + $0x6b8] sm:$0xff]
    %v4535 = vld [vmem:[#allocation11 + $0x6c0] sm:$0xff]
    %v4536 = vld [vmem:[#allocation11 + $0x6c8] sm:$0xff]
    %v4537 = vld [vmem:[#allocation11 + $0x6d0] sm:$0xff]
    %v4538 = vld [vmem:[#allocation11 + $0x6d8] sm:$0xff]
    %v4539 = vld [vmem:[#allocation11 + $0x6e0] sm:$0xff]
    %v4540 = vld [vmem:[#allocation11 + $0x6e8] sm:$0xff]
    %v4541 = vld [vmem:[#allocation11 + $0x6f0] sm:$0xff]
    %v4542 = vld [vmem:[#allocation11 + $0x6f8] sm:$0xff]
    %v4543 = vld [vmem:[#allocation11 + $0x700] sm:$0xff]
    %v4544 = vld [vmem:[#allocation11 + $0x708] sm:$0xff]
    %v4545 = vld [vmem:[#allocation11 + $0x710] sm:$0xff]
    %v4546 = vld [vmem:[#allocation11 + $0x718] sm:$0xff]
    %v4547 = vld [vmem:[#allocation11 + $0x720] sm:$0xff]
    %v4548 = vld [vmem:[#allocation11 + $0x728] sm:$0xff]
    %v4549 = vld [vmem:[#allocation11 + $0x730] sm:$0xff]
    %v4550 = vld [vmem:[#allocation11 + $0x738] sm:$0xff]
    %v4551 = vld [vmem:[#allocation11 + $0x740] sm:$0xff]
    %v4552 = vld [vmem:[#allocation11 + $0x748] sm:$0xff]
    %v4553 = vld [vmem:[#allocation11 + $0x750] sm:$0xff]
    %v4554 = vld [vmem:[#allocation11 + $0x758] sm:$0xff]
    %v4555 = vld [vmem:[#allocation11 + $0x760] sm:$0xff]
    %v4556 = vld [vmem:[#allocation11 + $0x768] sm:$0xff]
    %v4557 = vld [vmem:[#allocation11 + $0x770] sm:$0xff]
    %v4558 = vld [vmem:[#allocation11 + $0x778] sm:$0xff]
    %v4559 = vld [vmem:[#allocation11 + $0x780] sm:$0xff]
    %v4560 = vld [vmem:[#allocation11 + $0x788] sm:$0xff]
    %v4561 = vld [vmem:[#allocation11 + $0x790] sm:$0xff]
    %v4562 = vld [vmem:[#allocation11 + $0x798] sm:$0xff]
    %v4563 = vld [vmem:[#allocation11 + $0x7a0] sm:$0xff]
    %v4564 = vld [vmem:[#allocation11 + $0x7a8] sm:$0xff]
    %v4565 = vld [vmem:[#allocation11 + $0x7b0] sm:$0xff]
    %v4566 = vld [vmem:[#allocation11 + $0x7b8] sm:$0xff]
    %v4567 = vld [vmem:[#allocation11 + $0x7c0] sm:$0xff]
    %v4568 = vld [vmem:[#allocation11 + $0x7c8] sm:$0xff]
    %v4569 = vld [vmem:[#allocation11 + $0x7d0] sm:$0xff]
    %v4570 = vld [vmem:[#allocation11 + $0x7d8] sm:$0xff]
    %v4571 = vld [vmem:[#allocation11 + $0x7e0] sm:$0xff]
    %v4572 = vld [vmem:[#allocation11 + $0x7e8] sm:$0xff]
    %v4573 = vld [vmem:[#allocation11 + $0x7f0] sm:$0xff]
    %v4574 = vld [vmem:[#allocation11 + $0x7f8] sm:$0xff]
    %v4575 = vld [vmem:[#allocation13] sm:$0xf]
    %v4577 = vlaneseq
    %v4578 = vshrl.u32 %v4577, 7
    %v4579 = vsub.s32 0, %v4578
    %v4580 = vrot.slane %v4575, %v4579
    %v4581 = vlaneseq
    %v4582 = vshrl.u32 %v4581, 7
    %v4583 = vsub.s32 1, %v4582
    %v4584 = vrot.slane %v4575, %v4583
    %v4585 = vlaneseq
    %v4586 = vshrl.u32 %v4585, 7
    %v4587 = vsub.s32 2, %v4586
    %v4588 = vrot.slane %v4575, %v4587
    %v4589 = vlaneseq
    %v4590 = vshrl.u32 %v4589, 7
    %v4591 = vsub.s32 3, %v4590
    %v4592 = vrot.slane %v4575, %v4591
    %v4853 = vunpack.c.l.b16 %v4319
    %v4854 = vunpack.c.h.b16 %v4319
    %v4855 = vunpack.c.l.b16 %v4320
    %v4856 = vunpack.c.h.b16 %v4320
    %v4857 = vunpack.c.l.b16 %v4321
    %v4858 = vunpack.c.h.b16 %v4321
    %v4859 = vunpack.c.l.b16 %v4322
    %v4860 = vunpack.c.h.b16 %v4322
    %v4861 = vunpack.c.l.b16 %v4323
    %v4862 = vunpack.c.h.b16 %v4323
    %v4863 = vunpack.c.l.b16 %v4324
    %v4864 = vunpack.c.h.b16 %v4324
    %v4865 = vunpack.c.l.b16 %v4325
    %v4866 = vunpack.c.h.b16 %v4325
    %v4867 = vunpack.c.l.b16 %v4326
    %v4868 = vunpack.c.h.b16 %v4326
    %v4869 = vunpack.c.l.b16 %v4327
    %v4870 = vunpack.c.h.b16 %v4327
    %v4871 = vunpack.c.l.b16 %v4328
    %v4872 = vunpack.c.h.b16 %v4328
    %v4873 = vunpack.c.l.b16 %v4329
    %v4874 = vunpack.c.h.b16 %v4329
    %v4875 = vunpack.c.l.b16 %v4330
    %v4876 = vunpack.c.h.b16 %v4330
    %v4877 = vunpack.c.l.b16 %v4331
    %v4878 = vunpack.c.h.b16 %v4331
    %v4879 = vunpack.c.l.b16 %v4332
    %v4880 = vunpack.c.h.b16 %v4332
    %v4881 = vunpack.c.l.b16 %v4333
    %v4882 = vunpack.c.h.b16 %v4333
    %v4883 = vunpack.c.l.b16 %v4334
    %v4884 = vunpack.c.h.b16 %v4334
    %v4885 = vunpack.c.l.b16 %v4335
    %v4886 = vunpack.c.h.b16 %v4335
    %v4887 = vunpack.c.l.b16 %v4336
    %v4888 = vunpack.c.h.b16 %v4336
    %v4889 = vunpack.c.l.b16 %v4337
    %v4890 = vunpack.c.h.b16 %v4337
    %v4891 = vunpack.c.l.b16 %v4338
    %v4892 = vunpack.c.h.b16 %v4338
    %v4893 = vunpack.c.l.b16 %v4339
    %v4894 = vunpack.c.h.b16 %v4339
    %v4895 = vunpack.c.l.b16 %v4340
    %v4896 = vunpack.c.h.b16 %v4340
    %v4897 = vunpack.c.l.b16 %v4341
    %v4898 = vunpack.c.h.b16 %v4341
    %v4899 = vunpack.c.l.b16 %v4342
    %v4900 = vunpack.c.h.b16 %v4342
    %v4901 = vunpack.c.l.b16 %v4343
    %v4902 = vunpack.c.h.b16 %v4343
    %v4903 = vunpack.c.l.b16 %v4344
    %v4904 = vunpack.c.h.b16 %v4344
    %v4905 = vunpack.c.l.b16 %v4345
    %v4906 = vunpack.c.h.b16 %v4345
    %v4907 = vunpack.c.l.b16 %v4346
    %v4908 = vunpack.c.h.b16 %v4346
    %v4909 = vunpack.c.l.b16 %v4347
    %v4910 = vunpack.c.h.b16 %v4347
    %v4911 = vunpack.c.l.b16 %v4348
    %v4912 = vunpack.c.h.b16 %v4348
    %v4913 = vunpack.c.l.b16 %v4349
    %v4914 = vunpack.c.h.b16 %v4349
    %v4915 = vunpack.c.l.b16 %v4350
    %v4916 = vunpack.c.h.b16 %v4350
    %v4917 = vunpack.c.l.b16 %v4351
    %v4918 = vunpack.c.h.b16 %v4351
    %v4919 = vunpack.c.l.b16 %v4352
    %v4920 = vunpack.c.h.b16 %v4352
    %v4921 = vunpack.c.l.b16 %v4353
    %v4922 = vunpack.c.h.b16 %v4353
    %v4923 = vunpack.c.l.b16 %v4354
    %v4924 = vunpack.c.h.b16 %v4354
    %v4925 = vunpack.c.l.b16 %v4355
    %v4926 = vunpack.c.h.b16 %v4355
    %v4927 = vunpack.c.l.b16 %v4356
    %v4928 = vunpack.c.h.b16 %v4356
    %v4929 = vunpack.c.l.b16 %v4357
    %v4930 = vunpack.c.h.b16 %v4357
    %v4931 = vunpack.c.l.b16 %v4358
    %v4932 = vunpack.c.h.b16 %v4358
    %v4933 = vunpack.c.l.b16 %v4359
    %v4934 = vunpack.c.h.b16 %v4359
    %v4935 = vunpack.c.l.b16 %v4360
    %v4936 = vunpack.c.h.b16 %v4360
    %v4937 = vunpack.c.l.b16 %v4361
    %v4938 = vunpack.c.h.b16 %v4361
    %v4939 = vunpack.c.l.b16 %v4362
    %v4940 = vunpack.c.h.b16 %v4362
    %v4941 = vunpack.c.l.b16 %v4363
    %v4942 = vunpack.c.h.b16 %v4363
    %v4943 = vunpack.c.l.b16 %v4364
    %v4944 = vunpack.c.h.b16 %v4364
    %v4945 = vunpack.c.l.b16 %v4365
    %v4946 = vunpack.c.h.b16 %v4365
    %v4947 = vunpack.c.l.b16 %v4366
    %v4948 = vunpack.c.h.b16 %v4366
    %v4949 = vunpack.c.l.b16 %v4367
    %v4950 = vunpack.c.h.b16 %v4367
    %v4951 = vunpack.c.l.b16 %v4368
    %v4952 = vunpack.c.h.b16 %v4368
    %v4953 = vunpack.c.l.b16 %v4369
    %v4954 = vunpack.c.h.b16 %v4369
    %v4955 = vunpack.c.l.b16 %v4370
    %v4956 = vunpack.c.h.b16 %v4370
    %v4957 = vunpack.c.l.b16 %v4371
    %v4958 = vunpack.c.h.b16 %v4371
    %v4959 = vunpack.c.l.b16 %v4372
    %v4960 = vunpack.c.h.b16 %v4372
    %v4961 = vunpack.c.l.b16 %v4373
    %v4962 = vunpack.c.h.b16 %v4373
    %v4963 = vunpack.c.l.b16 %v4374
    %v4964 = vunpack.c.h.b16 %v4374
    %v4965 = vunpack.c.l.b16 %v4375
    %v4966 = vunpack.c.h.b16 %v4375
    %v4967 = vunpack.c.l.b16 %v4376
    %v4968 = vunpack.c.h.b16 %v4376
    %v4969 = vunpack.c.l.b16 %v4377
    %v4970 = vunpack.c.h.b16 %v4377
    %v4971 = vunpack.c.l.b16 %v4378
    %v4972 = vunpack.c.h.b16 %v4378
    %v4973 = vunpack.c.l.b16 %v4379
    %v4974 = vunpack.c.h.b16 %v4379
    %v4975 = vunpack.c.l.b16 %v4380
    %v4976 = vunpack.c.h.b16 %v4380
    %v4977 = vunpack.c.l.b16 %v4381
    %v4978 = vunpack.c.h.b16 %v4381
    %v4979 = vunpack.c.l.b16 %v4382
    %v4980 = vunpack.c.h.b16 %v4382
    %v4981 = vunpack.c.l.b16 %v4383
    %v4982 = vunpack.c.h.b16 %v4383
    %v4983 = vunpack.c.l.b16 %v4384
    %v4984 = vunpack.c.h.b16 %v4384
    %v4985 = vunpack.c.l.b16 %v4385
    %v4986 = vunpack.c.h.b16 %v4385
    %v4987 = vunpack.c.l.b16 %v4386
    %v4988 = vunpack.c.h.b16 %v4386
    %v4989 = vunpack.c.l.b16 %v4387
    %v4990 = vunpack.c.h.b16 %v4387
    %v4991 = vunpack.c.l.b16 %v4388
    %v4992 = vunpack.c.h.b16 %v4388
    %v4993 = vunpack.c.l.b16 %v4389
    %v4994 = vunpack.c.h.b16 %v4389
    %v4995 = vunpack.c.l.b16 %v4390
    %v4996 = vunpack.c.h.b16 %v4390
    %v4997 = vunpack.c.l.b16 %v4391
    %v4998 = vunpack.c.h.b16 %v4391
    %v4999 = vunpack.c.l.b16 %v4392
    %v5000 = vunpack.c.h.b16 %v4392
    %v5001 = vunpack.c.l.b16 %v4393
    %v5002 = vunpack.c.h.b16 %v4393
    %v5003 = vunpack.c.l.b16 %v4394
    %v5004 = vunpack.c.h.b16 %v4394
    %v5005 = vunpack.c.l.b16 %v4395
    %v5006 = vunpack.c.h.b16 %v4395
    %v5007 = vunpack.c.l.b16 %v4396
    %v5008 = vunpack.c.h.b16 %v4396
    %v5009 = vunpack.c.l.b16 %v4397
    %v5010 = vunpack.c.h.b16 %v4397
    %v5011 = vunpack.c.l.b16 %v4398
    %v5012 = vunpack.c.h.b16 %v4398
    %v5013 = vunpack.c.l.b16 %v4399
    %v5014 = vunpack.c.h.b16 %v4399
    %v5015 = vunpack.c.l.b16 %v4400
    %v5016 = vunpack.c.h.b16 %v4400
    %v5017 = vunpack.c.l.b16 %v4401
    %v5018 = vunpack.c.h.b16 %v4401
    %v5019 = vunpack.c.l.b16 %v4402
    %v5020 = vunpack.c.h.b16 %v4402
    %v5021 = vunpack.c.l.b16 %v4403
    %v5022 = vunpack.c.h.b16 %v4403
    %v5023 = vunpack.c.l.b16 %v4404
    %v5024 = vunpack.c.h.b16 %v4404
    %v5025 = vunpack.c.l.b16 %v4405
    %v5026 = vunpack.c.h.b16 %v4405
    %v5027 = vunpack.c.l.b16 %v4406
    %v5028 = vunpack.c.h.b16 %v4406
    %v5029 = vunpack.c.l.b16 %v4407
    %v5030 = vunpack.c.h.b16 %v4407
    %v5031 = vunpack.c.l.b16 %v4408
    %v5032 = vunpack.c.h.b16 %v4408
    %v5033 = vunpack.c.l.b16 %v4409
    %v5034 = vunpack.c.h.b16 %v4409
    %v5035 = vunpack.c.l.b16 %v4410
    %v5036 = vunpack.c.h.b16 %v4410
    %v5037 = vunpack.c.l.b16 %v4411
    %v5038 = vunpack.c.h.b16 %v4411
    %v5039 = vunpack.c.l.b16 %v4412
    %v5040 = vunpack.c.h.b16 %v4412
    %v5041 = vunpack.c.l.b16 %v4413
    %v5042 = vunpack.c.h.b16 %v4413
    %v5043 = vunpack.c.l.b16 %v4414
    %v5044 = vunpack.c.h.b16 %v4414
    %v5045 = vunpack.c.l.b16 %v4415
    %v5046 = vunpack.c.h.b16 %v4415
    %v5047 = vunpack.c.l.b16 %v4416
    %v5048 = vunpack.c.h.b16 %v4416
    %v5049 = vunpack.c.l.b16 %v4417
    %v5050 = vunpack.c.h.b16 %v4417
    %v5051 = vunpack.c.l.b16 %v4418
    %v5052 = vunpack.c.h.b16 %v4418
    %v5053 = vunpack.c.l.b16 %v4419
    %v5054 = vunpack.c.h.b16 %v4419
    %v5055 = vunpack.c.l.b16 %v4420
    %v5056 = vunpack.c.h.b16 %v4420
    %v5057 = vunpack.c.l.b16 %v4421
    %v5058 = vunpack.c.h.b16 %v4421
    %v5059 = vunpack.c.l.b16 %v4422
    %v5060 = vunpack.c.h.b16 %v4422
    %v5061 = vunpack.c.l.b16 %v4423
    %v5062 = vunpack.c.h.b16 %v4423
    %v5063 = vunpack.c.l.b16 %v4424
    %v5064 = vunpack.c.h.b16 %v4424
    %v5065 = vunpack.c.l.b16 %v4425
    %v5066 = vunpack.c.h.b16 %v4425
    %v5067 = vunpack.c.l.b16 %v4426
    %v5068 = vunpack.c.h.b16 %v4426
    %v5069 = vunpack.c.l.b16 %v4427
    %v5070 = vunpack.c.h.b16 %v4427
    %v5071 = vunpack.c.l.b16 %v4428
    %v5072 = vunpack.c.h.b16 %v4428
    %v5073 = vunpack.c.l.b16 %v4429
    %v5074 = vunpack.c.h.b16 %v4429
    %v5075 = vunpack.c.l.b16 %v4430
    %v5076 = vunpack.c.h.b16 %v4430
    %v5077 = vunpack.c.l.b16 %v4431
    %v5078 = vunpack.c.h.b16 %v4431
    %v5079 = vunpack.c.l.b16 %v4432
    %v5080 = vunpack.c.h.b16 %v4432
    %v5081 = vunpack.c.l.b16 %v4433
    %v5082 = vunpack.c.h.b16 %v4433
    %v5083 = vunpack.c.l.b16 %v4434
    %v5084 = vunpack.c.h.b16 %v4434
    %v5085 = vunpack.c.l.b16 %v4435
    %v5086 = vunpack.c.h.b16 %v4435
    %v5087 = vunpack.c.l.b16 %v4436
    %v5088 = vunpack.c.h.b16 %v4436
    %v5089 = vunpack.c.l.b16 %v4437
    %v5090 = vunpack.c.h.b16 %v4437
    %v5091 = vunpack.c.l.b16 %v4438
    %v5092 = vunpack.c.h.b16 %v4438
    %v5093 = vunpack.c.l.b16 %v4439
    %v5094 = vunpack.c.h.b16 %v4439
    %v5095 = vunpack.c.l.b16 %v4440
    %v5096 = vunpack.c.h.b16 %v4440
    %v5097 = vunpack.c.l.b16 %v4441
    %v5098 = vunpack.c.h.b16 %v4441
    %v5099 = vunpack.c.l.b16 %v4442
    %v5100 = vunpack.c.h.b16 %v4442
    %v5101 = vunpack.c.l.b16 %v4443
    %v5102 = vunpack.c.h.b16 %v4443
    %v5103 = vunpack.c.l.b16 %v4444
    %v5104 = vunpack.c.h.b16 %v4444
    %v5105 = vunpack.c.l.b16 %v4445
    %v5106 = vunpack.c.h.b16 %v4445
    %v5107 = vunpack.c.l.b16 %v4446
    %v5108 = vunpack.c.h.b16 %v4446
    %v5109 = vunpack.c.l.b16 %v4447
    %v5110 = vunpack.c.h.b16 %v4447
    %v5111 = vunpack.c.l.b16 %v4448
    %v5112 = vunpack.c.h.b16 %v4448
    %v5113 = vunpack.c.l.b16 %v4449
    %v5114 = vunpack.c.h.b16 %v4449
    %v5115 = vunpack.c.l.b16 %v4450
    %v5116 = vunpack.c.h.b16 %v4450
    %v5117 = vunpack.c.l.b16 %v4451
    %v5118 = vunpack.c.h.b16 %v4451
    %v5119 = vunpack.c.l.b16 %v4452
    %v5120 = vunpack.c.h.b16 %v4452
    %v5121 = vunpack.c.l.b16 %v4453
    %v5122 = vunpack.c.h.b16 %v4453
    %v5123 = vunpack.c.l.b16 %v4454
    %v5124 = vunpack.c.h.b16 %v4454
    %v5125 = vunpack.c.l.b16 %v4455
    %v5126 = vunpack.c.h.b16 %v4455
    %v5127 = vunpack.c.l.b16 %v4456
    %v5128 = vunpack.c.h.b16 %v4456
    %v5129 = vunpack.c.l.b16 %v4457
    %v5130 = vunpack.c.h.b16 %v4457
    %v5131 = vunpack.c.l.b16 %v4458
    %v5132 = vunpack.c.h.b16 %v4458
    %v5133 = vunpack.c.l.b16 %v4459
    %v5134 = vunpack.c.h.b16 %v4459
    %v5135 = vunpack.c.l.b16 %v4460
    %v5136 = vunpack.c.h.b16 %v4460
    %v5137 = vunpack.c.l.b16 %v4461
    %v5138 = vunpack.c.h.b16 %v4461
    %v5139 = vunpack.c.l.b16 %v4462
    %v5140 = vunpack.c.h.b16 %v4462
    %v5141 = vunpack.c.l.b16 %v4463
    %v5142 = vunpack.c.h.b16 %v4463
    %v5143 = vunpack.c.l.b16 %v4464
    %v5144 = vunpack.c.h.b16 %v4464
    %v5145 = vunpack.c.l.b16 %v4465
    %v5146 = vunpack.c.h.b16 %v4465
    %v5147 = vunpack.c.l.b16 %v4466
    %v5148 = vunpack.c.h.b16 %v4466
    %v5149 = vunpack.c.l.b16 %v4467
    %v5150 = vunpack.c.h.b16 %v4467
    %v5151 = vunpack.c.l.b16 %v4468
    %v5152 = vunpack.c.h.b16 %v4468
    %v5153 = vunpack.c.l.b16 %v4469
    %v5154 = vunpack.c.h.b16 %v4469
    %v5155 = vunpack.c.l.b16 %v4470
    %v5156 = vunpack.c.h.b16 %v4470
    %v5157 = vunpack.c.l.b16 %v4471
    %v5158 = vunpack.c.h.b16 %v4471
    %v5159 = vunpack.c.l.b16 %v4472
    %v5160 = vunpack.c.h.b16 %v4472
    %v5161 = vunpack.c.l.b16 %v4473
    %v5162 = vunpack.c.h.b16 %v4473
    %v5163 = vunpack.c.l.b16 %v4474
    %v5164 = vunpack.c.h.b16 %v4474
    %v5165 = vunpack.c.l.b16 %v4475
    %v5166 = vunpack.c.h.b16 %v4475
    %v5167 = vunpack.c.l.b16 %v4476
    %v5168 = vunpack.c.h.b16 %v4476
    %v5169 = vunpack.c.l.b16 %v4477
    %v5170 = vunpack.c.h.b16 %v4477
    %v5171 = vunpack.c.l.b16 %v4478
    %v5172 = vunpack.c.h.b16 %v4478
    %v5173 = vunpack.c.l.b16 %v4479
    %v5174 = vunpack.c.h.b16 %v4479
    %v5175 = vunpack.c.l.b16 %v4480
    %v5176 = vunpack.c.h.b16 %v4480
    %v5177 = vunpack.c.l.b16 %v4481
    %v5178 = vunpack.c.h.b16 %v4481
    %v5179 = vunpack.c.l.b16 %v4482
    %v5180 = vunpack.c.h.b16 %v4482
    %v5181 = vunpack.c.l.b16 %v4483
    %v5182 = vunpack.c.h.b16 %v4483
    %v5183 = vunpack.c.l.b16 %v4484
    %v5184 = vunpack.c.h.b16 %v4484
    %v5185 = vunpack.c.l.b16 %v4485
    %v5186 = vunpack.c.h.b16 %v4485
    %v5187 = vunpack.c.l.b16 %v4486
    %v5188 = vunpack.c.h.b16 %v4486
    %v5189 = vunpack.c.l.b16 %v4487
    %v5190 = vunpack.c.h.b16 %v4487
    %v5191 = vunpack.c.l.b16 %v4488
    %v5192 = vunpack.c.h.b16 %v4488
    %v5193 = vunpack.c.l.b16 %v4489
    %v5194 = vunpack.c.h.b16 %v4489
    %v5195 = vunpack.c.l.b16 %v4490
    %v5196 = vunpack.c.h.b16 %v4490
    %v5197 = vunpack.c.l.b16 %v4491
    %v5198 = vunpack.c.h.b16 %v4491
    %v5199 = vunpack.c.l.b16 %v4492
    %v5200 = vunpack.c.h.b16 %v4492
    %v5201 = vunpack.c.l.b16 %v4493
    %v5202 = vunpack.c.h.b16 %v4493
    %v5203 = vunpack.c.l.b16 %v4494
    %v5204 = vunpack.c.h.b16 %v4494
    %v5205 = vunpack.c.l.b16 %v4495
    %v5206 = vunpack.c.h.b16 %v4495
    %v5207 = vunpack.c.l.b16 %v4496
    %v5208 = vunpack.c.h.b16 %v4496
    %v5209 = vunpack.c.l.b16 %v4497
    %v5210 = vunpack.c.h.b16 %v4497
    %v5211 = vunpack.c.l.b16 %v4498
    %v5212 = vunpack.c.h.b16 %v4498
    %v5213 = vunpack.c.l.b16 %v4499
    %v5214 = vunpack.c.h.b16 %v4499
    %v5215 = vunpack.c.l.b16 %v4500
    %v5216 = vunpack.c.h.b16 %v4500
    %v5217 = vunpack.c.l.b16 %v4501
    %v5218 = vunpack.c.h.b16 %v4501
    %v5219 = vunpack.c.l.b16 %v4502
    %v5220 = vunpack.c.h.b16 %v4502
    %v5221 = vunpack.c.l.b16 %v4503
    %v5222 = vunpack.c.h.b16 %v4503
    %v5223 = vunpack.c.l.b16 %v4504
    %v5224 = vunpack.c.h.b16 %v4504
    %v5225 = vunpack.c.l.b16 %v4505
    %v5226 = vunpack.c.h.b16 %v4505
    %v5227 = vunpack.c.l.b16 %v4506
    %v5228 = vunpack.c.h.b16 %v4506
    %v5229 = vunpack.c.l.b16 %v4507
    %v5230 = vunpack.c.h.b16 %v4507
    %v5231 = vunpack.c.l.b16 %v4508
    %v5232 = vunpack.c.h.b16 %v4508
    %v5233 = vunpack.c.l.b16 %v4509
    %v5234 = vunpack.c.h.b16 %v4509
    %v5235 = vunpack.c.l.b16 %v4510
    %v5236 = vunpack.c.h.b16 %v4510
    %v5237 = vunpack.c.l.b16 %v4511
    %v5238 = vunpack.c.h.b16 %v4511
    %v5239 = vunpack.c.l.b16 %v4512
    %v5240 = vunpack.c.h.b16 %v4512
    %v5241 = vunpack.c.l.b16 %v4513
    %v5242 = vunpack.c.h.b16 %v4513
    %v5243 = vunpack.c.l.b16 %v4514
    %v5244 = vunpack.c.h.b16 %v4514
    %v5245 = vunpack.c.l.b16 %v4515
    %v5246 = vunpack.c.h.b16 %v4515
    %v5247 = vunpack.c.l.b16 %v4516
    %v5248 = vunpack.c.h.b16 %v4516
    %v5249 = vunpack.c.l.b16 %v4517
    %v5250 = vunpack.c.h.b16 %v4517
    %v5251 = vunpack.c.l.b16 %v4518
    %v5252 = vunpack.c.h.b16 %v4518
    %v5253 = vunpack.c.l.b16 %v4519
    %v5254 = vunpack.c.h.b16 %v4519
    %v5255 = vunpack.c.l.b16 %v4520
    %v5256 = vunpack.c.h.b16 %v4520
    %v5257 = vunpack.c.l.b16 %v4521
    %v5258 = vunpack.c.h.b16 %v4521
    %v5259 = vunpack.c.l.b16 %v4522
    %v5260 = vunpack.c.h.b16 %v4522
    %v5261 = vunpack.c.l.b16 %v4523
    %v5262 = vunpack.c.h.b16 %v4523
    %v5263 = vunpack.c.l.b16 %v4524
    %v5264 = vunpack.c.h.b16 %v4524
    %v5265 = vunpack.c.l.b16 %v4525
    %v5266 = vunpack.c.h.b16 %v4525
    %v5267 = vunpack.c.l.b16 %v4526
    %v5268 = vunpack.c.h.b16 %v4526
    %v5269 = vunpack.c.l.b16 %v4527
    %v5270 = vunpack.c.h.b16 %v4527
    %v5271 = vunpack.c.l.b16 %v4528
    %v5272 = vunpack.c.h.b16 %v4528
    %v5273 = vunpack.c.l.b16 %v4529
    %v5274 = vunpack.c.h.b16 %v4529
    %v5275 = vunpack.c.l.b16 %v4530
    %v5276 = vunpack.c.h.b16 %v4530
    %v5277 = vunpack.c.l.b16 %v4531
    %v5278 = vunpack.c.h.b16 %v4531
    %v5279 = vunpack.c.l.b16 %v4532
    %v5280 = vunpack.c.h.b16 %v4532
    %v5281 = vunpack.c.l.b16 %v4533
    %v5282 = vunpack.c.h.b16 %v4533
    %v5283 = vunpack.c.l.b16 %v4534
    %v5284 = vunpack.c.h.b16 %v4534
    %v5285 = vunpack.c.l.b16 %v4535
    %v5286 = vunpack.c.h.b16 %v4535
    %v5287 = vunpack.c.l.b16 %v4536
    %v5288 = vunpack.c.h.b16 %v4536
    %v5289 = vunpack.c.l.b16 %v4537
    %v5290 = vunpack.c.h.b16 %v4537
    %v5291 = vunpack.c.l.b16 %v4538
    %v5292 = vunpack.c.h.b16 %v4538
    %v5293 = vunpack.c.l.b16 %v4539
    %v5294 = vunpack.c.h.b16 %v4539
    %v5295 = vunpack.c.l.b16 %v4540
    %v5296 = vunpack.c.h.b16 %v4540
    %v5297 = vunpack.c.l.b16 %v4541
    %v5298 = vunpack.c.h.b16 %v4541
    %v5299 = vunpack.c.l.b16 %v4542
    %v5300 = vunpack.c.h.b16 %v4542
    %v5301 = vunpack.c.l.b16 %v4543
    %v5302 = vunpack.c.h.b16 %v4543
    %v5303 = vunpack.c.l.b16 %v4544
    %v5304 = vunpack.c.h.b16 %v4544
    %v5305 = vunpack.c.l.b16 %v4545
    %v5306 = vunpack.c.h.b16 %v4545
    %v5307 = vunpack.c.l.b16 %v4546
    %v5308 = vunpack.c.h.b16 %v4546
    %v5309 = vunpack.c.l.b16 %v4547
    %v5310 = vunpack.c.h.b16 %v4547
    %v5311 = vunpack.c.l.b16 %v4548
    %v5312 = vunpack.c.h.b16 %v4548
    %v5313 = vunpack.c.l.b16 %v4549
    %v5314 = vunpack.c.h.b16 %v4549
    %v5315 = vunpack.c.l.b16 %v4550
    %v5316 = vunpack.c.h.b16 %v4550
    %v5317 = vunpack.c.l.b16 %v4551
    %v5318 = vunpack.c.h.b16 %v4551
    %v5319 = vunpack.c.l.b16 %v4552
    %v5320 = vunpack.c.h.b16 %v4552
    %v5321 = vunpack.c.l.b16 %v4553
    %v5322 = vunpack.c.h.b16 %v4553
    %v5323 = vunpack.c.l.b16 %v4554
    %v5324 = vunpack.c.h.b16 %v4554
    %v5325 = vunpack.c.l.b16 %v4555
    %v5326 = vunpack.c.h.b16 %v4555
    %v5327 = vunpack.c.l.b16 %v4556
    %v5328 = vunpack.c.h.b16 %v4556
    %v5329 = vunpack.c.l.b16 %v4557
    %v5330 = vunpack.c.h.b16 %v4557
    %v5331 = vunpack.c.l.b16 %v4558
    %v5332 = vunpack.c.h.b16 %v4558
    %v5333 = vunpack.c.l.b16 %v4559
    %v5334 = vunpack.c.h.b16 %v4559
    %v5335 = vunpack.c.l.b16 %v4560
    %v5336 = vunpack.c.h.b16 %v4560
    %v5337 = vunpack.c.l.b16 %v4561
    %v5338 = vunpack.c.h.b16 %v4561
    %v5339 = vunpack.c.l.b16 %v4562
    %v5340 = vunpack.c.h.b16 %v4562
    %v5341 = vunpack.c.l.b16 %v4563
    %v5342 = vunpack.c.h.b16 %v4563
    %v5343 = vunpack.c.l.b16 %v4564
    %v5344 = vunpack.c.h.b16 %v4564
    %v5345 = vunpack.c.l.b16 %v4565
    %v5346 = vunpack.c.h.b16 %v4565
    %v5347 = vunpack.c.l.b16 %v4566
    %v5348 = vunpack.c.h.b16 %v4566
    %v5349 = vunpack.c.l.b16 %v4567
    %v5350 = vunpack.c.h.b16 %v4567
    %v5351 = vunpack.c.l.b16 %v4568
    %v5352 = vunpack.c.h.b16 %v4568
    %v5353 = vunpack.c.l.b16 %v4569
    %v5354 = vunpack.c.h.b16 %v4569
    %v5355 = vunpack.c.l.b16 %v4570
    %v5356 = vunpack.c.h.b16 %v4570
    %v5357 = vunpack.c.l.b16 %v4571
    %v5358 = vunpack.c.h.b16 %v4571
    %v5359 = vunpack.c.l.b16 %v4572
    %v5360 = vunpack.c.h.b16 %v4572
    %v5361 = vunpack.c.l.b16 %v4573
    %v5362 = vunpack.c.h.b16 %v4573
    %v5363 = vunpack.c.l.b16 %v4574
    %v5364 = vunpack.c.h.b16 %v4574
    %v5365 = vpack.c.b16 %v4857, %v4853
    %v5366 = vpack.c.b16 %v4858, %v4854
    %v5367 = vpack.c.b16 %v4859, %v4855
    %v5368 = vpack.c.b16 %v4860, %v4856
    %v5369 = vpack.c.b16 %v4865, %v4861
    %v5370 = vpack.c.b16 %v4866, %v4862
    %v5371 = vpack.c.b16 %v4867, %v4863
    %v5372 = vpack.c.b16 %v4868, %v4864
    %v5373 = vpack.c.b16 %v4873, %v4869
    %v5374 = vpack.c.b16 %v4874, %v4870
    %v5375 = vpack.c.b16 %v4875, %v4871
    %v5376 = vpack.c.b16 %v4876, %v4872
    %v5377 = vpack.c.b16 %v4881, %v4877
    %v5378 = vpack.c.b16 %v4882, %v4878
    %v5379 = vpack.c.b16 %v4883, %v4879
    %v5380 = vpack.c.b16 %v4884, %v4880
    %v5381 = vpack.c.b16 %v4889, %v4885
    %v5382 = vpack.c.b16 %v4890, %v4886
    %v5383 = vpack.c.b16 %v4891, %v4887
    %v5384 = vpack.c.b16 %v4892, %v4888
    %v5385 = vpack.c.b16 %v4897, %v4893
    %v5386 = vpack.c.b16 %v4898, %v4894
    %v5387 = vpack.c.b16 %v4899, %v4895
    %v5388 = vpack.c.b16 %v4900, %v4896
    %v5389 = vpack.c.b16 %v4905, %v4901
    %v5390 = vpack.c.b16 %v4906, %v4902
    %v5391 = vpack.c.b16 %v4907, %v4903
    %v5392 = vpack.c.b16 %v4908, %v4904
    %v5393 = vpack.c.b16 %v4913, %v4909
    %v5394 = vpack.c.b16 %v4914, %v4910
    %v5395 = vpack.c.b16 %v4915, %v4911
    %v5396 = vpack.c.b16 %v4916, %v4912
    %v5397 = vpack.c.b16 %v4921, %v4917
    %v5398 = vpack.c.b16 %v4922, %v4918
    %v5399 = vpack.c.b16 %v4923, %v4919
    %v5400 = vpack.c.b16 %v4924, %v4920
    %v5401 = vpack.c.b16 %v4929, %v4925
    %v5402 = vpack.c.b16 %v4930, %v4926
    %v5403 = vpack.c.b16 %v4931, %v4927
    %v5404 = vpack.c.b16 %v4932, %v4928
    %v5405 = vpack.c.b16 %v4937, %v4933
    %v5406 = vpack.c.b16 %v4938, %v4934
    %v5407 = vpack.c.b16 %v4939, %v4935
    %v5408 = vpack.c.b16 %v4940, %v4936
    %v5409 = vpack.c.b16 %v4945, %v4941
    %v5410 = vpack.c.b16 %v4946, %v4942
    %v5411 = vpack.c.b16 %v4947, %v4943
    %v5412 = vpack.c.b16 %v4948, %v4944
    %v5413 = vpack.c.b16 %v4953, %v4949
    %v5414 = vpack.c.b16 %v4954, %v4950
    %v5415 = vpack.c.b16 %v4955, %v4951
    %v5416 = vpack.c.b16 %v4956, %v4952
    %v5417 = vpack.c.b16 %v4961, %v4957
    %v5418 = vpack.c.b16 %v4962, %v4958
    %v5419 = vpack.c.b16 %v4963, %v4959
    %v5420 = vpack.c.b16 %v4964, %v4960
    %v5421 = vpack.c.b16 %v4969, %v4965
    %v5422 = vpack.c.b16 %v4970, %v4966
    %v5423 = vpack.c.b16 %v4971, %v4967
    %v5424 = vpack.c.b16 %v4972, %v4968
    %v5425 = vpack.c.b16 %v4977, %v4973
    %v5426 = vpack.c.b16 %v4978, %v4974
    %v5427 = vpack.c.b16 %v4979, %v4975
    %v5428 = vpack.c.b16 %v4980, %v4976
    %v5429 = vpack.c.b16 %v4985, %v4981
    %v5430 = vpack.c.b16 %v4986, %v4982
    %v5431 = vpack.c.b16 %v4987, %v4983
    %v5432 = vpack.c.b16 %v4988, %v4984
    %v5433 = vpack.c.b16 %v4993, %v4989
    %v5434 = vpack.c.b16 %v4994, %v4990
    %v5435 = vpack.c.b16 %v4995, %v4991
    %v5436 = vpack.c.b16 %v4996, %v4992
    %v5437 = vpack.c.b16 %v5001, %v4997
    %v5438 = vpack.c.b16 %v5002, %v4998
    %v5439 = vpack.c.b16 %v5003, %v4999
    %v5440 = vpack.c.b16 %v5004, %v5000
    %v5441 = vpack.c.b16 %v5009, %v5005
    %v5442 = vpack.c.b16 %v5010, %v5006
    %v5443 = vpack.c.b16 %v5011, %v5007
    %v5444 = vpack.c.b16 %v5012, %v5008
    %v5445 = vpack.c.b16 %v5017, %v5013
    %v5446 = vpack.c.b16 %v5018, %v5014
    %v5447 = vpack.c.b16 %v5019, %v5015
    %v5448 = vpack.c.b16 %v5020, %v5016
    %v5449 = vpack.c.b16 %v5025, %v5021
    %v5450 = vpack.c.b16 %v5026, %v5022
    %v5451 = vpack.c.b16 %v5027, %v5023
    %v5452 = vpack.c.b16 %v5028, %v5024
    %v5453 = vpack.c.b16 %v5033, %v5029
    %v5454 = vpack.c.b16 %v5034, %v5030
    %v5455 = vpack.c.b16 %v5035, %v5031
    %v5456 = vpack.c.b16 %v5036, %v5032
    %v5457 = vpack.c.b16 %v5041, %v5037
    %v5458 = vpack.c.b16 %v5042, %v5038
    %v5459 = vpack.c.b16 %v5043, %v5039
    %v5460 = vpack.c.b16 %v5044, %v5040
    %v5461 = vpack.c.b16 %v5049, %v5045
    %v5462 = vpack.c.b16 %v5050, %v5046
    %v5463 = vpack.c.b16 %v5051, %v5047
    %v5464 = vpack.c.b16 %v5052, %v5048
    %v5465 = vpack.c.b16 %v5057, %v5053
    %v5466 = vpack.c.b16 %v5058, %v5054
    %v5467 = vpack.c.b16 %v5059, %v5055
    %v5468 = vpack.c.b16 %v5060, %v5056
    %v5469 = vpack.c.b16 %v5065, %v5061
    %v5470 = vpack.c.b16 %v5066, %v5062
    %v5471 = vpack.c.b16 %v5067, %v5063
    %v5472 = vpack.c.b16 %v5068, %v5064
    %v5473 = vpack.c.b16 %v5073, %v5069
    %v5474 = vpack.c.b16 %v5074, %v5070
    %v5475 = vpack.c.b16 %v5075, %v5071
    %v5476 = vpack.c.b16 %v5076, %v5072
    %v5477 = vpack.c.b16 %v5081, %v5077
    %v5478 = vpack.c.b16 %v5082, %v5078
    %v5479 = vpack.c.b16 %v5083, %v5079
    %v5480 = vpack.c.b16 %v5084, %v5080
    %v5481 = vpack.c.b16 %v5089, %v5085
    %v5482 = vpack.c.b16 %v5090, %v5086
    %v5483 = vpack.c.b16 %v5091, %v5087
    %v5484 = vpack.c.b16 %v5092, %v5088
    %v5485 = vpack.c.b16 %v5097, %v5093
    %v5486 = vpack.c.b16 %v5098, %v5094
    %v5487 = vpack.c.b16 %v5099, %v5095
    %v5488 = vpack.c.b16 %v5100, %v5096
    %v5489 = vpack.c.b16 %v5105, %v5101
    %v5490 = vpack.c.b16 %v5106, %v5102
    %v5491 = vpack.c.b16 %v5107, %v5103
    %v5492 = vpack.c.b16 %v5108, %v5104
    %v5493 = vpack.c.b16 %v5113, %v5109
    %v5494 = vpack.c.b16 %v5114, %v5110
    %v5495 = vpack.c.b16 %v5115, %v5111
    %v5496 = vpack.c.b16 %v5116, %v5112
    %v5497 = vpack.c.b16 %v5121, %v5117
    %v5498 = vpack.c.b16 %v5122, %v5118
    %v5499 = vpack.c.b16 %v5123, %v5119
    %v5500 = vpack.c.b16 %v5124, %v5120
    %v5501 = vpack.c.b16 %v5129, %v5125
    %v5502 = vpack.c.b16 %v5130, %v5126
    %v5503 = vpack.c.b16 %v5131, %v5127
    %v5504 = vpack.c.b16 %v5132, %v5128
    %v5505 = vpack.c.b16 %v5137, %v5133
    %v5506 = vpack.c.b16 %v5138, %v5134
    %v5507 = vpack.c.b16 %v5139, %v5135
    %v5508 = vpack.c.b16 %v5140, %v5136
    %v5509 = vpack.c.b16 %v5145, %v5141
    %v5510 = vpack.c.b16 %v5146, %v5142
    %v5511 = vpack.c.b16 %v5147, %v5143
    %v5512 = vpack.c.b16 %v5148, %v5144
    %v5513 = vpack.c.b16 %v5153, %v5149
    %v5514 = vpack.c.b16 %v5154, %v5150
    %v5515 = vpack.c.b16 %v5155, %v5151
    %v5516 = vpack.c.b16 %v5156, %v5152
    %v5517 = vpack.c.b16 %v5161, %v5157
    %v5518 = vpack.c.b16 %v5162, %v5158
    %v5519 = vpack.c.b16 %v5163, %v5159
    %v5520 = vpack.c.b16 %v5164, %v5160
    %v5521 = vpack.c.b16 %v5169, %v5165
    %v5522 = vpack.c.b16 %v5170, %v5166
    %v5523 = vpack.c.b16 %v5171, %v5167
    %v5524 = vpack.c.b16 %v5172, %v5168
    %v5525 = vpack.c.b16 %v5177, %v5173
    %v5526 = vpack.c.b16 %v5178, %v5174
    %v5527 = vpack.c.b16 %v5179, %v5175
    %v5528 = vpack.c.b16 %v5180, %v5176
    %v5529 = vpack.c.b16 %v5185, %v5181
    %v5530 = vpack.c.b16 %v5186, %v5182
    %v5531 = vpack.c.b16 %v5187, %v5183
    %v5532 = vpack.c.b16 %v5188, %v5184
    %v5533 = vpack.c.b16 %v5193, %v5189
    %v5534 = vpack.c.b16 %v5194, %v5190
    %v5535 = vpack.c.b16 %v5195, %v5191
    %v5536 = vpack.c.b16 %v5196, %v5192
    %v5537 = vpack.c.b16 %v5201, %v5197
    %v5538 = vpack.c.b16 %v5202, %v5198
    %v5539 = vpack.c.b16 %v5203, %v5199
    %v5540 = vpack.c.b16 %v5204, %v5200
    %v5541 = vpack.c.b16 %v5209, %v5205
    %v5542 = vpack.c.b16 %v5210, %v5206
    %v5543 = vpack.c.b16 %v5211, %v5207
    %v5544 = vpack.c.b16 %v5212, %v5208
    %v5545 = vpack.c.b16 %v5217, %v5213
    %v5546 = vpack.c.b16 %v5218, %v5214
    %v5547 = vpack.c.b16 %v5219, %v5215
    %v5548 = vpack.c.b16 %v5220, %v5216
    %v5549 = vpack.c.b16 %v5225, %v5221
    %v5550 = vpack.c.b16 %v5226, %v5222
    %v5551 = vpack.c.b16 %v5227, %v5223
    %v5552 = vpack.c.b16 %v5228, %v5224
    %v5553 = vpack.c.b16 %v5233, %v5229
    %v5554 = vpack.c.b16 %v5234, %v5230
    %v5555 = vpack.c.b16 %v5235, %v5231
    %v5556 = vpack.c.b16 %v5236, %v5232
    %v5557 = vpack.c.b16 %v5241, %v5237
    %v5558 = vpack.c.b16 %v5242, %v5238
    %v5559 = vpack.c.b16 %v5243, %v5239
    %v5560 = vpack.c.b16 %v5244, %v5240
    %v5561 = vpack.c.b16 %v5249, %v5245
    %v5562 = vpack.c.b16 %v5250, %v5246
    %v5563 = vpack.c.b16 %v5251, %v5247
    %v5564 = vpack.c.b16 %v5252, %v5248
    %v5565 = vpack.c.b16 %v5257, %v5253
    %v5566 = vpack.c.b16 %v5258, %v5254
    %v5567 = vpack.c.b16 %v5259, %v5255
    %v5568 = vpack.c.b16 %v5260, %v5256
    %v5569 = vpack.c.b16 %v5265, %v5261
    %v5570 = vpack.c.b16 %v5266, %v5262
    %v5571 = vpack.c.b16 %v5267, %v5263
    %v5572 = vpack.c.b16 %v5268, %v5264
    %v5573 = vpack.c.b16 %v5273, %v5269
    %v5574 = vpack.c.b16 %v5274, %v5270
    %v5575 = vpack.c.b16 %v5275, %v5271
    %v5576 = vpack.c.b16 %v5276, %v5272
    %v5577 = vpack.c.b16 %v5281, %v5277
    %v5578 = vpack.c.b16 %v5282, %v5278
    %v5579 = vpack.c.b16 %v5283, %v5279
    %v5580 = vpack.c.b16 %v5284, %v5280
    %v5581 = vpack.c.b16 %v5289, %v5285
    %v5582 = vpack.c.b16 %v5290, %v5286
    %v5583 = vpack.c.b16 %v5291, %v5287
    %v5584 = vpack.c.b16 %v5292, %v5288
    %v5585 = vpack.c.b16 %v5297, %v5293
    %v5586 = vpack.c.b16 %v5298, %v5294
    %v5587 = vpack.c.b16 %v5299, %v5295
    %v5588 = vpack.c.b16 %v5300, %v5296
    %v5589 = vpack.c.b16 %v5305, %v5301
    %v5590 = vpack.c.b16 %v5306, %v5302
    %v5591 = vpack.c.b16 %v5307, %v5303
    %v5592 = vpack.c.b16 %v5308, %v5304
    %v5593 = vpack.c.b16 %v5313, %v5309
    %v5594 = vpack.c.b16 %v5314, %v5310
    %v5595 = vpack.c.b16 %v5315, %v5311
    %v5596 = vpack.c.b16 %v5316, %v5312
    %v5597 = vpack.c.b16 %v5321, %v5317
    %v5598 = vpack.c.b16 %v5322, %v5318
    %v5599 = vpack.c.b16 %v5323, %v5319
    %v5600 = vpack.c.b16 %v5324, %v5320
    %v5601 = vpack.c.b16 %v5329, %v5325
    %v5602 = vpack.c.b16 %v5330, %v5326
    %v5603 = vpack.c.b16 %v5331, %v5327
    %v5604 = vpack.c.b16 %v5332, %v5328
    %v5605 = vpack.c.b16 %v5337, %v5333
    %v5606 = vpack.c.b16 %v5338, %v5334
    %v5607 = vpack.c.b16 %v5339, %v5335
    %v5608 = vpack.c.b16 %v5340, %v5336
    %v5609 = vpack.c.b16 %v5345, %v5341
    %v5610 = vpack.c.b16 %v5346, %v5342
    %v5611 = vpack.c.b16 %v5347, %v5343
    %v5612 = vpack.c.b16 %v5348, %v5344
    %v5613 = vpack.c.b16 %v5353, %v5349
    %v5614 = vpack.c.b16 %v5354, %v5350
    %v5615 = vpack.c.b16 %v5355, %v5351
    %v5616 = vpack.c.b16 %v5356, %v5352
    %v5617 = vpack.c.b16 %v5361, %v5357
    %v5618 = vpack.c.b16 %v5362, %v5358
    %v5619 = vpack.c.b16 %v5363, %v5359
    %v5620 = vpack.c.b16 %v5364, %v5360
    %5877 = vmatprep.subr.bf16.mxu0 %v5366
    %5878 = vmatpush1.bf16.msra.mxu0 %v5365
    %5879 = vmatprep.subr.bf16.mxu0 %v5370
    %5880 = vmatpush1.bf16.msra.mxu0 %v5369
    %5881 = vmatprep.subr.bf16.mxu0 %v5374
    %5882 = vmatpush1.bf16.msra.mxu0 %v5373
    %5883 = vmatprep.subr.bf16.mxu0 %v5378
    %5884 = vmatpush1.bf16.msra.mxu0 %v5377
    %5885 = vmatprep.subr.bf16.mxu0 %v5382
    %5886 = vmatpush1.bf16.msra.mxu0 %v5381
    %5887 = vmatprep.subr.bf16.mxu0 %v5386
    %5888 = vmatpush1.bf16.msra.mxu0 %v5385
    %5889 = vmatprep.subr.bf16.mxu0 %v5390
    %5890 = vmatpush1.bf16.msra.mxu0 %v5389
    %5891 = vmatprep.subr.bf16.mxu0 %v5394
    %5892 = vmatpush1.bf16.msra.mxu0 %v5393
    %5893 = vmatprep.subr.bf16.mxu0 %v5398
    %5894 = vmatpush1.bf16.msra.mxu0 %v5397
    %5895 = vmatprep.subr.bf16.mxu0 %v5402
    %5896 = vmatpush1.bf16.msra.mxu0 %v5401
    %5897 = vmatprep.subr.bf16.mxu0 %v5406
    %5898 = vmatpush1.bf16.msra.mxu0 %v5405
    %5899 = vmatprep.subr.bf16.mxu0 %v5410
    %5900 = vmatpush1.bf16.msra.mxu0 %v5409
    %5901 = vmatprep.subr.bf16.mxu0 %v5414
    %5902 = vmatpush1.bf16.msra.mxu0 %v5413
    %5903 = vmatprep.subr.bf16.mxu0 %v5418
    %5904 = vmatpush1.bf16.msra.mxu0 %v5417
    %5905 = vmatprep.subr.bf16.mxu0 %v5422
    %5906 = vmatpush1.bf16.msra.mxu0 %v5421
    %5907 = vmatprep.subr.bf16.mxu0 %v5426
    %5908 = vmatpush1.bf16.msra.mxu0 %v5425
    %5909 = vmatprep.mubr.bf16.mxu0 %v4312
    %5910 = vmatmul.mubr.bf16.gmra.mrb[0].mxu0 %v4311
    %v5911 = vpop.f32.mrb[0].mxu0
    %v5912 = vadd.f32 %v4580, %v5911
    %v5913 = vpop.f32.mrb[0].mxu0
    %v5914 = vadd.f32 %v4584, %v5913
    %v5915 = vpop.f32.mrb[0].mxu0
    %v5916 = vpop.f32.mrb[0].mxu0
    %5917 = vdwg.mxu0
    %5918 = vmatprep.subr.bf16.mxu0 %v5430
    %5919 = vmatpush1.bf16.msra.mxu0 %v5429
    %5920 = vmatprep.subr.bf16.mxu0 %v5434
    %5921 = vmatpush1.bf16.msra.mxu0 %v5433
    %5922 = vmatprep.subr.bf16.mxu0 %v5438
    %5923 = vmatpush1.bf16.msra.mxu0 %v5437
    %5924 = vmatprep.subr.bf16.mxu0 %v5442
    %5925 = vmatpush1.bf16.msra.mxu0 %v5441
    %5926 = vmatprep.subr.bf16.mxu0 %v5446
    %5927 = vmatpush1.bf16.msra.mxu0 %v5445
    %5928 = vmatprep.subr.bf16.mxu0 %v5450
    %5929 = vmatpush1.bf16.msra.mxu0 %v5449
    %5930 = vmatprep.subr.bf16.mxu0 %v5454
    %5931 = vmatpush1.bf16.msra.mxu0 %v5453
    %5932 = vmatprep.subr.bf16.mxu0 %v5458
    %5933 = vmatpush1.bf16.msra.mxu0 %v5457
    %5934 = vmatprep.subr.bf16.mxu0 %v5462
    %5935 = vmatpush1.bf16.msra.mxu0 %v5461
    %5936 = vmatprep.subr.bf16.mxu0 %v5466
    %5937 = vmatpush1.bf16.msra.mxu0 %v5465
    %5938 = vmatprep.subr.bf16.mxu0 %v5470
    %5939 = vmatpush1.bf16.msra.mxu0 %v5469
    %5940 = vmatprep.subr.bf16.mxu0 %v5474
    %5941 = vmatpush1.bf16.msra.mxu0 %v5473
    %5942 = vmatprep.subr.bf16.mxu0 %v5478
    %5943 = vmatpush1.bf16.msra.mxu0 %v5477
    %5944 = vmatprep.subr.bf16.mxu0 %v5482
    %5945 = vmatpush1.bf16.msra.mxu0 %v5481
    %5946 = vmatprep.subr.bf16.mxu0 %v5486
    %5947 = vmatpush1.bf16.msra.mxu0 %v5485
    %5948 = vmatprep.subr.bf16.mxu0 %v5490
    %5949 = vmatpush1.bf16.msra.mxu0 %v5489
    %5950 = vmatprep.mubr.bf16.mxu0 %v4314
    %5951 = vmatmul.mubr.bf16.gmra.mrb[0].mxu0 %v4313
    %v5952 = vpop.f32.mrb[0].mxu0
    %v5953 = vadd.f32 %v5912, %v5952
    %v5954 = vpop.f32.mrb[0].mxu0
    %v5955 = vadd.f32 %v5914, %v5954
    %v5956 = vpop.f32.mrb[0].mxu0
    %v5957 = vpop.f32.mrb[0].mxu0
    %5958 = vdwg.mxu0
    %5959 = vmatprep.subr.bf16.mxu0 %v5494
    %5960 = vmatpush1.bf16.msra.mxu0 %v5493
    %5961 = vmatprep.subr.bf16.mxu0 %v5498
    %5962 = vmatpush1.bf16.msra.mxu0 %v5497
    %5963 = vmatprep.subr.bf16.mxu0 %v5502
    %5964 = vmatpush1.bf16.msra.mxu0 %v5501
    %5965 = vmatprep.subr.bf16.mxu0 %v5506
    %5966 = vmatpush1.bf16.msra.mxu0 %v5505
    %5967 = vmatprep.subr.bf16.mxu0 %v5510
    %5968 = vmatpush1.bf16.msra.mxu0 %v5509
    %5969 = vmatprep.subr.bf16.mxu0 %v5514
    %5970 = vmatpush1.bf16.msra.mxu0 %v5513
    %5971 = vmatprep.subr.bf16.mxu0 %v5518
    %5972 = vmatpush1.bf16.msra.mxu0 %v5517
    %5973 = vmatprep.subr.bf16.mxu0 %v5522
    %5974 = vmatpush1.bf16.msra.mxu0 %v5521
    %5975 = vmatprep.subr.bf16.mxu0 %v5526
    %5976 = vmatpush1.bf16.msra.mxu0 %v5525
    %5977 = vmatprep.subr.bf16.mxu0 %v5530
    %5978 = vmatpush1.bf16.msra.mxu0 %v5529
    %5979 = vmatprep.subr.bf16.mxu0 %v5534
    %5980 = vmatpush1.bf16.msra.mxu0 %v5533
    %5981 = vmatprep.subr.bf16.mxu0 %v5538
    %5982 = vmatpush1.bf16.msra.mxu0 %v5537
    %5983 = vmatprep.subr.bf16.mxu0 %v5542
    %5984 = vmatpush1.bf16.msra.mxu0 %v5541
    %5985 = vmatprep.subr.bf16.mxu0 %v5546
    %5986 = vmatpush1.bf16.msra.mxu0 %v5545
    %5987 = vmatprep.subr.bf16.mxu0 %v5550
    %5988 = vmatpush1.bf16.msra.mxu0 %v5549
    %5989 = vmatprep.subr.bf16.mxu0 %v5554
    %5990 = vmatpush1.bf16.msra.mxu0 %v5553
    %5991 = vmatprep.mubr.bf16.mxu0 %v4316
    %5992 = vmatmul.mubr.bf16.gmra.mrb[0].mxu0 %v4315
    %v5993 = vpop.f32.mrb[0].mxu0
    %v5994 = vadd.f32 %v5953, %v5993
    %v5995 = vpop.f32.mrb[0].mxu0
    %v5996 = vadd.f32 %v5955, %v5995
    %v5997 = vpop.f32.mrb[0].mxu0
    %v5998 = vpop.f32.mrb[0].mxu0
    %5999 = vdwg.mxu0
    %6000 = vmatprep.subr.bf16.mxu0 %v5558
    %6001 = vmatpush1.bf16.msra.mxu0 %v5557
    %6002 = vmatprep.subr.bf16.mxu0 %v5562
    %6003 = vmatpush1.bf16.msra.mxu0 %v5561
    %6004 = vmatprep.subr.bf16.mxu0 %v5566
    %6005 = vmatpush1.bf16.msra.mxu0 %v5565
    %6006 = vmatprep.subr.bf16.mxu0 %v5570
    %6007 = vmatpush1.bf16.msra.mxu0 %v5569
    %6008 = vmatprep.subr.bf16.mxu0 %v5574
    %6009 = vmatpush1.bf16.msra.mxu0 %v5573
    %6010 = vmatprep.subr.bf16.mxu0 %v5578
    %6011 = vmatpush1.bf16.msra.mxu0 %v5577
    %6012 = vmatprep.subr.bf16.mxu0 %v5582
    %6013 = vmatpush1.bf16.msra.mxu0 %v5581
    %6014 = vmatprep.subr.bf16.mxu0 %v5586
    %6015 = vmatpush1.bf16.msra.mxu0 %v5585
    %6016 = vmatprep.subr.bf16.mxu0 %v5590
    %6017 = vmatpush1.bf16.msra.mxu0 %v5589
    %6018 = vmatprep.subr.bf16.mxu0 %v5594
    %6019 = vmatpush1.bf16.msra.mxu0 %v5593
    %6020 = vmatprep.subr.bf16.mxu0 %v5598
    %6021 = vmatpush1.bf16.msra.mxu0 %v5597
    %6022 = vmatprep.subr.bf16.mxu0 %v5602
    %6023 = vmatpush1.bf16.msra.mxu0 %v5601
    %6024 = vmatprep.subr.bf16.mxu0 %v5606
    %6025 = vmatpush1.bf16.msra.mxu0 %v5605
    %6026 = vmatprep.subr.bf16.mxu0 %v5610
    %6027 = vmatpush1.bf16.msra.mxu0 %v5609
    %6028 = vmatprep.subr.bf16.mxu0 %v5614
    %6029 = vmatpush1.bf16.msra.mxu0 %v5613
    %6030 = vmatprep.subr.bf16.mxu0 %v5618
    %6031 = vmatpush1.bf16.msra.mxu0 %v5617
    %6032 = vmatprep.mubr.bf16.mxu0 %v4318
    %6033 = vmatmul.mubr.bf16.gmra.mrb[0].mxu0 %v4317
    %v6034 = vpop.f32.mrb[0].mxu0
    %v6035 = vadd.f32 %v5994, %v6034
    %v6036 = vpop.f32.mrb[0].mxu0
    %v6037 = vadd.f32 %v5996, %v6036
    %v6038 = vpop.f32.mrb[0].mxu0
    %v6039 = vpop.f32.mrb[0].mxu0
    %6040 = vdwg.mxu0
    %6041 = vmatprep.subr.bf16.mxu0 %v5368
    %6042 = vmatpush1.bf16.msra.mxu0 %v5367
    %6043 = vmatprep.subr.bf16.mxu0 %v5372
    %6044 = vmatpush1.bf16.msra.mxu0 %v5371
    %6045 = vmatprep.subr.bf16.mxu0 %v5376
    %6046 = vmatpush1.bf16.msra.mxu0 %v5375
    %6047 = vmatprep.subr.bf16.mxu0 %v5380
    %6048 = vmatpush1.bf16.msra.mxu0 %v5379
    %6049 = vmatprep.subr.bf16.mxu0 %v5384
    %6050 = vmatpush1.bf16.msra.mxu0 %v5383
    %6051 = vmatprep.subr.bf16.mxu0 %v5388
    %6052 = vmatpush1.bf16.msra.mxu0 %v5387
    %6053 = vmatprep.subr.bf16.mxu0 %v5392
    %6054 = vmatpush1.bf16.msra.mxu0 %v5391
    %6055 = vmatprep.subr.bf16.mxu0 %v5396
    %6056 = vmatpush1.bf16.msra.mxu0 %v5395
    %6057 = vmatprep.subr.bf16.mxu0 %v5400
    %6058 = vmatpush1.bf16.msra.mxu0 %v5399
    %6059 = vmatprep.subr.bf16.mxu0 %v5404
    %6060 = vmatpush1.bf16.msra.mxu0 %v5403
    %6061 = vmatprep.subr.bf16.mxu0 %v5408
    %6062 = vmatpush1.bf16.msra.mxu0 %v5407
    %6063 = vmatprep.subr.bf16.mxu0 %v5412
    %6064 = vmatpush1.bf16.msra.mxu0 %v5411
    %6065 = vmatprep.subr.bf16.mxu0 %v5416
    %6066 = vmatpush1.bf16.msra.mxu0 %v5415
    %6067 = vmatprep.subr.bf16.mxu0 %v5420
    %6068 = vmatpush1.bf16.msra.mxu0 %v5419
    %6069 = vmatprep.subr.bf16.mxu0 %v5424
    %6070 = vmatpush1.bf16.msra.mxu0 %v5423
    %6071 = vmatprep.subr.bf16.mxu0 %v5428
    %6072 = vmatpush1.bf16.msra.mxu0 %v5427
    %6073 = vmatprep.mubr.bf16.mxu0 %v4312
    %6074 = vmatmul.mubr.bf16.gmra.mrb[0].mxu0 %v4311
    %v6075 = vpop.f32.mrb[0].mxu0
    %v6076 = vadd.f32 %v4588, %v6075
    %v6077 = vpop.f32.mrb[0].mxu0
    %v6078 = vadd.f32 %v4592, %v6077
    %v6079 = vpop.f32.mrb[0].mxu0
    %v6080 = vpop.f32.mrb[0].mxu0
    %6081 = vdwg.mxu0
    %6082 = vmatprep.subr.bf16.mxu0 %v5432
    %6083 = vmatpush1.bf16.msra.mxu0 %v5431
    %6084 = vmatprep.subr.bf16.mxu0 %v5436
    %6085 = vmatpush1.bf16.msra.mxu0 %v5435
    %6086 = vmatprep.subr.bf16.mxu0 %v5440
    %6087 = vmatpush1.bf16.msra.mxu0 %v5439
    %6088 = vmatprep.subr.bf16.mxu0 %v5444
    %6089 = vmatpush1.bf16.msra.mxu0 %v5443
    %6090 = vmatprep.subr.bf16.mxu0 %v5448
    %6091 = vmatpush1.bf16.msra.mxu0 %v5447
    %6092 = vmatprep.subr.bf16.mxu0 %v5452
    %6093 = vmatpush1.bf16.msra.mxu0 %v5451
    %6094 = vmatprep.subr.bf16.mxu0 %v5456
    %6095 = vmatpush1.bf16.msra.mxu0 %v5455
    %6096 = vmatprep.subr.bf16.mxu0 %v5460
    %6097 = vmatpush1.bf16.msra.mxu0 %v5459
    %6098 = vmatprep.subr.bf16.mxu0 %v5464
    %6099 = vmatpush1.bf16.msra.mxu0 %v5463
    %6100 = vmatprep.subr.bf16.mxu0 %v5468
    %6101 = vmatpush1.bf16.msra.mxu0 %v5467
    %6102 = vmatprep.subr.bf16.mxu0 %v5472
    %6103 = vmatpush1.bf16.msra.mxu0 %v5471
    %6104 = vmatprep.subr.bf16.mxu0 %v5476
    %6105 = vmatpush1.bf16.msra.mxu0 %v5475
    %6106 = vmatprep.subr.bf16.mxu0 %v5480
    %6107 = vmatpush1.bf16.msra.mxu0 %v5479
    %6108 = vmatprep.subr.bf16.mxu0 %v5484
    %6109 = vmatpush1.bf16.msra.mxu0 %v5483
    %6110 = vmatprep.subr.bf16.mxu0 %v5488
    %6111 = vmatpush1.bf16.msra.mxu0 %v5487
    %6112 = vmatprep.subr.bf16.mxu0 %v5492
    %6113 = vmatpush1.bf16.msra.mxu0 %v5491
    %6114 = vmatprep.mubr.bf16.mxu0 %v4314
    %6115 = vmatmul.mubr.bf16.gmra.mrb[0].mxu0 %v4313
    %v6116 = vpop.f32.mrb[0].mxu0
    %v6117 = vadd.f32 %v6076, %v6116
    %v6118 = vpop.f32.mrb[0].mxu0
    %v6119 = vadd.f32 %v6078, %v6118
    %v6120 = vpop.f32.mrb[0].mxu0
    %v6121 = vpop.f32.mrb[0].mxu0
    %6122 = vdwg.mxu0
    %6123 = vmatprep.subr.bf16.mxu0 %v5496
    %6124 = vmatpush1.bf16.msra.mxu0 %v5495
    %6125 = vmatprep.subr.bf16.mxu0 %v5500
    %6126 = vmatpush1.bf16.msra.mxu0 %v5499
    %6127 = vmatprep.subr.bf16.mxu0 %v5504
    %6128 = vmatpush1.bf16.msra.mxu0 %v5503
    %6129 = vmatprep.subr.bf16.mxu0 %v5508
    %6130 = vmatpush1.bf16.msra.mxu0 %v5507
    %6131 = vmatprep.subr.bf16.mxu0 %v5512
    %6132 = vmatpush1.bf16.msra.mxu0 %v5511
    %6133 = vmatprep.subr.bf16.mxu0 %v5516
    %6134 = vmatpush1.bf16.msra.mxu0 %v5515
    %6135 = vmatprep.subr.bf16.mxu0 %v5520
    %6136 = vmatpush1.bf16.msra.mxu0 %v5519
    %6137 = vmatprep.subr.bf16.mxu0 %v5524
    %6138 = vmatpush1.bf16.msra.mxu0 %v5523
    %6139 = vmatprep.subr.bf16.mxu0 %v5528
    %6140 = vmatpush1.bf16.msra.mxu0 %v5527
    %6141 = vmatprep.subr.bf16.mxu0 %v5532
    %6142 = vmatpush1.bf16.msra.mxu0 %v5531
    %6143 = vmatprep.subr.bf16.mxu0 %v5536
    %6144 = vmatpush1.bf16.msra.mxu0 %v5535
    %6145 = vmatprep.subr.bf16.mxu0 %v5540
    %6146 = vmatpush1.bf16.msra.mxu0 %v5539
    %6147 = vmatprep.subr.bf16.mxu0 %v5544
    %6148 = vmatpush1.bf16.msra.mxu0 %v5543
    %6149 = vmatprep.subr.bf16.mxu0 %v5548
    %6150 = vmatpush1.bf16.msra.mxu0 %v5547
    %6151 = vmatprep.subr.bf16.mxu0 %v5552
    %6152 = vmatpush1.bf16.msra.mxu0 %v5551
    %6153 = vmatprep.subr.bf16.mxu0 %v5556
    %6154 = vmatpush1.bf16.msra.mxu0 %v5555
    %6155 = vmatprep.mubr.bf16.mxu0 %v4316
    %6156 = vmatmul.mubr.bf16.gmra.mrb[0].mxu0 %v4315
    %v6157 = vpop.f32.mrb[0].mxu0
    %v6158 = vadd.f32 %v6117, %v6157
    %v6159 = vpop.f32.mrb[0].mxu0
    %v6160 = vadd.f32 %v6119, %v6159
    %v6161 = vpop.f32.mrb[0].mxu0
    %v6162 = vpop.f32.mrb[0].mxu0
    %6163 = vdwg.mxu0
    %6164 = vmatprep.subr.bf16.mxu0 %v5560
    %6165 = vmatpush1.bf16.msra.mxu0 %v5559
    %6166 = vmatprep.subr.bf16.mxu0 %v5564
    %6167 = vmatpush1.bf16.msra.mxu0 %v5563
    %6168 = vmatprep.subr.bf16.mxu0 %v5568
    %6169 = vmatpush1.bf16.msra.mxu0 %v5567
    %6170 = vmatprep.subr.bf16.mxu0 %v5572
    %6171 = vmatpush1.bf16.msra.mxu0 %v5571
    %6172 = vmatprep.subr.bf16.mxu0 %v5576
    %6173 = vmatpush1.bf16.msra.mxu0 %v5575
    %6174 = vmatprep.subr.bf16.mxu0 %v5580
    %6175 = vmatpush1.bf16.msra.mxu0 %v5579
    %6176 = vmatprep.subr.bf16.mxu0 %v5584
    %6177 = vmatpush1.bf16.msra.mxu0 %v5583
    %6178 = vmatprep.subr.bf16.mxu0 %v5588
    %6179 = vmatpush1.bf16.msra.mxu0 %v5587
    %6180 = vmatprep.subr.bf16.mxu0 %v5592
    %6181 = vmatpush1.bf16.msra.mxu0 %v5591
    %6182 = vmatprep.subr.bf16.mxu0 %v5596
    %6183 = vmatpush1.bf16.msra.mxu0 %v5595
    %6184 = vmatprep.subr.bf16.mxu0 %v5600
    %6185 = vmatpush1.bf16.msra.mxu0 %v5599
    %6186 = vmatprep.subr.bf16.mxu0 %v5604
    %6187 = vmatpush1.bf16.msra.mxu0 %v5603
    %6188 = vmatprep.subr.bf16.mxu0 %v5608
    %6189 = vmatpush1.bf16.msra.mxu0 %v5607
    %6190 = vmatprep.subr.bf16.mxu0 %v5612
    %6191 = vmatpush1.bf16.msra.mxu0 %v5611
    %6192 = vmatprep.subr.bf16.mxu0 %v5616
    %6193 = vmatpush1.bf16.msra.mxu0 %v5615
    %6194 = vmatprep.subr.bf16.mxu0 %v5620
    %6195 = vmatpush1.bf16.msra.mxu0 %v5619
    %6196 = vmatprep.mubr.bf16.mxu0 %v4318
    %6197 = vmatmul.mubr.bf16.gmra.mrb[0].mxu0 %v4317
    %v6198 = vpop.f32.mrb[0].mxu0
    %v6199 = vadd.f32 %v6158, %v6198
    %v6200 = vpop.f32.mrb[0].mxu0
    %v6201 = vadd.f32 %v6160, %v6200
    %v6202 = vpop.f32.mrb[0].mxu0
    %v6203 = vpop.f32.mrb[0].mxu0
    %6204 = vdwg.mxu0
    %v6205 = vmul.f32 %v6035, 0.5
    %v6206 = vmul.f32 %v6037, 0.5
    %v6207 = vmul.f32 %v6199, 0.5
    %v6208 = vmul.f32 %v6201, 0.5
    %v6209 = vmul.f32 %v6035, 0.70710677
    %v6210 = vmul.f32 %v6037, 0.70710677
    %v6211 = vmul.f32 %v6199, 0.70710677
    %v6212 = vmul.f32 %v6201, 0.70710677
    %v6213 = verf.f32.pop %v6209
    %v6214 = verf.f32.pop %v6210
    %v6215 = verf.f32.pop %v6211
    %v6216 = verf.f32.pop %v6212
    %v6217 = vadd.f32 %v6213, 1.0
    %v6218 = vadd.f32 %v6214, 1.0
    %v6219 = vadd.f32 %v6215, 1.0
    %v6220 = vadd.f32 %v6216, 1.0
    %v6221 = vmul.f32 %v6205, %v6217
    %v6222 = vmul.f32 %v6206, %v6218
    %v6223 = vmul.f32 %v6207, %v6219
    %v6224 = vmul.f32 %v6208, %v6220
    %v6225 = vpack.c.bf16 %v6221, %v6221
    %v6226 = vpack.c.bf16 %v6222, %v6222
    %v6227 = vpack.c.bf16 %v6223, %v6223
    %v6228 = vpack.c.bf16 %v6224, %v6224
    %v6229 = vld [vmem:[#allocation14] sm:$0xf]
    %v6230 = vld [vmem:[#allocation14 + $0x4] sm:$0xf]
    %v6231 = vld [vmem:[#allocation14 + $0x8] sm:$0xf]
    %v6232 = vld [vmem:[#allocation14 + $0xc] sm:$0xf]
    %v6233 = vld [vmem:[#allocation14 + $0x10] sm:$0xf]
    %v6234 = vld [vmem:[#allocation14 + $0x14] sm:$0xf]
    %v6235 = vld [vmem:[#allocation14 + $0x18] sm:$0xf]
    %v6236 = vld [vmem:[#allocation14 + $0x1c] sm:$0xf]
    %v6237 = vld [vmem:[#allocation14 + $0x20] sm:$0xf]
    %v6238 = vld [vmem:[#allocation14 + $0x24] sm:$0xf]
    %v6239 = vld [vmem:[#allocation14 + $0x28] sm:$0xf]
    %v6240 = vld [vmem:[#allocation14 + $0x2c] sm:$0xf]
    %v6241 = vld [vmem:[#allocation14 + $0x30] sm:$0xf]
    %v6242 = vld [vmem:[#allocation14 + $0x34] sm:$0xf]
    %v6243 = vld [vmem:[#allocation14 + $0x38] sm:$0xf]
    %v6244 = vld [vmem:[#allocation14 + $0x3c] sm:$0xf]
    %v6245 = vld [vmem:[#allocation14 + $0x40] sm:$0xf]
    %v6246 = vld [vmem:[#allocation14 + $0x44] sm:$0xf]
    %v6247 = vld [vmem:[#allocation14 + $0x48] sm:$0xf]
    %v6248 = vld [vmem:[#allocation14 + $0x4c] sm:$0xf]
    %v6249 = vld [vmem:[#allocation14 + $0x50] sm:$0xf]
    %v6250 = vld [vmem:[#allocation14 + $0x54] sm:$0xf]
    %v6251 = vld [vmem:[#allocation14 + $0x58] sm:$0xf]
    %v6252 = vld [vmem:[#allocation14 + $0x5c] sm:$0xf]
    %v6253 = vld [vmem:[#allocation14 + $0x60] sm:$0xf]
    %v6254 = vld [vmem:[#allocation14 + $0x64] sm:$0xf]
    %v6255 = vld [vmem:[#allocation14 + $0x68] sm:$0xf]
    %v6256 = vld [vmem:[#allocation14 + $0x6c] sm:$0xf]
    %v6257 = vld [vmem:[#allocation14 + $0x70] sm:$0xf]
    %v6258 = vld [vmem:[#allocation14 + $0x74] sm:$0xf]
    %v6259 = vld [vmem:[#allocation14 + $0x78] sm:$0xf]
    %v6260 = vld [vmem:[#allocation14 + $0x7c] sm:$0xf]
    %v6261 = vld [vmem:[#allocation14 + $0x80] sm:$0xf]
    %v6262 = vld [vmem:[#allocation14 + $0x84] sm:$0xf]
    %v6263 = vld [vmem:[#allocation14 + $0x88] sm:$0xf]
    %v6264 = vld [vmem:[#allocation14 + $0x8c] sm:$0xf]
    %v6265 = vld [vmem:[#allocation14 + $0x90] sm:$0xf]
    %v6266 = vld [vmem:[#allocation14 + $0x94] sm:$0xf]
    %v6267 = vld [vmem:[#allocation14 + $0x98] sm:$0xf]
    %v6268 = vld [vmem:[#allocation14 + $0x9c] sm:$0xf]
    %v6269 = vld [vmem:[#allocation14 + $0xa0] sm:$0xf]
    %v6270 = vld [vmem:[#allocation14 + $0xa4] sm:$0xf]
    %v6271 = vld [vmem:[#allocation14 + $0xa8] sm:$0xf]
    %v6272 = vld [vmem:[#allocation14 + $0xac] sm:$0xf]
    %v6273 = vld [vmem:[#allocation14 + $0xb0] sm:$0xf]
    %v6274 = vld [vmem:[#allocation14 + $0xb4] sm:$0xf]
    %v6275 = vld [vmem:[#allocation14 + $0xb8] sm:$0xf]
    %v6276 = vld [vmem:[#allocation14 + $0xbc] sm:$0xf]
    %v6277 = vld [vmem:[#allocation14 + $0xc0] sm:$0xf]
    %v6278 = vld [vmem:[#allocation14 + $0xc4] sm:$0xf]
    %v6279 = vld [vmem:[#allocation14 + $0xc8] sm:$0xf]
    %v6280 = vld [vmem:[#allocation14 + $0xcc] sm:$0xf]
    %v6281 = vld [vmem:[#allocation14 + $0xd0] sm:$0xf]
    %v6282 = vld [vmem:[#allocation14 + $0xd4] sm:$0xf]
    %v6283 = vld [vmem:[#allocation14 + $0xd8] sm:$0xf]
    %v6284 = vld [vmem:[#allocation14 + $0xdc] sm:$0xf]
    %v6285 = vld [vmem:[#allocation14 + $0xe0] sm:$0xf]
    %v6286 = vld [vmem:[#allocation14 + $0xe4] sm:$0xf]
    %v6287 = vld [vmem:[#allocation14 + $0xe8] sm:$0xf]
    %v6288 = vld [vmem:[#allocation14 + $0xec] sm:$0xf]
    %v6289 = vld [vmem:[#allocation14 + $0xf0] sm:$0xf]
    %v6290 = vld [vmem:[#allocation14 + $0xf4] sm:$0xf]
    %v6291 = vld [vmem:[#allocation14 + $0xf8] sm:$0xf]
    %v6292 = vld [vmem:[#allocation14 + $0xfc] sm:$0xf]
    %v6293 = vld [vmem:[#allocation16] sm:$0x1]
    %v6295 = vlaneseq
    %v6296 = vshrl.u32 %v6295, 7
    %v6297 = vsub.s32 0, %v6296
    %v6298 = vrot.slane %v6293, %v6297
    %v6364 = vunpack.c.l.b16 %v6229
    %v6365 = vunpack.c.l.b16 %v6230
    %v6366 = vunpack.c.l.b16 %v6231
    %v6367 = vunpack.c.l.b16 %v6232
    %v6368 = vunpack.c.l.b16 %v6233
    %v6369 = vunpack.c.l.b16 %v6234
    %v6370 = vunpack.c.l.b16 %v6235
    %v6371 = vunpack.c.l.b16 %v6236
    %v6372 = vunpack.c.l.b16 %v6237
    %v6373 = vunpack.c.l.b16 %v6238
    %v6374 = vunpack.c.l.b16 %v6239
    %v6375 = vunpack.c.l.b16 %v6240
    %v6376 = vunpack.c.l.b16 %v6241
    %v6377 = vunpack.c.l.b16 %v6242
    %v6378 = vunpack.c.l.b16 %v6243
    %v6379 = vunpack.c.l.b16 %v6244
    %v6380 = vunpack.c.l.b16 %v6245
    %v6381 = vunpack.c.l.b16 %v6246
    %v6382 = vunpack.c.l.b16 %v6247
    %v6383 = vunpack.c.l.b16 %v6248
    %v6384 = vunpack.c.l.b16 %v6249
    %v6385 = vunpack.c.l.b16 %v6250
    %v6386 = vunpack.c.l.b16 %v6251
    %v6387 = vunpack.c.l.b16 %v6252
    %v6388 = vunpack.c.l.b16 %v6253
    %v6389 = vunpack.c.l.b16 %v6254
    %v6390 = vunpack.c.l.b16 %v6255
    %v6391 = vunpack.c.l.b16 %v6256
    %v6392 = vunpack.c.l.b16 %v6257
    %v6393 = vunpack.c.l.b16 %v6258
    %v6394 = vunpack.c.l.b16 %v6259
    %v6395 = vunpack.c.l.b16 %v6260
    %v6396 = vunpack.c.l.b16 %v6261
    %v6397 = vunpack.c.l.b16 %v6262
    %v6398 = vunpack.c.l.b16 %v6263
    %v6399 = vunpack.c.l.b16 %v6264
    %v6400 = vunpack.c.l.b16 %v6265
    %v6401 = vunpack.c.l.b16 %v6266
    %v6402 = vunpack.c.l.b16 %v6267
    %v6403 = vunpack.c.l.b16 %v6268
    %v6404 = vunpack.c.l.b16 %v6269
    %v6405 = vunpack.c.l.b16 %v6270
    %v6406 = vunpack.c.l.b16 %v6271
    %v6407 = vunpack.c.l.b16 %v6272
    %v6408 = vunpack.c.l.b16 %v6273
    %v6409 = vunpack.c.l.b16 %v6274
    %v6410 = vunpack.c.l.b16 %v6275
    %v6411 = vunpack.c.l.b16 %v6276
    %v6412 = vunpack.c.l.b16 %v6277
    %v6413 = vunpack.c.l.b16 %v6278
    %v6414 = vunpack.c.l.b16 %v6279
    %v6415 = vunpack.c.l.b16 %v6280
    %v6416 = vunpack.c.l.b16 %v6281
    %v6417 = vunpack.c.l.b16 %v6282
    %v6418 = vunpack.c.l.b16 %v6283
    %v6419 = vunpack.c.l.b16 %v6284
    %v6420 = vunpack.c.l.b16 %v6285
    %v6421 = vunpack.c.l.b16 %v6286
    %v6422 = vunpack.c.l.b16 %v6287
    %v6423 = vunpack.c.l.b16 %v6288
    %v6424 = vunpack.c.l.b16 %v6289
    %v6425 = vunpack.c.l.b16 %v6290
    %v6426 = vunpack.c.l.b16 %v6291
    %v6427 = vunpack.c.l.b16 %v6292
    %v6428 = vpack.c.b16 %v6365, %v6364
    %v6429 = vpack.c.b16 %v6367, %v6366
    %v6430 = vpack.c.b16 %v6369, %v6368
    %v6431 = vpack.c.b16 %v6371, %v6370
    %v6432 = vpack.c.b16 %v6373, %v6372
    %v6433 = vpack.c.b16 %v6375, %v6374
    %v6434 = vpack.c.b16 %v6377, %v6376
    %v6435 = vpack.c.b16 %v6379, %v6378
    %v6436 = vpack.c.b16 %v6381, %v6380
    %v6437 = vpack.c.b16 %v6383, %v6382
    %v6438 = vpack.c.b16 %v6385, %v6384
    %v6439 = vpack.c.b16 %v6387, %v6386
    %v6440 = vpack.c.b16 %v6389, %v6388
    %v6441 = vpack.c.b16 %v6391, %v6390
    %v6442 = vpack.c.b16 %v6393, %v6392
    %v6443 = vpack.c.b16 %v6395, %v6394
    %v6444 = vpack.c.b16 %v6397, %v6396
    %v6445 = vpack.c.b16 %v6399, %v6398
    %v6446 = vpack.c.b16 %v6401, %v6400
    %v6447 = vpack.c.b16 %v6403, %v6402
    %v6448 = vpack.c.b16 %v6405, %v6404
    %v6449 = vpack.c.b16 %v6407, %v6406
    %v6450 = vpack.c.b16 %v6409, %v6408
    %v6451 = vpack.c.b16 %v6411, %v6410
    %v6452 = vpack.c.b16 %v6413, %v6412
    %v6453 = vpack.c.b16 %v6415, %v6414
    %v6454 = vpack.c.b16 %v6417, %v6416
    %v6455 = vpack.c.b16 %v6419, %v6418
    %v6456 = vpack.c.b16 %v6421, %v6420
    %v6457 = vpack.c.b16 %v6423, %v6422
    %v6458 = vpack.c.b16 %v6425, %v6424
    %v6459 = vpack.c.b16 %v6427, %v6426
    %6492 = vmatprep.subr.bf16.mxu0 0
    %6493 = vmatpush1.bf16.msra.mxu0 %v6428
    %6494 = vmatprep.subr.bf16.mxu0 0
    %6495 = vmatpush1.bf16.msra.mxu0 %v6429
    %6496 = vmatprep.subr.bf16.mxu0 0
    %6497 = vmatpush1.bf16.msra.mxu0 %v6430
    %6498 = vmatprep.subr.bf16.mxu0 0
    %6499 = vmatpush1.bf16.msra.mxu0 %v6431
    %6500 = vmatprep.subr.bf16.mxu0 0
    %6501 = vmatpush1.bf16.msra.mxu0 %v6432
    %6502 = vmatprep.subr.bf16.mxu0 0
    %6503 = vmatpush1.bf16.msra.mxu0 %v6433
    %6504 = vmatprep.subr.bf16.mxu0 0
    %6505 = vmatpush1.bf16.msra.mxu0 %v6434
    %6506 = vmatprep.subr.bf16.mxu0 0
    %6507 = vmatpush1.bf16.msra.mxu0 %v6435
    %6508 = vmatprep.subr.bf16.mxu0 0
    %6509 = vmatpush1.bf16.msra.mxu0 %v6436
    %6510 = vmatprep.subr.bf16.mxu0 0
    %6511 = vmatpush1.bf16.msra.mxu0 %v6437
    %6512 = vmatprep.subr.bf16.mxu0 0
    %6513 = vmatpush1.bf16.msra.mxu0 %v6438
    %6514 = vmatprep.subr.bf16.mxu0 0
    %6515 = vmatpush1.bf16.msra.mxu0 %v6439
    %6516 = vmatprep.subr.bf16.mxu0 0
    %6517 = vmatpush1.bf16.msra.mxu0 %v6440
    %6518 = vmatprep.subr.bf16.mxu0 0
    %6519 = vmatpush1.bf16.msra.mxu0 %v6441
    %6520 = vmatprep.subr.bf16.mxu0 0
    %6521 = vmatpush1.bf16.msra.mxu0 %v6442
    %6522 = vmatprep.subr.bf16.mxu0 0
    %6523 = vmatpush1.bf16.msra.mxu0 %v6443
    %6524 = vmatprep.mubr.bf16.mxu0 %v6226
    %6525 = vmatmul.mubr.bf16.gmra.mrb[0].mxu0 %v6225
    %v6526 = vpop.f32.mrb[0].mxu0
    %v6527 = vadd.f32 %v6298, %v6526
    %v6528 = vpop.f32.mrb[0].mxu0
    %v6529 = vpop.f32.mrb[0].mxu0
    %v6530 = vpop.f32.mrb[0].mxu0
    %6531 = vdwg.mxu0
    %6532 = vmatprep.subr.bf16.mxu0 0
    %6533 = vmatpush1.bf16.msra.mxu0 %v6444
    %6534 = vmatprep.subr.bf16.mxu0 0
    %6535 = vmatpush1.bf16.msra.mxu0 %v6445
    %6536 = vmatprep.subr.bf16.mxu0 0
    %6537 = vmatpush1.bf16.msra.mxu0 %v6446
    %6538 = vmatprep.subr.bf16.mxu0 0
    %6539 = vmatpush1.bf16.msra.mxu0 %v6447
    %6540 = vmatprep.subr.bf16.mxu0 0
    %6541 = vmatpush1.bf16.msra.mxu0 %v6448
    %6542 = vmatprep.subr.bf16.mxu0 0
    %6543 = vmatpush1.bf16.msra.mxu0 %v6449
    %6544 = vmatprep.subr.bf16.mxu0 0
    %6545 = vmatpush1.bf16.msra.mxu0 %v6450
    %6546 = vmatprep.subr.bf16.mxu0 0
    %6547 = vmatpush1.bf16.msra.mxu0 %v6451
    %6548 = vmatprep.subr.bf16.mxu0 0
    %6549 = vmatpush1.bf16.msra.mxu0 %v6452
    %6550 = vmatprep.subr.bf16.mxu0 0
    %6551 = vmatpush1.bf16.msra.mxu0 %v6453
    %6552 = vmatprep.subr.bf16.mxu0 0
    %6553 = vmatpush1.bf16.msra.mxu0 %v6454
    %6554 = vmatprep.subr.bf16.mxu0 0
    %6555 = vmatpush1.bf16.msra.mxu0 %v6455
    %6556 = vmatprep.subr.bf16.mxu0 0
    %6557 = vmatpush1.bf16.msra.mxu0 %v6456
    %6558 = vmatprep.subr.bf16.mxu0 0
    %6559 = vmatpush1.bf16.msra.mxu0 %v6457
    %6560 = vmatprep.subr.bf16.mxu0 0
    %6561 = vmatpush1.bf16.msra.mxu0 %v6458
    %6562 = vmatprep.subr.bf16.mxu0 0
    %6563 = vmatpush1.bf16.msra.mxu0 %v6459
    %6564 = vmatprep.mubr.bf16.mxu0 %v6228
    %6565 = vmatmul.mubr.bf16.gmra.mrb[0].mxu0 %v6227
    %v6566 = vpop.f32.mrb[0].mxu0
    %v6567 = vadd.f32 %v6527, %v6566
    %v6568 = vpop.f32.mrb[0].mxu0
    %v6569 = vpop.f32.mrb[0].mxu0
    %v6570 = vpop.f32.mrb[0].mxu0
    %6571 = vdwg.mxu0
    %v6572 = vlaneseq
    %v6573 = vand.u32 %v6572, 127
    %vm6574 = vcmp.eq.s32.totalorder %v6573, 0
    %v6575 = vxor.u32 %v6567, 2147483648
    %v6576 = vmul.f32 %v6575, 1.442695
    %v6577 = vpow.pop %v6576
    %v6578 = vadd.f32 %v6577, 1.0
    %v6579 = vrcp.pop %v6578
    %v6580 = vmul.f32 1.0, %v6579
    %v6581 = vsel %vm6574, %v6580, %v6567
    %6582 = vst [vmem:[#allocation17] sm:$0xff] %v6581
    // Predicated region
    $region74: #{_run_kernel.1} parent=1 // pred_check
      _
    $region75: #{_run_kernel.1} parent=1 // pred_check_branch
      %6584 = sbr.rel (0) target = $region77
    $region76: #{_run_kernel.1} parent=1 // pred_region
      %s6586 = ssub.s32 128, 128
      %6587 = vsyncadd [#allocation4], %s6586
      %s6589 = sshll.u32 [#allocation17], 4
      %s6590 = int_to_ptr.vmem [resolvable:$true] %s6589
      %6592 = dma.vmem_to_hbm [thread:$0]  %s6590, 128, %s9, [#allocation4]
    $region77: #{_run_kernel.1} parent=1 // pred_fallthru
      _
    // Predicated region
    $region78: #{_run_kernel.1} parent=1 // pred_check
      _
    $region79: #{_run_kernel.1} parent=1 // pred_check_branch
      %6594 = sbr.rel (0) target = $region81
    $region80: #{_run_kernel.1} parent=1 // pred_region
      %6595 = dma.done [#allocation4], 128
    $region81: #{_run_kernel.1} parent=1 // pred_fallthru
      _
    %6596 = vsyncpa [#allocation3], 1
    %6597 = vsyncpa [#allocation6], 1
    %6598 = vsyncpa [#allocation9], 1
    %6599 = vsyncpa [#allocation12], 1
    %6600 = vsyncpa [#allocation15], 1
    %6601 = vsyncpa [#allocation4], 1

</llo_original>
